<compile_context>
chip_gen: v7x
topology: tpu7x:2x2x1
jax: 0.10.0
libtpu: 0.0.40
codegen_flags: <defaults>
</compile_context>

<pallas_src>
import functools
import math

import jax
import jax.numpy as jnp
from jax import lax
from jax.experimental import pallas as pl
from jax.experimental.pallas import tpu as pltpu


# -----------------------------------------------------------------------------
# Fused kernel: one grid step = BS batch elements; conv1 + conv2 + residual + concat.
# -----------------------------------------------------------------------------
def _make_ffc_block_kernel(BS, H, W, cl, cg):
    C = cl + cg
    N = H * W
    R = BS * N                      # rows fed to every matmul / BN epilogue
    c = cg // 2
    c4 = c // 4
    H2, W2 = H // 2, W // 2
    bf16 = jnp.bfloat16

    def kernel(x_ref, w3_ref, w1_ref, bno_ref, bns_ref, y_ref):
        x4 = x_ref[...]                                    # (BS, H, W, C) f32

        def ffc_layer(x4, l):
            # ---------------- global -> global : SpectralTransform -----------------
            # conv1 (1x1) + BN + ReLU.  Weight rows for the local channels are zero, so
            # the full-width input needs no lane slice; cast once.
            xb = x4.reshape(R, C).astype(bf16)
            t = jnp.dot(xb, w1_ref[l, 0], preferred_element_type=jnp.float32)   # (R, C)
            t = jnp.maximum(t * bns_ref[l, 0] + bns_ref[l, 1], 0.0)   # pad cols stay 0

            fu = jnp.dot(t.astype(bf16), w1_ref[l, 1],
                         preferred_element_type=jnp.float32)
            fu = jnp.maximum(fu * bns_ref[l, 2] + bns_ref[l, 3], 0.0)

            # LFU: stack the 2x2 spatial quadrants of the first c//4 channels on lanes.
            # H/W slices are 8-sublane aligned (H2 = W2 = 8).
            t4 = t.reshape(BS, H, W, C)
            quads = [t4[:, :H2, :W2, :c4], t4[:, H2:, :W2, :c4],
                     t4[:, :H2, W2:, :c4], t4[:, H2:, W2:, :c4],
                     jnp.zeros((BS, H2, W2, C - 4 * c4), jnp.float32)]
            xs = jnp.concatenate(quads, axis=-1).astype(bf16)          # (BS, H2, W2, C)
            xs = jnp.dot(xs.reshape(BS * H2 * W2, C), w1_ref[l, 2],
                         preferred_element_type=jnp.float32)
            xs = jnp.maximum(xs * bns_ref[l, 4] + bns_ref[l, 5], 0.0)
            xs = xs.reshape(BS, H2, W2, C)
            xs = jnp.concatenate([xs, xs], axis=2)   # tile W: 8-aligned sublane concat
            xs = jnp.concatenate([xs, xs], axis=1)   # tile H: non-layout dim (free)

            # conv2 (1x1): weight packed full output width (local columns zero), so the
            # result adds straight into the 3x3-conv accumulator (no zeros||concat init).
            s = (t + fu + xs.reshape(R, C)).astype(bf16)
            cg2g = jnp.dot(s, w1_ref[l, 3], preferred_element_type=jnp.float32)  # (R, C)

            # ------------- 3x3 reflect-pad conv (l2l | g2l | l2g packed) ------------
            xp = jnp.concatenate([x4[:, 1:2], x4, x4[:, H - 2:H - 1]], axis=1)
            xp = jnp.concatenate([xp[:, :, 1:2], xp, xp[:, :, W - 2:W - 1]], axis=2)
            xpb = xp.astype(bf16)                    # single cast of the padded tensor
            # 3 kx-shifted views (sublane) -> lane concat; ky views are free H slices;
            # one im2col dot with K = 9*C = 144 (no 9-deep serial accumulation).
            xcat = jnp.concatenate([xpb[:, :, 0:W], xpb[:, :, 1:W + 1],
                                    xpb[:, :, 2:W + 2]], axis=-1)      # (BS, H+2, W, 3C)
            xim = jnp.concatenate([xcat[:, 0:H], xcat[:, 1:H + 1],
                                   xcat[:, 2:H + 2]], axis=-1)         # (BS, H, W, 9C)
            conv = jnp.dot(xim.reshape(R, 9 * C), w3_ref[l],
                           preferred_element_type=jnp.float32)         # (R, C)

            # fused BatchNorm (eval) + ReLU over the concatenated [local|global] output.
            return jnp.maximum((conv + cg2g) * bno_ref[l, 0] + bno_ref[l, 1], 0.0)

        y1 = ffc_layer(x4, 0)
        y2 = ffc_layer(y1.reshape(BS, H, W, C), 1)
        y_ref[...] = (y2 + x4.reshape(R, C)).reshape(BS, H, W, C)   # residual + concat

    return kernel


# -----------------------------------------------------------------------------
# Grid choice per TPU generation.
# -----------------------------------------------------------------------------
def _grid_steps(batch):
    """Single-TC chips (v5e/v6e): fold the whole batch into one grid step.
    Dual-TC / megacore chips (v7x, v4/v5p): keep a 2-way 'parallel' grid."""
    single_tc = False
    try:
        kind = jax.devices()[0].device_kind.lower()
        single_tc = ("lite" in kind) or ("v5e" in kind) or ("v6e" in kind)
    except Exception:
        pass
    steps = 1 if single_tc else min(batch, 2)
    while batch % steps:
        steps -= 1
    return max(steps, 1)


# -----------------------------------------------------------------------------
# Wrapper: NHWC in / NHWC out — no layout transposes wrap the kernel.
# -----------------------------------------------------------------------------
@functools.partial(jax.jit, static_argnames=("cl", "cg", "steps"))
def _ffc_resnet_block_impl(x_nhwc, w3, w1, bno, bns, *, cl, cg, steps):
    B, H, W, C = x_nhwc.shape
    assert C == cl + cg and cl == 8 and cg == 8, "kernel specialized to dim=16, ratio=0.5"
    assert H % 2 == 0 and W % 2 == 0 and (cg // 2) % 4 == 0
    assert B % steps == 0
    BS = B // steps

    kernel = _make_ffc_block_kernel(BS, H, W, cl, cg)

    data_spec = pl.BlockSpec((BS, H, W, C), lambda b: (b, 0, 0, 0))

    def full_spec(a):
        nd = a.ndim
        return pl.BlockSpec(a.shape, lambda b, nd=nd: (0,) * nd)

    return pl.pallas_call(
        kernel,
        grid=(steps,),
        in_specs=[data_spec, full_spec(w3), full_spec(w1), full_spec(bno), full_spec(bns)],
        out_specs=data_spec,
        out_shape=jax.ShapeDtypeStruct((B, H, W, C), jnp.float32),
        compiler_params=pltpu.CompilerParams(dimension_semantics=("parallel",)),
    )(x_nhwc, w3, w1, bno, bns)


def ffc_resnet_block_pallas(x_nhwc, w3, w1, bno, bns, *, cl, cg):
    steps = _grid_steps(x_nhwc.shape[0])
    return _ffc_resnet_block_impl(x_nhwc, w3, w1, bno, bns, cl=cl, cg=cg, steps=steps)


# -----------------------------------------------------------------------------
# Deterministic synthetic parameters (eval-mode BN folded into scale/shift).
# -----------------------------------------------------------------------------
def make_bn(key, ch):
    k1, k2, k3, k4 = jax.random.split(key, 4)
    gamma = jax.random.uniform(k1, (ch,), minval=0.5, maxval=1.5)
    beta = jax.random.normal(k2, (ch,)) * 0.1
    mean = jax.random.normal(k3, (ch,)) * 0.1
    var = jax.random.uniform(k4, (ch,), minval=0.5, maxval=1.5)
    scale = gamma / jnp.sqrt(var + 1e-5)
    shift = beta - mean * scale
    return scale.astype(jnp.float32), shift.astype(jnp.float32)


def make_conv3(key, cin, cout):        # HWIO (3,3,cin,cout)
    w = jax.random.normal(key, (3, 3, cin, cout)) * (1.0 / math.sqrt(9 * cin))
    return w.astype(jnp.float32)


def make_conv1(key, cin, cout):        # (cin, cout)
    w = jax.random.normal(key, (cin, cout)) * (1.0 / math.sqrt(cin))
    return w.astype(jnp.float32)


def make_layer_params(key, cl, cg):
    ks = jax.random.split(key, 12)
    c = cg // 2
    p = {}
    p["wl2l"] = make_conv3(ks[0], cl, cl)
    p["wg2l"] = make_conv3(ks[1], cg, cl)
    p["wl2g"] = make_conv3(ks[2], cl, cg)
    p["st1_w"] = make_conv1(ks[3], cg, c)
    p["st1_s"], p["st1_b"] = make_bn(ks[4], c)
    p["fu_w"] = make_conv1(ks[5], c, c)
    p["fu_s"], p["fu_b"] = make_bn(ks[6], c)
    p["lfu_w"] = make_conv1(ks[7], c, c)
    p["lfu_s"], p["lfu_b"] = make_bn(ks[8], c)
    p["st2_w"] = make_conv1(ks[9], c, cg)
    p["bnl_s"], p["bnl_b"] = make_bn(ks[10], cl)
    p["bng_s"], p["bng_b"] = make_bn(ks[11], cg)
    return p


def pack_params(layers, cl, cg):
    """Pack both layers' parameters into 4 kernel operands."""
    C = cl + cg
    c = cg // 2
    c4 = c // 4
    w3_l, w1_l, bno_l, bns_l = [], [], [], []
    for p in layers:
        # 3x3 weights -> (9*C, C) im2col weight (row = (ky*3+kx)*C + cin), g->g zeroed.
        top = jnp.concatenate([p["wl2l"], p["wl2g"]], axis=-1)                  # (3,3,cl,C)
        bot = jnp.concatenate([p["wg2l"], jnp.zeros((3, 3, cg, cg), jnp.float32)], axis=-1)
        w3_l.append(jnp.concatenate([top, bot], axis=2).reshape(9 * C, C))

        # 1x1 spectral weights, all padded to (C, C).
        w1 = jnp.zeros((4, C, C), jnp.float32)
        w1 = w1.at[0, cl:cl + cg, :c].set(p["st1_w"])   # full-width input, global rows
        w1 = w1.at[1, :c, :c].set(p["fu_w"])
        w1 = w1.at[2, :4 * c4, :c].set(p["lfu_w"])
        w1 = w1.at[3, :c, cl:cl + cg].set(p["st2_w"])   # full-width output, global cols
        w1_l.append(w1)

        # output BN (local|global fused) and spectral BN (padded with zeros).
        bno_l.append(jnp.stack([jnp.concatenate([p["bnl_s"], p["bng_s"]]),
                                jnp.concatenate([p["bnl_b"], p["bng_b"]])])[:, None, :])

        def pad_c(v):
            return jnp.concatenate([v, jnp.zeros((C - c,), jnp.float32)])
        bns_l.append(jnp.stack([pad_c(p["st1_s"]), pad_c(p["st1_b"]),
                                pad_c(p["fu_s"]), pad_c(p["fu_b"]),
                                pad_c(p["lfu_s"]), pad_c(p["lfu_b"])])[:, None, :])

    return (jnp.stack(w3_l).astype(jnp.bfloat16),    # (2, 9*C, C)
            jnp.stack(w1_l).astype(jnp.bfloat16),    # (2, 4, C, C)
            jnp.stack(bno_l).astype(jnp.float32),    # (2, 2, 1, C)
            jnp.stack(bns_l).astype(jnp.float32))    # (2, 6, 1, C)


# -----------------------------------------------------------------------------
# Pure-JAX reference (mirrors the PyTorch math, NCHW in/out like the module).
# -----------------------------------------------------------------------------
def conv3x3_reflect_ref(x, w):
    xp = jnp.pad(x, ((0, 0), (1, 1), (1, 1), (0, 0)), mode="reflect")
    return lax.conv_general_dilated(xp.astype(jnp.bfloat16), w.astype(jnp.bfloat16),
                                    window_strides=(1, 1), padding="VALID",
                                    dimension_numbers=("NHWC", "HWIO", "NHWC"),
                                    preferred_element_type=jnp.float32)


def conv1x1_ref(x, w):
    return jnp.einsum("bhwi,io->bhwo", x.astype(jnp.bfloat16), w.astype(jnp.bfloat16),
                      preferred_element_type=jnp.float32)


def bn_relu_ref(x, scale, shift):
    return jnp.maximum(x * scale + shift, 0.0)


def spectral_transform_ref(xg, p):
    t = bn_relu_ref(conv1x1_ref(xg, p["st1_w"]), p["st1_s"], p["st1_b"])
    fu = bn_relu_ref(conv1x1_ref(t, p["fu_w"]), p["fu_s"], p["fu_b"])
    B, H, W, c = t.shape
    c4 = c // 4
    xs = jnp.concatenate([t[:, :H // 2, :W // 2, :c4], t[:, H // 2:, :W // 2, :c4],
                          t[:, :H // 2, W // 2:, :c4], t[:, H // 2:, W // 2:, :c4]], axis=-1)
    xs = bn_relu_ref(conv1x1_ref(xs, p["lfu_w"]), p["lfu_s"], p["lfu_b"])
    xs = jnp.tile(xs, (1, 2, 2, 1))
    return conv1x1_ref(t + fu + xs, p["st2_w"])


def ffc_bn_act_ref(x_l, x_g, p):
    cl2l = conv3x3_reflect_ref(x_l, p["wl2l"])
    cg2l = conv3x3_reflect_ref(x_g, p["wg2l"])
    cl2g = conv3x3_reflect_ref(x_l, p["wl2g"])
    cg2g = spectral_transform_ref(x_g, p)
    y_l = bn_relu_ref(cl2l + cg2l, p["bnl_s"], p["bnl_b"])
    y_g = bn_relu_ref(cl2g + cg2g, p["bng_s"], p["bng_b"])
    return y_l, y_g


def ffc_resnet_block_ref(x_nchw, params, cl, cg):
    x = jnp.transpose(x_nchw, (0, 2, 3, 1))
    x_l, x_g = x[..., :cl], x[..., cl:]
    id_l, id_g = x_l, x_g
    y_l, y_g = ffc_bn_act_ref(x_l, x_g, params["conv1"])
    y_l, y_g = ffc_bn_act_ref(y_l, y_g, params["conv2"])
    out = jnp.concatenate([id_l + y_l, id_g + y_g], axis=-1)
    return jnp.transpose(out, (0, 3, 1, 2))


# -----------------------------------------------------------------------------
if __name__ == "__main__":
    B, DIM, H, W = 2, 16, 16, 16
    RATIO = 0.5
    cg = int(DIM * RATIO)          # global channels = 8
    cl = DIM - cg                  # local channels = 8

    key = jax.random.PRNGKey(0)
    kx, kp1, kp2 = jax.random.split(key, 3)
    x_nchw = jax.random.normal(kx, (B, DIM, H, W), dtype=jnp.float32)   # PyTorch layout

    params = {"conv1": make_layer_params(kp1, cl, cg),
              "conv2": make_layer_params(kp2, cl, cg)}
    w3, w1, bno, bns = pack_params([params["conv1"], params["conv2"]], cl, cg)

    # Production keeps activations NHWC end-to-end; this one-time conversion from the
    # PyTorch NCHW convention is test-harness only (nothing wraps the pallas_call).
    x_nhwc = jnp.transpose(x_nchw, (0, 2, 3, 1))

    out_nhwc = ffc_resnet_block_pallas(x_nhwc, w3, w1, bno, bns, cl=cl, cg=cg)
    out_nhwc = jax.block_until_ready(out_nhwc)

    ref_nchw = jax.block_until_ready(ffc_resnet_block_ref(x_nchw, params, cl, cg))
    out_nchw = jnp.transpose(out_nhwc, (0, 3, 1, 2))

    assert out_nchw.shape == (B, DIM, H, W), out_nchw.shape
    max_err = float(jnp.max(jnp.abs(out_nchw - ref_nchw)))
    assert max_err < 2e-2, f"max_err={max_err}"
    print("KERNEL_OK")
</pallas_src>

<mosaic_0001>
module attributes {stable_mosaic.version = 11 : i64} {
  func.func @kernel(%arg0: i32, %arg1: memref<1x16x16x16xf32, #tpu.memory_space<vmem>>, %arg2: memref<2x144x16xbf16, #tpu.memory_space<vmem>>, %arg3: memref<2x4x16x16xbf16, #tpu.memory_space<vmem>>, %arg4: memref<2x2x1x16xf32, #tpu.memory_space<vmem>>, %arg5: memref<2x6x1x16xf32, #tpu.memory_space<vmem>>, %arg6: memref<1x16x16x16xf32, #tpu.memory_space<vmem>>) attributes {dimension_semantics = [#tpu.dimension_semantics<parallel>], iteration_bounds = array<i64: 2>, scalar_prefetch = 0 : i64, scratch_operands = 0 : i64, tpu.core_type = #tpu.core_type<tc>, window_params = [{transform_indices = @transform_0, window_bounds = array<i64: 1, 16, 16, 16>}, {pipeline_mode = #tpu.pipeline_mode<synchronous>, transform_indices = @transform_1, window_bounds = array<i64: 2, 144, 16>}, {pipeline_mode = #tpu.pipeline_mode<synchronous>, transform_indices = @transform_2, window_bounds = array<i64: 2, 4, 16, 16>}, {pipeline_mode = #tpu.pipeline_mode<synchronous>, transform_indices = @transform_3, window_bounds = array<i64: 2, 2, 1, 16>}, {pipeline_mode = #tpu.pipeline_mode<synchronous>, transform_indices = @transform_4, window_bounds = array<i64: 2, 6, 1, 16>}, {transform_indices = @transform_5, window_bounds = array<i64: 1, 16, 16, 16>}]} {
    %c0 = arith.constant 0 : index
    %c0_0 = arith.constant 0 : index
    %c0_1 = arith.constant 0 : index
    %c0_2 = arith.constant 0 : index
    %0 = vector.load %arg1[%c0, %c0_0, %c0_1, %c0_2] : memref<1x16x16x16xf32, #tpu.memory_space<vmem>>, vector<1x16x16x16xf32>
    %1 = vector.shape_cast %0 : vector<1x16x16x16xf32> to vector<256x16xf32>
    %2 = arith.truncf %1 : vector<256x16xf32> to vector<256x16xbf16>
    %c0_3 = arith.constant 0 : index
    %c0_4 = arith.constant 0 : index
    %c0_5 = arith.constant 0 : index
    %c0_6 = arith.constant 0 : index
    %3 = vector.load %arg3[%c0_3, %c0_4, %c0_5, %c0_6] : memref<2x4x16x16xbf16, #tpu.memory_space<vmem>>, vector<1x1x16x16xbf16>
    %4 = vector.shape_cast %3 : vector<1x1x16x16xbf16> to vector<16x16xbf16>
    %cst = arith.constant dense<0.000000e+00> : vector<256x16xf32>
    %5 = tpu.matmul %2, %4, %cst {dimension_numbers = #tpu.dot_dimension_numbers<[1], [0], [0], [1], [0, 0, 1, 1], [], []>} : vector<256x16xbf16>, vector<16x16xbf16>, vector<256x16xf32> -> vector<256x16xf32>
    %c0_7 = arith.constant 0 : index
    %c0_8 = arith.constant 0 : index
    %c0_9 = arith.constant 0 : index
    %c0_10 = arith.constant 0 : index
    %6 = vector.load %arg5[%c0_7, %c0_8, %c0_9, %c0_10] : memref<2x6x1x16xf32, #tpu.memory_space<vmem>>, vector<1x1x1x16xf32>
    %7 = vector.shape_cast %6 : vector<1x1x1x16xf32> to vector<1x16xf32>
    %8 = vector.broadcast %7 : vector<1x16xf32> to vector<256x16xf32>
    %9 = arith.mulf %5, %8 : vector<256x16xf32>
    %c0_11 = arith.constant 0 : index
    %c1 = arith.constant 1 : index
    %c0_12 = arith.constant 0 : index
    %c0_13 = arith.constant 0 : index
    %10 = vector.load %arg5[%c0_11, %c1, %c0_12, %c0_13] : memref<2x6x1x16xf32, #tpu.memory_space<vmem>>, vector<1x1x1x16xf32>
    %11 = vector.shape_cast %10 : vector<1x1x1x16xf32> to vector<1x16xf32>
    %12 = vector.broadcast %11 : vector<1x16xf32> to vector<256x16xf32>
    %13 = arith.addf %9, %12 : vector<256x16xf32>
    %cst_14 = arith.constant 0.000000e+00 : f32
    %14 = vector.broadcast %cst_14 : f32 to vector<256x16xf32>
    %15 = arith.maximumf %13, %14 : vector<256x16xf32>
    %16 = arith.truncf %15 : vector<256x16xf32> to vector<256x16xbf16>
    %c0_15 = arith.constant 0 : index
    %c1_16 = arith.constant 1 : index
    %c0_17 = arith.constant 0 : index
    %c0_18 = arith.constant 0 : index
    %17 = vector.load %arg3[%c0_15, %c1_16, %c0_17, %c0_18] : memref<2x4x16x16xbf16, #tpu.memory_space<vmem>>, vector<1x1x16x16xbf16>
    %18 = vector.shape_cast %17 : vector<1x1x16x16xbf16> to vector<16x16xbf16>
    %cst_19 = arith.constant dense<0.000000e+00> : vector<256x16xf32>
    %19 = tpu.matmul %16, %18, %cst_19 {dimension_numbers = #tpu.dot_dimension_numbers<[1], [0], [0], [1], [0, 0, 1, 1], [], []>} : vector<256x16xbf16>, vector<16x16xbf16>, vector<256x16xf32> -> vector<256x16xf32>
    %c0_20 = arith.constant 0 : index
    %c2 = arith.constant 2 : index
    %c0_21 = arith.constant 0 : index
    %c0_22 = arith.constant 0 : index
    %20 = vector.load %arg5[%c0_20, %c2, %c0_21, %c0_22] : memref<2x6x1x16xf32, #tpu.memory_space<vmem>>, vector<1x1x1x16xf32>
    %21 = vector.shape_cast %20 : vector<1x1x1x16xf32> to vector<1x16xf32>
    %22 = vector.broadcast %21 : vector<1x16xf32> to vector<256x16xf32>
    %23 = arith.mulf %19, %22 : vector<256x16xf32>
    %c0_23 = arith.constant 0 : index
    %c3 = arith.constant 3 : index
    %c0_24 = arith.constant 0 : index
    %c0_25 = arith.constant 0 : index
    %24 = vector.load %arg5[%c0_23, %c3, %c0_24, %c0_25] : memref<2x6x1x16xf32, #tpu.memory_space<vmem>>, vector<1x1x1x16xf32>
    %25 = vector.shape_cast %24 : vector<1x1x1x16xf32> to vector<1x16xf32>
    %26 = vector.broadcast %25 : vector<1x16xf32> to vector<256x16xf32>
    %27 = arith.addf %23, %26 : vector<256x16xf32>
    %cst_26 = arith.constant 0.000000e+00 : f32
    %28 = vector.broadcast %cst_26 : f32 to vector<256x16xf32>
    %29 = arith.maximumf %27, %28 : vector<256x16xf32>
    %30 = vector.shape_cast %15 : vector<256x16xf32> to vector<1x16x16x16xf32>
    %31 = vector.extract_strided_slice %30 {offsets = [0, 0, 0, 0], sizes = [1, 8, 8, 1], strides = [1, 1, 1, 1]} : vector<1x16x16x16xf32> to vector<1x8x8x1xf32>
    %32 = vector.extract_strided_slice %30 {offsets = [0, 8, 0, 0], sizes = [1, 8, 8, 1], strides = [1, 1, 1, 1]} : vector<1x16x16x16xf32> to vector<1x8x8x1xf32>
    %33 = vector.extract_strided_slice %30 {offsets = [0, 0, 8, 0], sizes = [1, 8, 8, 1], strides = [1, 1, 1, 1]} : vector<1x16x16x16xf32> to vector<1x8x8x1xf32>
    %34 = vector.extract_strided_slice %30 {offsets = [0, 8, 8, 0], sizes = [1, 8, 8, 1], strides = [1, 1, 1, 1]} : vector<1x16x16x16xf32> to vector<1x8x8x1xf32>
    %cst_27 = arith.constant 0.000000e+00 : f32
    %35 = vector.broadcast %cst_27 : f32 to vector<1x8x8x12xf32>
    %36 = tpu.concatenate %31, %32, %33, %34, %35 in 3 : vector<1x8x8x1xf32>, vector<1x8x8x1xf32>, vector<1x8x8x1xf32>, vector<1x8x8x1xf32>, vector<1x8x8x12xf32> -> vector<1x8x8x16xf32>
    %37 = arith.truncf %36 : vector<1x8x8x16xf32> to vector<1x8x8x16xbf16>
    %38 = vector.shape_cast %37 : vector<1x8x8x16xbf16> to vector<64x16xbf16>
    %c0_28 = arith.constant 0 : index
    %c2_29 = arith.constant 2 : index
    %c0_30 = arith.constant 0 : index
    %c0_31 = arith.constant 0 : index
    %39 = vector.load %arg3[%c0_28, %c2_29, %c0_30, %c0_31] : memref<2x4x16x16xbf16, #tpu.memory_space<vmem>>, vector<1x1x16x16xbf16>
    %40 = vector.shape_cast %39 : vector<1x1x16x16xbf16> to vector<16x16xbf16>
    %cst_32 = arith.constant dense<0.000000e+00> : vector<64x16xf32>
    %41 = tpu.matmul %38, %40, %cst_32 {dimension_numbers = #tpu.dot_dimension_numbers<[1], [0], [0], [1], [0, 0, 1, 1], [], []>} : vector<64x16xbf16>, vector<16x16xbf16>, vector<64x16xf32> -> vector<64x16xf32>
    %c0_33 = arith.constant 0 : index
    %c4 = arith.constant 4 : index
    %c0_34 = arith.constant 0 : index
    %c0_35 = arith.constant 0 : index
    %42 = vector.load %arg5[%c0_33, %c4, %c0_34, %c0_35] : memref<2x6x1x16xf32, #tpu.memory_space<vmem>>, vector<1x1x1x16xf32>
    %43 = vector.shape_cast %42 : vector<1x1x1x16xf32> to vector<1x16xf32>
    %44 = vector.broadcast %43 : vector<1x16xf32> to vector<64x16xf32>
    %45 = arith.mulf %41, %44 : vector<64x16xf32>
    %c0_36 = arith.constant 0 : index
    %c5 = arith.constant 5 : index
    %c0_37 = arith.constant 0 : index
    %c0_38 = arith.constant 0 : index
    %46 = vector.load %arg5[%c0_36, %c5, %c0_37, %c0_38] : memref<2x6x1x16xf32, #tpu.memory_space<vmem>>, vector<1x1x1x16xf32>
    %47 = vector.shape_cast %46 : vector<1x1x1x16xf32> to vector<1x16xf32>
    %48 = vector.broadcast %47 : vector<1x16xf32> to vector<64x16xf32>
    %49 = arith.addf %45, %48 : vector<64x16xf32>
    %cst_39 = arith.constant 0.000000e+00 : f32
    %50 = vector.broadcast %cst_39 : f32 to vector<64x16xf32>
    %51 = arith.maximumf %49, %50 : vector<64x16xf32>
    %52 = vector.shape_cast %51 : vector<64x16xf32> to vector<1x8x8x16xf32>
    %53 = tpu.concatenate %52, %52 in 2 : vector<1x8x8x16xf32>, vector<1x8x8x16xf32> -> vector<1x8x16x16xf32>
    %54 = tpu.concatenate %53, %53 in 1 : vector<1x8x16x16xf32>, vector<1x8x16x16xf32> -> vector<1x16x16x16xf32>
    %55 = arith.addf %15, %29 : vector<256x16xf32>
    %56 = vector.shape_cast %54 : vector<1x16x16x16xf32> to vector<256x16xf32>
    %57 = arith.addf %55, %56 : vector<256x16xf32>
    %58 = arith.truncf %57 : vector<256x16xf32> to vector<256x16xbf16>
    %c0_40 = arith.constant 0 : index
    %c3_41 = arith.constant 3 : index
    %c0_42 = arith.constant 0 : index
    %c0_43 = arith.constant 0 : index
    %59 = vector.load %arg3[%c0_40, %c3_41, %c0_42, %c0_43] : memref<2x4x16x16xbf16, #tpu.memory_space<vmem>>, vector<1x1x16x16xbf16>
    %60 = vector.shape_cast %59 : vector<1x1x16x16xbf16> to vector<16x16xbf16>
    %cst_44 = arith.constant dense<0.000000e+00> : vector<256x16xf32>
    %61 = tpu.matmul %58, %60, %cst_44 {dimension_numbers = #tpu.dot_dimension_numbers<[1], [0], [0], [1], [0, 0, 1, 1], [], []>} : vector<256x16xbf16>, vector<16x16xbf16>, vector<256x16xf32> -> vector<256x16xf32>
    %62 = vector.extract_strided_slice %0 {offsets = [0, 1, 0, 0], sizes = [1, 1, 16, 16], strides = [1, 1, 1, 1]} : vector<1x16x16x16xf32> to vector<1x1x16x16xf32>
    %63 = vector.extract_strided_slice %0 {offsets = [0, 14, 0, 0], sizes = [1, 1, 16, 16], strides = [1, 1, 1, 1]} : vector<1x16x16x16xf32> to vector<1x1x16x16xf32>
    %64 = tpu.concatenate %62, %0, %63 in 1 : vector<1x1x16x16xf32>, vector<1x16x16x16xf32>, vector<1x1x16x16xf32> -> vector<1x18x16x16xf32>
    %65 = vector.extract_strided_slice %64 {offsets = [0, 0, 1, 0], sizes = [1, 18, 1, 16], strides = [1, 1, 1, 1]} : vector<1x18x16x16xf32> to vector<1x18x1x16xf32>
    %66 = vector.extract_strided_slice %64 {offsets = [0, 0, 14, 0], sizes = [1, 18, 1, 16], strides = [1, 1, 1, 1]} : vector<1x18x16x16xf32> to vector<1x18x1x16xf32>
    %67 = tpu.concatenate %65, %64, %66 in 2 : vector<1x18x1x16xf32>, vector<1x18x16x16xf32>, vector<1x18x1x16xf32> -> vector<1x18x18x16xf32>
    %68 = arith.truncf %67 : vector<1x18x18x16xf32> to vector<1x18x18x16xbf16>
    %69 = vector.extract_strided_slice %68 {offsets = [0, 0, 0, 0], sizes = [1, 18, 16, 16], strides = [1, 1, 1, 1]} : vector<1x18x18x16xbf16> to vector<1x18x16x16xbf16>
    %70 = vector.extract_strided_slice %68 {offsets = [0, 0, 1, 0], sizes = [1, 18, 16, 16], strides = [1, 1, 1, 1]} : vector<1x18x18x16xbf16> to vector<1x18x16x16xbf16>
    %71 = vector.extract_strided_slice %68 {offsets = [0, 0, 2, 0], sizes = [1, 18, 16, 16], strides = [1, 1, 1, 1]} : vector<1x18x18x16xbf16> to vector<1x18x16x16xbf16>
    %72 = tpu.concatenate %69, %70, %71 in 3 : vector<1x18x16x16xbf16>, vector<1x18x16x16xbf16>, vector<1x18x16x16xbf16> -> vector<1x18x16x48xbf16>
    %73 = vector.extract_strided_slice %72 {offsets = [0, 0, 0, 0], sizes = [1, 16, 16, 48], strides = [1, 1, 1, 1]} : vector<1x18x16x48xbf16> to vector<1x16x16x48xbf16>
    %74 = vector.extract_strided_slice %72 {offsets = [0, 1, 0, 0], sizes = [1, 16, 16, 48], strides = [1, 1, 1, 1]} : vector<1x18x16x48xbf16> to vector<1x16x16x48xbf16>
    %75 = vector.extract_strided_slice %72 {offsets = [0, 2, 0, 0], sizes = [1, 16, 16, 48], strides = [1, 1, 1, 1]} : vector<1x18x16x48xbf16> to vector<1x16x16x48xbf16>
    %76 = tpu.concatenate %73, %74, %75 in 3 : vector<1x16x16x48xbf16>, vector<1x16x16x48xbf16>, vector<1x16x16x48xbf16> -> vector<1x16x16x144xbf16>
    %77 = vector.shape_cast %76 : vector<1x16x16x144xbf16> to vector<256x144xbf16>
    %c0_45 = arith.constant 0 : index
    %c0_46 = arith.constant 0 : index
    %c0_47 = arith.constant 0 : index
    %78 = vector.load %arg2[%c0_45, %c0_46, %c0_47] : memref<2x144x16xbf16, #tpu.memory_space<vmem>>, vector<1x144x16xbf16>
    %79 = vector.shape_cast %78 : vector<1x144x16xbf16> to vector<144x16xbf16>
    %cst_48 = arith.constant dense<0.000000e+00> : vector<256x16xf32>
    %80 = tpu.matmul %77, %79, %cst_48 {dimension_numbers = #tpu.dot_dimension_numbers<[1], [0], [0], [1], [0, 0, 1, 1], [], []>} : vector<256x144xbf16>, vector<144x16xbf16>, vector<256x16xf32> -> vector<256x16xf32>
    %81 = arith.addf %80, %61 : vector<256x16xf32>
    %c0_49 = arith.constant 0 : index
    %c0_50 = arith.constant 0 : index
    %c0_51 = arith.constant 0 : index
    %c0_52 = arith.constant 0 : index
    %82 = vector.load %arg4[%c0_49, %c0_50, %c0_51, %c0_52] : memref<2x2x1x16xf32, #tpu.memory_space<vmem>>, vector<1x1x1x16xf32>
    %83 = vector.shape_cast %82 : vector<1x1x1x16xf32> to vector<1x16xf32>
    %84 = vector.broadcast %83 : vector<1x16xf32> to vector<256x16xf32>
    %85 = arith.mulf %81, %84 : vector<256x16xf32>
    %c0_53 = arith.constant 0 : index
    %c1_54 = arith.constant 1 : index
    %c0_55 = arith.constant 0 : index
    %c0_56 = arith.constant 0 : index
    %86 = vector.load %arg4[%c0_53, %c1_54, %c0_55, %c0_56] : memref<2x2x1x16xf32, #tpu.memory_space<vmem>>, vector<1x1x1x16xf32>
    %87 = vector.shape_cast %86 : vector<1x1x1x16xf32> to vector<1x16xf32>
    %88 = vector.broadcast %87 : vector<1x16xf32> to vector<256x16xf32>
    %89 = arith.addf %85, %88 : vector<256x16xf32>
    %cst_57 = arith.constant 0.000000e+00 : f32
    %90 = vector.broadcast %cst_57 : f32 to vector<256x16xf32>
    %91 = arith.maximumf %89, %90 : vector<256x16xf32>
    %92 = vector.shape_cast %91 : vector<256x16xf32> to vector<1x16x16x16xf32>
    %93 = vector.shape_cast %92 : vector<1x16x16x16xf32> to vector<256x16xf32>
    %94 = arith.truncf %93 : vector<256x16xf32> to vector<256x16xbf16>
    %c1_58 = arith.constant 1 : index
    %c0_59 = arith.constant 0 : index
    %c0_60 = arith.constant 0 : index
    %c0_61 = arith.constant 0 : index
    %95 = vector.load %arg3[%c1_58, %c0_59, %c0_60, %c0_61] : memref<2x4x16x16xbf16, #tpu.memory_space<vmem>>, vector<1x1x16x16xbf16>
    %96 = vector.shape_cast %95 : vector<1x1x16x16xbf16> to vector<16x16xbf16>
    %cst_62 = arith.constant dense<0.000000e+00> : vector<256x16xf32>
    %97 = tpu.matmul %94, %96, %cst_62 {dimension_numbers = #tpu.dot_dimension_numbers<[1], [0], [0], [1], [0, 0, 1, 1], [], []>} : vector<256x16xbf16>, vector<16x16xbf16>, vector<256x16xf32> -> vector<256x16xf32>
    %c1_63 = arith.constant 1 : index
    %c0_64 = arith.constant 0 : index
    %c0_65 = arith.constant 0 : index
    %c0_66 = arith.constant 0 : index
    %98 = vector.load %arg5[%c1_63, %c0_64, %c0_65, %c0_66] : memref<2x6x1x16xf32, #tpu.memory_space<vmem>>, vector<1x1x1x16xf32>
    %99 = vector.shape_cast %98 : vector<1x1x1x16xf32> to vector<1x16xf32>
    %100 = vector.broadcast %99 : vector<1x16xf32> to vector<256x16xf32>
    %101 = arith.mulf %97, %100 : vector<256x16xf32>
    %c1_67 = arith.constant 1 : index
    %c1_68 = arith.constant 1 : index
    %c0_69 = arith.constant 0 : index
    %c0_70 = arith.constant 0 : index
    %102 = vector.load %arg5[%c1_67, %c1_68, %c0_69, %c0_70] : memref<2x6x1x16xf32, #tpu.memory_space<vmem>>, vector<1x1x1x16xf32>
    %103 = vector.shape_cast %102 : vector<1x1x1x16xf32> to vector<1x16xf32>
    %104 = vector.broadcast %103 : vector<1x16xf32> to vector<256x16xf32>
    %105 = arith.addf %101, %104 : vector<256x16xf32>
    %cst_71 = arith.constant 0.000000e+00 : f32
    %106 = vector.broadcast %cst_71 : f32 to vector<256x16xf32>
    %107 = arith.maximumf %105, %106 : vector<256x16xf32>
    %108 = arith.truncf %107 : vector<256x16xf32> to vector<256x16xbf16>
    %c1_72 = arith.constant 1 : index
    %c1_73 = arith.constant 1 : index
    %c0_74 = arith.constant 0 : index
    %c0_75 = arith.constant 0 : index
    %109 = vector.load %arg3[%c1_72, %c1_73, %c0_74, %c0_75] : memref<2x4x16x16xbf16, #tpu.memory_space<vmem>>, vector<1x1x16x16xbf16>
    %110 = vector.shape_cast %109 : vector<1x1x16x16xbf16> to vector<16x16xbf16>
    %cst_76 = arith.constant dense<0.000000e+00> : vector<256x16xf32>
    %111 = tpu.matmul %108, %110, %cst_76 {dimension_numbers = #tpu.dot_dimension_numbers<[1], [0], [0], [1], [0, 0, 1, 1], [], []>} : vector<256x16xbf16>, vector<16x16xbf16>, vector<256x16xf32> -> vector<256x16xf32>
    %c1_77 = arith.constant 1 : index
    %c2_78 = arith.constant 2 : index
    %c0_79 = arith.constant 0 : index
    %c0_80 = arith.constant 0 : index
    %112 = vector.load %arg5[%c1_77, %c2_78, %c0_79, %c0_80] : memref<2x6x1x16xf32, #tpu.memory_space<vmem>>, vector<1x1x1x16xf32>
    %113 = vector.shape_cast %112 : vector<1x1x1x16xf32> to vector<1x16xf32>
    %114 = vector.broadcast %113 : vector<1x16xf32> to vector<256x16xf32>
    %115 = arith.mulf %111, %114 : vector<256x16xf32>
    %c1_81 = arith.constant 1 : index
    %c3_82 = arith.constant 3 : index
    %c0_83 = arith.constant 0 : index
    %c0_84 = arith.constant 0 : index
    %116 = vector.load %arg5[%c1_81, %c3_82, %c0_83, %c0_84] : memref<2x6x1x16xf32, #tpu.memory_space<vmem>>, vector<1x1x1x16xf32>
    %117 = vector.shape_cast %116 : vector<1x1x1x16xf32> to vector<1x16xf32>
    %118 = vector.broadcast %117 : vector<1x16xf32> to vector<256x16xf32>
    %119 = arith.addf %115, %118 : vector<256x16xf32>
    %cst_85 = arith.constant 0.000000e+00 : f32
    %120 = vector.broadcast %cst_85 : f32 to vector<256x16xf32>
    %121 = arith.maximumf %119, %120 : vector<256x16xf32>
    %122 = vector.shape_cast %107 : vector<256x16xf32> to vector<1x16x16x16xf32>
    %123 = vector.extract_strided_slice %122 {offsets = [0, 0, 0, 0], sizes = [1, 8, 8, 1], strides = [1, 1, 1, 1]} : vector<1x16x16x16xf32> to vector<1x8x8x1xf32>
    %124 = vector.extract_strided_slice %122 {offsets = [0, 8, 0, 0], sizes = [1, 8, 8, 1], strides = [1, 1, 1, 1]} : vector<1x16x16x16xf32> to vector<1x8x8x1xf32>
    %125 = vector.extract_strided_slice %122 {offsets = [0, 0, 8, 0], sizes = [1, 8, 8, 1], strides = [1, 1, 1, 1]} : vector<1x16x16x16xf32> to vector<1x8x8x1xf32>
    %126 = vector.extract_strided_slice %122 {offsets = [0, 8, 8, 0], sizes = [1, 8, 8, 1], strides = [1, 1, 1, 1]} : vector<1x16x16x16xf32> to vector<1x8x8x1xf32>
    %cst_86 = arith.constant 0.000000e+00 : f32
    %127 = vector.broadcast %cst_86 : f32 to vector<1x8x8x12xf32>
    %128 = tpu.concatenate %123, %124, %125, %126, %127 in 3 : vector<1x8x8x1xf32>, vector<1x8x8x1xf32>, vector<1x8x8x1xf32>, vector<1x8x8x1xf32>, vector<1x8x8x12xf32> -> vector<1x8x8x16xf32>
    %129 = arith.truncf %128 : vector<1x8x8x16xf32> to vector<1x8x8x16xbf16>
    %130 = vector.shape_cast %129 : vector<1x8x8x16xbf16> to vector<64x16xbf16>
    %c1_87 = arith.constant 1 : index
    %c2_88 = arith.constant 2 : index
    %c0_89 = arith.constant 0 : index
    %c0_90 = arith.constant 0 : index
    %131 = vector.load %arg3[%c1_87, %c2_88, %c0_89, %c0_90] : memref<2x4x16x16xbf16, #tpu.memory_space<vmem>>, vector<1x1x16x16xbf16>
    %132 = vector.shape_cast %131 : vector<1x1x16x16xbf16> to vector<16x16xbf16>
    %cst_91 = arith.constant dense<0.000000e+00> : vector<64x16xf32>
    %133 = tpu.matmul %130, %132, %cst_91 {dimension_numbers = #tpu.dot_dimension_numbers<[1], [0], [0], [1], [0, 0, 1, 1], [], []>} : vector<64x16xbf16>, vector<16x16xbf16>, vector<64x16xf32> -> vector<64x16xf32>
    %c1_92 = arith.constant 1 : index
    %c4_93 = arith.constant 4 : index
    %c0_94 = arith.constant 0 : index
    %c0_95 = arith.constant 0 : index
    %134 = vector.load %arg5[%c1_92, %c4_93, %c0_94, %c0_95] : memref<2x6x1x16xf32, #tpu.memory_space<vmem>>, vector<1x1x1x16xf32>
    %135 = vector.shape_cast %134 : vector<1x1x1x16xf32> to vector<1x16xf32>
    %136 = vector.broadcast %135 : vector<1x16xf32> to vector<64x16xf32>
    %137 = arith.mulf %133, %136 : vector<64x16xf32>
    %c1_96 = arith.constant 1 : index
    %c5_97 = arith.constant 5 : index
    %c0_98 = arith.constant 0 : index
    %c0_99 = arith.constant 0 : index
    %138 = vector.load %arg5[%c1_96, %c5_97, %c0_98, %c0_99] : memref<2x6x1x16xf32, #tpu.memory_space<vmem>>, vector<1x1x1x16xf32>
    %139 = vector.shape_cast %138 : vector<1x1x1x16xf32> to vector<1x16xf32>
    %140 = vector.broadcast %139 : vector<1x16xf32> to vector<64x16xf32>
    %141 = arith.addf %137, %140 : vector<64x16xf32>
    %cst_100 = arith.constant 0.000000e+00 : f32
    %142 = vector.broadcast %cst_100 : f32 to vector<64x16xf32>
    %143 = arith.maximumf %141, %142 : vector<64x16xf32>
    %144 = vector.shape_cast %143 : vector<64x16xf32> to vector<1x8x8x16xf32>
    %145 = tpu.concatenate %144, %144 in 2 : vector<1x8x8x16xf32>, vector<1x8x8x16xf32> -> vector<1x8x16x16xf32>
    %146 = tpu.concatenate %145, %145 in 1 : vector<1x8x16x16xf32>, vector<1x8x16x16xf32> -> vector<1x16x16x16xf32>
    %147 = arith.addf %107, %121 : vector<256x16xf32>
    %148 = vector.shape_cast %146 : vector<1x16x16x16xf32> to vector<256x16xf32>
    %149 = arith.addf %147, %148 : vector<256x16xf32>
    %150 = arith.truncf %149 : vector<256x16xf32> to vector<256x16xbf16>
    %c1_101 = arith.constant 1 : index
    %c3_102 = arith.constant 3 : index
    %c0_103 = arith.constant 0 : index
    %c0_104 = arith.constant 0 : index
    %151 = vector.load %arg3[%c1_101, %c3_102, %c0_103, %c0_104] : memref<2x4x16x16xbf16, #tpu.memory_space<vmem>>, vector<1x1x16x16xbf16>
    %152 = vector.shape_cast %151 : vector<1x1x16x16xbf16> to vector<16x16xbf16>
    %cst_105 = arith.constant dense<0.000000e+00> : vector<256x16xf32>
    %153 = tpu.matmul %150, %152, %cst_105 {dimension_numbers = #tpu.dot_dimension_numbers<[1], [0], [0], [1], [0, 0, 1, 1], [], []>} : vector<256x16xbf16>, vector<16x16xbf16>, vector<256x16xf32> -> vector<256x16xf32>
    %154 = vector.extract_strided_slice %92 {offsets = [0, 1, 0, 0], sizes = [1, 1, 16, 16], strides = [1, 1, 1, 1]} : vector<1x16x16x16xf32> to vector<1x1x16x16xf32>
    %155 = vector.extract_strided_slice %92 {offsets = [0, 14, 0, 0], sizes = [1, 1, 16, 16], strides = [1, 1, 1, 1]} : vector<1x16x16x16xf32> to vector<1x1x16x16xf32>
    %156 = tpu.concatenate %154, %92, %155 in 1 : vector<1x1x16x16xf32>, vector<1x16x16x16xf32>, vector<1x1x16x16xf32> -> vector<1x18x16x16xf32>
    %157 = vector.extract_strided_slice %156 {offsets = [0, 0, 1, 0], sizes = [1, 18, 1, 16], strides = [1, 1, 1, 1]} : vector<1x18x16x16xf32> to vector<1x18x1x16xf32>
    %158 = vector.extract_strided_slice %156 {offsets = [0, 0, 14, 0], sizes = [1, 18, 1, 16], strides = [1, 1, 1, 1]} : vector<1x18x16x16xf32> to vector<1x18x1x16xf32>
    %159 = tpu.concatenate %157, %156, %158 in 2 : vector<1x18x1x16xf32>, vector<1x18x16x16xf32>, vector<1x18x1x16xf32> -> vector<1x18x18x16xf32>
    %160 = arith.truncf %159 : vector<1x18x18x16xf32> to vector<1x18x18x16xbf16>
    %161 = vector.extract_strided_slice %160 {offsets = [0, 0, 0, 0], sizes = [1, 18, 16, 16], strides = [1, 1, 1, 1]} : vector<1x18x18x16xbf16> to vector<1x18x16x16xbf16>
    %162 = vector.extract_strided_slice %160 {offsets = [0, 0, 1, 0], sizes = [1, 18, 16, 16], strides = [1, 1, 1, 1]} : vector<1x18x18x16xbf16> to vector<1x18x16x16xbf16>
    %163 = vector.extract_strided_slice %160 {offsets = [0, 0, 2, 0], sizes = [1, 18, 16, 16], strides = [1, 1, 1, 1]} : vector<1x18x18x16xbf16> to vector<1x18x16x16xbf16>
    %164 = tpu.concatenate %161, %162, %163 in 3 : vector<1x18x16x16xbf16>, vector<1x18x16x16xbf16>, vector<1x18x16x16xbf16> -> vector<1x18x16x48xbf16>
    %165 = vector.extract_strided_slice %164 {offsets = [0, 0, 0, 0], sizes = [1, 16, 16, 48], strides = [1, 1, 1, 1]} : vector<1x18x16x48xbf16> to vector<1x16x16x48xbf16>
    %166 = vector.extract_strided_slice %164 {offsets = [0, 1, 0, 0], sizes = [1, 16, 16, 48], strides = [1, 1, 1, 1]} : vector<1x18x16x48xbf16> to vector<1x16x16x48xbf16>
    %167 = vector.extract_strided_slice %164 {offsets = [0, 2, 0, 0], sizes = [1, 16, 16, 48], strides = [1, 1, 1, 1]} : vector<1x18x16x48xbf16> to vector<1x16x16x48xbf16>
    %168 = tpu.concatenate %165, %166, %167 in 3 : vector<1x16x16x48xbf16>, vector<1x16x16x48xbf16>, vector<1x16x16x48xbf16> -> vector<1x16x16x144xbf16>
    %169 = vector.shape_cast %168 : vector<1x16x16x144xbf16> to vector<256x144xbf16>
    %c1_106 = arith.constant 1 : index
    %c0_107 = arith.constant 0 : index
    %c0_108 = arith.constant 0 : index
    %170 = vector.load %arg2[%c1_106, %c0_107, %c0_108] : memref<2x144x16xbf16, #tpu.memory_space<vmem>>, vector<1x144x16xbf16>
    %171 = vector.shape_cast %170 : vector<1x144x16xbf16> to vector<144x16xbf16>
    %cst_109 = arith.constant dense<0.000000e+00> : vector<256x16xf32>
    %172 = tpu.matmul %169, %171, %cst_109 {dimension_numbers = #tpu.dot_dimension_numbers<[1], [0], [0], [1], [0, 0, 1, 1], [], []>} : vector<256x144xbf16>, vector<144x16xbf16>, vector<256x16xf32> -> vector<256x16xf32>
    %173 = arith.addf %172, %153 : vector<256x16xf32>
    %c1_110 = arith.constant 1 : index
    %c0_111 = arith.constant 0 : index
    %c0_112 = arith.constant 0 : index
    %c0_113 = arith.constant 0 : index
    %174 = vector.load %arg4[%c1_110, %c0_111, %c0_112, %c0_113] : memref<2x2x1x16xf32, #tpu.memory_space<vmem>>, vector<1x1x1x16xf32>
    %175 = vector.shape_cast %174 : vector<1x1x1x16xf32> to vector<1x16xf32>
    %176 = vector.broadcast %175 : vector<1x16xf32> to vector<256x16xf32>
    %177 = arith.mulf %173, %176 : vector<256x16xf32>
    %c1_114 = arith.constant 1 : index
    %c1_115 = arith.constant 1 : index
    %c0_116 = arith.constant 0 : index
    %c0_117 = arith.constant 0 : index
    %178 = vector.load %arg4[%c1_114, %c1_115, %c0_116, %c0_117] : memref<2x2x1x16xf32, #tpu.memory_space<vmem>>, vector<1x1x1x16xf32>
    %179 = vector.shape_cast %178 : vector<1x1x1x16xf32> to vector<1x16xf32>
    %180 = vector.broadcast %179 : vector<1x16xf32> to vector<256x16xf32>
    %181 = arith.addf %177, %180 : vector<256x16xf32>
    %cst_118 = arith.constant 0.000000e+00 : f32
    %182 = vector.broadcast %cst_118 : f32 to vector<256x16xf32>
    %183 = arith.maximumf %181, %182 : vector<256x16xf32>
    %184 = vector.shape_cast %0 : vector<1x16x16x16xf32> to vector<256x16xf32>
    %185 = arith.addf %183, %184 : vector<256x16xf32>
    %186 = vector.shape_cast %185 : vector<256x16xf32> to vector<1x16x16x16xf32>
    %c0_119 = arith.constant 0 : index
    %c0_120 = arith.constant 0 : index
    %c0_121 = arith.constant 0 : index
    %c0_122 = arith.constant 0 : index
    %187 = vector.load %arg6[%c0_119, %c0_120, %c0_121, %c0_122] : memref<1x16x16x16xf32, #tpu.memory_space<vmem>>, vector<1x16x16x16xf32>
    tpu.vector_store %arg6[%c0_119, %c0_120, %c0_121, %c0_122], %186 {strides = array<i32>} : memref<1x16x16x16xf32, #tpu.memory_space<vmem>>, vector<1x16x16x16xf32>,
    return
  }
  func.func @transform_0(%arg0: i32) -> (i32, i32, i32, i32) {
    %c0_i32 = arith.constant 0 : i32
    %c0_i32_0 = arith.constant 0 : i32
    %c0_i32_1 = arith.constant 0 : i32
    %c0_i32_2 = arith.constant 0 : i32
    return %arg0, %c0_i32, %c0_i32_0, %c0_i32_1 : i32, i32, i32, i32
  }
  func.func @transform_1(%arg0: i32) -> (i32, i32, i32) {
    %c0_i32 = arith.constant 0 : i32
    %c0_i32_0 = arith.constant 0 : i32
    %c0_i32_1 = arith.constant 0 : i32
    %c0_i32_2 = arith.constant 0 : i32
    return %c0_i32, %c0_i32_0, %c0_i32_1 : i32, i32, i32
  }
  func.func @transform_2(%arg0: i32) -> (i32, i32, i32, i32) {
    %c0_i32 = arith.constant 0 : i32
    %c0_i32_0 = arith.constant 0 : i32
    %c0_i32_1 = arith.constant 0 : i32
    %c0_i32_2 = arith.constant 0 : i32
    %c0_i32_3 = arith.constant 0 : i32
    return %c0_i32, %c0_i32_0, %c0_i32_1, %c0_i32_2 : i32, i32, i32, i32
  }
  func.func @transform_3(%arg0: i32) -> (i32, i32, i32, i32) {
    %c0_i32 = arith.constant 0 : i32
    %c0_i32_0 = arith.constant 0 : i32
    %c0_i32_1 = arith.constant 0 : i32
    %c0_i32_2 = arith.constant 0 : i32
    %c0_i32_3 = arith.constant 0 : i32
    return %c0_i32, %c0_i32_0, %c0_i32_1, %c0_i32_2 : i32, i32, i32, i32
  }
  func.func @transform_4(%arg0: i32) -> (i32, i32, i32, i32) {
    %c0_i32 = arith.constant 0 : i32
    %c0_i32_0 = arith.constant 0 : i32
    %c0_i32_1 = arith.constant 0 : i32
    %c0_i32_2 = arith.constant 0 : i32
    %c0_i32_3 = arith.constant 0 : i32
    return %c0_i32, %c0_i32_0, %c0_i32_1, %c0_i32_2 : i32, i32, i32, i32
  }
  func.func @transform_5(%arg0: i32) -> (i32, i32, i32, i32) {
    %c0_i32 = arith.constant 0 : i32
    %c0_i32_0 = arith.constant 0 : i32
    %c0_i32_1 = arith.constant 0 : i32
    %c0_i32_2 = arith.constant 0 : i32
    return %arg0, %c0_i32, %c0_i32_0, %c0_i32_1 : i32, i32, i32, i32
  }
}

</mosaic_0001>

<llo_original>
// kernel: _ffc_resnet_block_impl.1
$region0: #{_ffc_resnet_block_impl.1}
  #allocation0 [shape = 'u32[]', space=smem, size = 0x4, offset = 0x4, fixed_abs, tag = 'smem constant byte address 0x4 - core index']
  #allocation1 [shape = 'u32[144,128]{1,0:T(1,128)}', space=vmem, size = 0x12000, scoped, tag = 'internal scratch']
  %s0 = inlined_call_operand.hbm [shape: f32[2,16,16,16], index: 0, kind: input, shape index: {}]
  %s1 = inlined_call_operand.vmem [shape: bf16[2,144,16], index: 1, kind: input, shape index: {}]
  %s2 = inlined_call_operand.vmem [shape: bf16[2,4,16,16], index: 2, kind: input, shape index: {}]
  %s3 = inlined_call_operand.vmem [shape: f32[2,2,1,16], index: 3, kind: input, shape index: {}]
  %s4 = inlined_call_operand.vmem [shape: f32[2,6,1,16], index: 4, kind: input, shape index: {}]
  %s5 = inlined_call_operand.hbm [shape: f32[2,16,16,16], index: 5, kind: output, shape index: {}]
  %s6 = sld [smem:[#allocation0]]
  $region57: #{_ffc_resnet_block_impl.1} parent=0
    _
  %s8 = ssub.s32 1, %s6
  %s9 = scalar_select 0, %s8, %s6
  $region1: #{_ffc_resnet_block_impl.1} parent=0
    #allocation2 [shape = 'u8[262144]{0}', space=vmem, size = 0x40000, scoped, tag = 'input window, operand 0']
    #allocation3 [shape = 's32[2]{0}', space=sflag, size = 0x8, scoped, tag = 'scoped memory for _ffc_resnet_block_impl.1']
    #allocation4 [shape = 's32[2]{0}', space=sflag, size = 0x8, scoped, tag = 'scoped memory for _ffc_resnet_block_impl.1']
    #allocation5 [shape = 'u8[262144]{0}', space=vmem, size = 0x40000, scoped, tag = 'output window, operand 0']
    %10 = vsyncpa [#allocation3], 0
    %s11 = scalar_lea.sflag [#allocation3], 1
    %12 = vsyncpa %s11, 0
    %13 = vsyncpa [#allocation4], 0
    %s14 = scalar_lea.sflag [#allocation4], 1
    %15 = vsyncpa %s14, 0
    loop: start=0, step=1, limit=4
    $region2: #{_ffc_resnet_block_impl.1} parent=1 // loop_pre_header
      _
    $region3: #{_ffc_resnet_block_impl.1} parent=1 // loop_header
      %s17 = sphi 0, %s21
      %p18 = scmp.ge.s32.totalorder %s17, 4
      %s27 = sphi 0, %s29
      %s30 = sphi 0, %s27
      %s31 = sphi 0, %s30
      %s47 = sphi 0, %s31
      %s51 = sphi 0, %s51
      %s53 = sphi 0, %s51
      %s54 = sphi 0, %s53
      %s68 = sphi 0, %s54
      %s72 = sphi 0, %s72
      %s74 = sphi 0, %s72
      %s75 = sphi 0, %s74
      %s89 = sphi 0, %s75
      %s93 = sphi 0, %s93
      %s95 = sphi 0, %s93
      %s96 = sphi 0, %s95
      %s110 = sphi 0, %s96
      %s114 = sphi 0, %s114
      %s116 = sphi 0, %s114
      %s117 = sphi 0, %s116
      %s131 = sphi 0, %s117
      %s137 = sphi 0, %s139
      %s140 = sphi 0, %s137
      %s141 = sphi 0, %s140
      %s157 = sphi 0, %s141
    $region4: #{_ffc_resnet_block_impl.1} parent=1 // loop_header_branch
      %20 = sbr.rel (%p18) target = $region8
    $region5: #{_ffc_resnet_block_impl.1} parent=1 // loop_body
      %s22 = ssub.s32 %s17, 1
      %s23 = ssub.s32 %s17, 2
      %s24 = sadd.s32 %s17, 1
      %s25 = ssub.s32 %s17, %s24
      %p26 = scmp.eq.s32.totalorder %s25, 0
      %s28 = sadd.s32 %s27, 1
      %s29 = scalar_select %p26, %s27, %s28
      %p32 = pneg %p26
      %p33 = scmp.eq.s32.totalorder %s17, 1
      %p34 = por %p32, %p33
      %p35 = scmp.ne.s32.totalorder %s27, %s30
      %p36 = scmp.eq.s32.totalorder %s17, 0
      %p37 = por %p35, %p36
      %p38 = scmp.ne.s32.totalorder %s27, %s30
      %p39 = scmp.eq.s32.totalorder %s22, 1
      %p40 = por %p38, %p39
      %p41 = scmp.ne.s32.totalorder %s30, %s31
      %p42 = scmp.eq.s32.totalorder %s22, 0
      %p43 = por %p41, %p42
      %p44 = scmp.ne.s32.totalorder %s30, %s31
      %p45 = scmp.eq.s32.totalorder %s23, 1
      %p46 = por %p44, %p45
      %p48 = scmp.ne.s32.totalorder %s31, %s47
      %p49 = scmp.eq.s32.totalorder %s23, 0
      %p50 = por %p48, %p49
      %s52 = sadd.s32 %s51, 1
      %p55 = scmp.eq.s32.totalorder %s17, 1
      %p56 = scmp.ne.s32.totalorder %s51, %s53
      %p57 = scmp.eq.s32.totalorder %s17, 0
      %p58 = por %p56, %p57
      %p59 = scmp.ne.s32.totalorder %s51, %s53
      %p60 = scmp.eq.s32.totalorder %s22, 1
      %p61 = por %p59, %p60
      %p62 = scmp.ne.s32.totalorder %s53, %s54
      %p63 = scmp.eq.s32.totalorder %s22, 0
      %p64 = por %p62, %p63
      %p65 = scmp.ne.s32.totalorder %s53, %s54
      %p66 = scmp.eq.s32.totalorder %s23, 1
      %p67 = por %p65, %p66
      %p69 = scmp.ne.s32.totalorder %s54, %s68
      %p70 = scmp.eq.s32.totalorder %s23, 0
      %p71 = por %p69, %p70
      %s73 = sadd.s32 %s72, 1
      %p76 = scmp.eq.s32.totalorder %s17, 1
      %p77 = scmp.ne.s32.totalorder %s72, %s74
      %p78 = scmp.eq.s32.totalorder %s17, 0
      %p79 = por %p77, %p78
      %p80 = scmp.ne.s32.totalorder %s72, %s74
      %p81 = scmp.eq.s32.totalorder %s22, 1
      %p82 = por %p80, %p81
      %p83 = scmp.ne.s32.totalorder %s74, %s75
      %p84 = scmp.eq.s32.totalorder %s22, 0
      %p85 = por %p83, %p84
      %p86 = scmp.ne.s32.totalorder %s74, %s75
      %p87 = scmp.eq.s32.totalorder %s23, 1
      %p88 = por %p86, %p87
      %p90 = scmp.ne.s32.totalorder %s75, %s89
      %p91 = scmp.eq.s32.totalorder %s23, 0
      %p92 = por %p90, %p91
      %s94 = sadd.s32 %s93, 1
      %p97 = scmp.eq.s32.totalorder %s17, 1
      %p98 = scmp.ne.s32.totalorder %s93, %s95
      %p99 = scmp.eq.s32.totalorder %s17, 0
      %p100 = por %p98, %p99
      %p101 = scmp.ne.s32.totalorder %s93, %s95
      %p102 = scmp.eq.s32.totalorder %s22, 1
      %p103 = por %p101, %p102
      %p104 = scmp.ne.s32.totalorder %s95, %s96
      %p105 = scmp.eq.s32.totalorder %s22, 0
      %p106 = por %p104, %p105
      %p107 = scmp.ne.s32.totalorder %s95, %s96
      %p108 = scmp.eq.s32.totalorder %s23, 1
      %p109 = por %p107, %p108
      %p111 = scmp.ne.s32.totalorder %s96, %s110
      %p112 = scmp.eq.s32.totalorder %s23, 0
      %p113 = por %p111, %p112
      %s115 = sadd.s32 %s114, 1
      %p118 = scmp.eq.s32.totalorder %s17, 1
      %p119 = scmp.ne.s32.totalorder %s114, %s116
      %p120 = scmp.eq.s32.totalorder %s17, 0
      %p121 = por %p119, %p120
      %p122 = scmp.ne.s32.totalorder %s114, %s116
      %p123 = scmp.eq.s32.totalorder %s22, 1
      %p124 = por %p122, %p123
      %p125 = scmp.ne.s32.totalorder %s116, %s117
      %p126 = scmp.eq.s32.totalorder %s22, 0
      %p127 = por %p125, %p126
      %p128 = scmp.ne.s32.totalorder %s116, %s117
      %p129 = scmp.eq.s32.totalorder %s23, 1
      %p130 = por %p128, %p129
      %p132 = scmp.ne.s32.totalorder %s117, %s131
      %p133 = scmp.eq.s32.totalorder %s23, 0
      %p134 = por %p132, %p133
      %s135 = ssub.s32 %s17, %s24
      %p136 = scmp.eq.s32.totalorder %s135, 0
      %s138 = sadd.s32 %s137, 1
      %s139 = scalar_select %p136, %s137, %s138
      %p142 = pneg %p136
      %p143 = scmp.eq.s32.totalorder %s17, 1
      %p144 = por %p142, %p143
      %p145 = scmp.ne.s32.totalorder %s137, %s140
      %p146 = scmp.eq.s32.totalorder %s17, 0
      %p147 = por %p145, %p146
      %p148 = scmp.ne.s32.totalorder %s137, %s140
      %p149 = scmp.eq.s32.totalorder %s22, 1
      %p150 = por %p148, %p149
      %p151 = scmp.ne.s32.totalorder %s140, %s141
      %p152 = scmp.eq.s32.totalorder %s22, 0
      %p153 = por %p151, %p152
      %p154 = scmp.ne.s32.totalorder %s140, %s141
      %p155 = scmp.eq.s32.totalorder %s23, 1
      %p156 = por %p154, %p155
      %p158 = scmp.ne.s32.totalorder %s141, %s157
      %p159 = scmp.eq.s32.totalorder %s23, 0
      %p160 = por %p158, %p159
      %p161 = scmp.le.s32.totalorder 1, %s17
      %p162 = scmp.lt.s32.totalorder %s17, 3
      %p163 = pnand %p161, %p162
      %p164 = pneg %p163
      // Predicated region
      $region9: #{_ffc_resnet_block_impl.1} parent=5 // pred_check
        _
      $region10: #{_ffc_resnet_block_impl.1} parent=5 // pred_check_branch
        %166 = sbr.rel (%p163) target = $region12
      $region11: #{_ffc_resnet_block_impl.1} parent=5 // pred_region
        %s167 = ssub.s32 %s17, 1
        // Predicated region
        $region13: #{_ffc_resnet_block_impl.1} parent=11 // pred_check
          %p168 = pneg %p64
        $region14: #{_ffc_resnet_block_impl.1} parent=11 // pred_check_branch
          %170 = sbr.rel (%p168) target = $region16
        $region15: #{_ffc_resnet_block_impl.1} parent=11 // pred_region
          _
        $region16: #{_ffc_resnet_block_impl.1} parent=11 // pred_fallthru
          _
        // Predicated region
        $region17: #{_ffc_resnet_block_impl.1} parent=11 // pred_check
          %p171 = pneg %p85
        $region18: #{_ffc_resnet_block_impl.1} parent=11 // pred_check_branch
          %173 = sbr.rel (%p171) target = $region20
        $region19: #{_ffc_resnet_block_impl.1} parent=11 // pred_region
          _
        $region20: #{_ffc_resnet_block_impl.1} parent=11 // pred_fallthru
          _
        // Predicated region
        $region21: #{_ffc_resnet_block_impl.1} parent=11 // pred_check
          %p174 = pneg %p106
        $region22: #{_ffc_resnet_block_impl.1} parent=11 // pred_check_branch
          %176 = sbr.rel (%p174) target = $region24
        $region23: #{_ffc_resnet_block_impl.1} parent=11 // pred_region
          _
        $region24: #{_ffc_resnet_block_impl.1} parent=11 // pred_fallthru
          _
        // Predicated region
        $region25: #{_ffc_resnet_block_impl.1} parent=11 // pred_check
          %p177 = pneg %p127
        $region26: #{_ffc_resnet_block_impl.1} parent=11 // pred_check_branch
          %179 = sbr.rel (%p177) target = $region28
        $region27: #{_ffc_resnet_block_impl.1} parent=11 // pred_region
          _
        $region28: #{_ffc_resnet_block_impl.1} parent=11 // pred_fallthru
          _
      $region12: #{_ffc_resnet_block_impl.1} parent=5 // pred_fallthru
        _
      %p180 = scmp.lt.s32.totalorder %s17, 2
      // Predicated region
      $region29: #{_ffc_resnet_block_impl.1} parent=5 // pred_check
        %p181 = pneg %p180
      $region30: #{_ffc_resnet_block_impl.1} parent=5 // pred_check_branch
        %183 = sbr.rel (%p181) target = $region32
      $region31: #{_ffc_resnet_block_impl.1} parent=5 // pred_region
        // Predicated region
        $region33: #{_ffc_resnet_block_impl.1} parent=31 // pred_check
          %p184 = pneg %p37
        $region34: #{_ffc_resnet_block_impl.1} parent=31 // pred_check_branch
          %186 = sbr.rel (%p184) target = $region36
        $region35: #{_ffc_resnet_block_impl.1} parent=31 // pred_region
          %s187 = sand.u32 %s27, 1
          %s188 = scalar_lea.sflag [#allocation3], %s187
          %s189 = sand.u32 %s27, 1
          %s190 = smul.addr %s189, 256
          %s191 = scalar_lea.vmem [#allocation2], %s190
          %s193 = ssub.s32 4096, 4096
          %194 = vsyncadd %s188, %s193
          %s195 = smul.addr %s17, 32
          %s196 = smul.addr %s195, 128
          %s197 = scalar_lea.hbm %s0, %s196
          %s198 = sshll.u32 %s191, 4
          %s199 = int_to_ptr.vmem [resolvable:$true] %s198
          %204 = dma.hbm_to_vmem [thread:$0]  %s197, 4096, %s199, %s188, 128, 128, 8
        $region36: #{_ffc_resnet_block_impl.1} parent=31 // pred_fallthru
          _
      $region32: #{_ffc_resnet_block_impl.1} parent=5 // pred_fallthru
        _
      %p205 = scmp.le.s32.totalorder 1, %s17
      %p206 = scmp.lt.s32.totalorder %s17, 3
      %p207 = pnand %p205, %p206
      %p208 = pneg %p207
      // Predicated region
      $region37: #{_ffc_resnet_block_impl.1} parent=5 // pred_check
        _
      $region38: #{_ffc_resnet_block_impl.1} parent=5 // pred_check_branch
        %210 = sbr.rel (%p207) target = $region40
      $region39: #{_ffc_resnet_block_impl.1} parent=5 // pred_region
        %s211 = ssub.s32 %s17, 1
        %s212 = sand.u32 %s30, 1
        %s213 = scalar_lea.sflag [#allocation3], %s212
        %s214 = sand.u32 %s30, 1
        %s215 = smul.addr %s214, 256
        %s216 = scalar_lea.vmem [#allocation2], %s215
        // Predicated region
        $region41: #{_ffc_resnet_block_impl.1} parent=39 // pred_check
          %p217 = pneg %p43
        $region42: #{_ffc_resnet_block_impl.1} parent=39 // pred_check_branch
          %219 = sbr.rel (%p217) target = $region44
        $region43: #{_ffc_resnet_block_impl.1} parent=39 // pred_region
          %220 = dma.done %s213, 4096
        $region44: #{_ffc_resnet_block_impl.1} parent=39 // pred_fallthru
          _
        %s221 = sand.u32 %s30, 1
        %s222 = scalar_lea.sflag [#allocation3], %s221
        %s223 = sand.u32 %s30, 1
        %s224 = smul.addr %s223, 256
        %s225 = scalar_lea.vmem [#allocation2], %s224
        %p226 = pneg %p43
        %p227 = pneg %p40
        %p228 = pneg %p64
        %p229 = pneg %p61
        %p230 = pneg %p85
        %p231 = pneg %p82
        %p232 = pneg %p106
        %p233 = pneg %p103
        %p234 = pneg %p127
        %p235 = pneg %p124
        %p236 = pneg %p153
        %p237 = pneg %p150
        %s238 = sand.u32 %s140, 1
        %s239 = scalar_lea.sflag [#allocation4], %s238
        %s240 = sand.u32 %s140, 1
        %s241 = smul.addr %s240, 256
        %s242 = scalar_lea.vmem [#allocation5], %s241
        %v244 = vld [vmem:[%s216] sm:$0xff]
        %v245 = vld [vmem:[%s216 + $0x8] sm:$0xff]
        %v246 = vld [vmem:[%s216 + $0x10] sm:$0xff]
        %v247 = vld [vmem:[%s216 + $0x18] sm:$0xff]
        %v248 = vld [vmem:[%s216 + $0x20] sm:$0xff]
        %v249 = vld [vmem:[%s216 + $0x28] sm:$0xff]
        %v250 = vld [vmem:[%s216 + $0x30] sm:$0xff]
        %v251 = vld [vmem:[%s216 + $0x38] sm:$0xff]
        %v252 = vld [vmem:[%s216 + $0x40] sm:$0xff]
        %v253 = vld [vmem:[%s216 + $0x48] sm:$0xff]
        %v254 = vld [vmem:[%s216 + $0x50] sm:$0xff]
        %v255 = vld [vmem:[%s216 + $0x58] sm:$0xff]
        %v256 = vld [vmem:[%s216 + $0x60] sm:$0xff]
        %v257 = vld [vmem:[%s216 + $0x68] sm:$0xff]
        %v258 = vld [vmem:[%s216 + $0x70] sm:$0xff]
        %v259 = vld [vmem:[%s216 + $0x78] sm:$0xff]
        %v260 = vld [vmem:[%s216 + $0x80] sm:$0xff]
        %v261 = vld [vmem:[%s216 + $0x88] sm:$0xff]
        %v262 = vld [vmem:[%s216 + $0x90] sm:$0xff]
        %v263 = vld [vmem:[%s216 + $0x98] sm:$0xff]
        %v264 = vld [vmem:[%s216 + $0xa0] sm:$0xff]
        %v265 = vld [vmem:[%s216 + $0xa8] sm:$0xff]
        %v266 = vld [vmem:[%s216 + $0xb0] sm:$0xff]
        %v267 = vld [vmem:[%s216 + $0xb8] sm:$0xff]
        %v268 = vld [vmem:[%s216 + $0xc0] sm:$0xff]
        %v269 = vld [vmem:[%s216 + $0xc8] sm:$0xff]
        %v270 = vld [vmem:[%s216 + $0xd0] sm:$0xff]
        %v271 = vld [vmem:[%s216 + $0xd8] sm:$0xff]
        %v272 = vld [vmem:[%s216 + $0xe0] sm:$0xff]
        %v273 = vld [vmem:[%s216 + $0xe8] sm:$0xff]
        %v274 = vld [vmem:[%s216 + $0xf0] sm:$0xff]
        %v275 = vld [vmem:[%s216 + $0xf8] sm:$0xff]
        %v276 = vpack.c.bf16 %v245, %v244
        %v277 = vpack.c.bf16 %v247, %v246
        %v278 = vpack.c.bf16 %v249, %v248
        %v279 = vpack.c.bf16 %v251, %v250
        %v280 = vpack.c.bf16 %v253, %v252
        %v281 = vpack.c.bf16 %v255, %v254
        %v282 = vpack.c.bf16 %v257, %v256
        %v283 = vpack.c.bf16 %v259, %v258
        %v284 = vpack.c.bf16 %v261, %v260
        %v285 = vpack.c.bf16 %v263, %v262
        %v286 = vpack.c.bf16 %v265, %v264
        %v287 = vpack.c.bf16 %v267, %v266
        %v288 = vpack.c.bf16 %v269, %v268
        %v289 = vpack.c.bf16 %v271, %v270
        %v290 = vpack.c.bf16 %v273, %v272
        %v291 = vpack.c.bf16 %v275, %v274
        %v292 = vld [vmem:[%s2] sm:$0xf]
        %v293 = vld [vmem:[%s2 + $0x4] sm:$0xf]
        %v296 = vunpack.c.l.b16 %v292
        %v297 = vunpack.c.l.b16 %v293
        %v298 = vpack.c.b16 %v297, %v296
        %vm300 = vcmask 130048
        %v302 = vsel %vm300, %v276, 0
        %v305 = vsel %vm300, %v277, 0
        %v308 = vsel %vm300, %v278, 0
        %v311 = vsel %vm300, %v279, 0
        %v314 = vsel %vm300, %v280, 0
        %v317 = vsel %vm300, %v281, 0
        %v320 = vsel %vm300, %v282, 0
        %v323 = vsel %vm300, %v283, 0
        %v326 = vsel %vm300, %v284, 0
        %v329 = vsel %vm300, %v285, 0
        %v332 = vsel %vm300, %v286, 0
        %v335 = vsel %vm300, %v287, 0
        %v338 = vsel %vm300, %v288, 0
        %v341 = vsel %vm300, %v289, 0
        %v344 = vsel %vm300, %v290, 0
        %v347 = vsel %vm300, %v291, 0
        %349 = vmatprep.subr.bf16.mxu0 0
        %350 = vmatpush1.bf16.msra.mxu0 %v298
        %351 = vmatprep.subr.bf16.mxu0 0
        %352 = vmatpush1.bf16.msra.mxu0 0
        %353 = vmatprep.subr.bf16.mxu0 0
        %354 = vmatpush1.bf16.msra.mxu0 0
        %355 = vmatprep.subr.bf16.mxu0 0
        %356 = vmatpush1.bf16.msra.mxu0 0
        %357 = vmatprep.subr.bf16.mxu0 0
        %358 = vmatpush1.bf16.msra.mxu0 0
        %359 = vmatprep.subr.bf16.mxu0 0
        %360 = vmatpush1.bf16.msra.mxu0 0
        %361 = vmatprep.subr.bf16.mxu0 0
        %362 = vmatpush1.bf16.msra.mxu0 0
        %363 = vmatprep.subr.bf16.mxu0 0
        %364 = vmatpush1.bf16.msra.mxu0 0
        %365 = vmatprep.subr.bf16.mxu0 0
        %366 = vmatpush1.bf16.msra.mxu0 0
        %367 = vmatprep.subr.bf16.mxu0 0
        %368 = vmatpush1.bf16.msra.mxu0 0
        %369 = vmatprep.subr.bf16.mxu0 0
        %370 = vmatpush1.bf16.msra.mxu0 0
        %371 = vmatprep.subr.bf16.mxu0 0
        %372 = vmatpush1.bf16.msra.mxu0 0
        %373 = vmatprep.subr.bf16.mxu0 0
        %374 = vmatpush1.bf16.msra.mxu0 0
        %375 = vmatprep.subr.bf16.mxu0 0
        %376 = vmatpush1.bf16.msra.mxu0 0
        %377 = vmatprep.subr.bf16.mxu0 0
        %378 = vmatpush1.bf16.msra.mxu0 0
        %379 = vmatprep.subr.bf16.mxu0 0
        %380 = vmatpush1.bf16.msra.mxu0 0
        %381 = vmatprep.mubr.bf16.mxu0 0
        %382 = vmatmul.mubr.bf16.gmra.mrb[0].mxu0 %v302
        %v383 = vpop.f32.mrb[0].mxu0
        %v384 = vadd.f32 0.0, %v383
        %v385 = vpop.f32.mrb[0].mxu0
        %v386 = vpop.f32.mrb[0].mxu0
        %v387 = vadd.f32 0.0, %v386
        %v388 = vpop.f32.mrb[0].mxu0
        %389 = vmatprep.mubr.bf16.mxu0 0
        %390 = vmatmul.mubr.bf16.gmra.mrb[0].mxu0 %v305
        %v391 = vpop.f32.mrb[0].mxu0
        %v392 = vadd.f32 0.0, %v391
        %v393 = vpop.f32.mrb[0].mxu0
        %v394 = vpop.f32.mrb[0].mxu0
        %v395 = vadd.f32 0.0, %v394
        %v396 = vpop.f32.mrb[0].mxu0
        %397 = vmatprep.mubr.bf16.mxu0 0
        %398 = vmatmul.mubr.bf16.gmra.mrb[0].mxu0 %v308
        %v399 = vpop.f32.mrb[0].mxu0
        %v400 = vadd.f32 0.0, %v399
        %v401 = vpop.f32.mrb[0].mxu0
        %v402 = vpop.f32.mrb[0].mxu0
        %v403 = vadd.f32 0.0, %v402
        %v404 = vpop.f32.mrb[0].mxu0
        %405 = vmatprep.mubr.bf16.mxu0 0
        %406 = vmatmul.mubr.bf16.gmra.mrb[0].mxu0 %v311
        %v407 = vpop.f32.mrb[0].mxu0
        %v408 = vadd.f32 0.0, %v407
        %v409 = vpop.f32.mrb[0].mxu0
        %v410 = vpop.f32.mrb[0].mxu0
        %v411 = vadd.f32 0.0, %v410
        %v412 = vpop.f32.mrb[0].mxu0
        %413 = vmatprep.mubr.bf16.mxu0 0
        %414 = vmatmul.mubr.bf16.gmra.mrb[0].mxu0 %v314
        %v415 = vpop.f32.mrb[0].mxu0
        %v416 = vadd.f32 0.0, %v415
        %v417 = vpop.f32.mrb[0].mxu0
        %v418 = vpop.f32.mrb[0].mxu0
        %v419 = vadd.f32 0.0, %v418
        %v420 = vpop.f32.mrb[0].mxu0
        %421 = vmatprep.mubr.bf16.mxu0 0
        %422 = vmatmul.mubr.bf16.gmra.mrb[0].mxu0 %v317
        %v423 = vpop.f32.mrb[0].mxu0
        %v424 = vadd.f32 0.0, %v423
        %v425 = vpop.f32.mrb[0].mxu0
        %v426 = vpop.f32.mrb[0].mxu0
        %v427 = vadd.f32 0.0, %v426
        %v428 = vpop.f32.mrb[0].mxu0
        %429 = vmatprep.mubr.bf16.mxu0 0
        %430 = vmatmul.mubr.bf16.gmra.mrb[0].mxu0 %v320
        %v431 = vpop.f32.mrb[0].mxu0
        %v432 = vadd.f32 0.0, %v431
        %v433 = vpop.f32.mrb[0].mxu0
        %v434 = vpop.f32.mrb[0].mxu0
        %v435 = vadd.f32 0.0, %v434
        %v436 = vpop.f32.mrb[0].mxu0
        %437 = vmatprep.mubr.bf16.mxu0 0
        %438 = vmatmul.mubr.bf16.gmra.mrb[0].mxu0 %v323
        %v439 = vpop.f32.mrb[0].mxu0
        %v440 = vadd.f32 0.0, %v439
        %v441 = vpop.f32.mrb[0].mxu0
        %v442 = vpop.f32.mrb[0].mxu0
        %v443 = vadd.f32 0.0, %v442
        %v444 = vpop.f32.mrb[0].mxu0
        %445 = vmatprep.mubr.bf16.mxu0 0
        %446 = vmatmul.mubr.bf16.gmra.mrb[0].mxu0 %v326
        %v447 = vpop.f32.mrb[0].mxu0
        %v448 = vadd.f32 0.0, %v447
        %v449 = vpop.f32.mrb[0].mxu0
        %v450 = vpop.f32.mrb[0].mxu0
        %v451 = vadd.f32 0.0, %v450
        %v452 = vpop.f32.mrb[0].mxu0
        %453 = vmatprep.mubr.bf16.mxu0 0
        %454 = vmatmul.mubr.bf16.gmra.mrb[0].mxu0 %v329
        %v455 = vpop.f32.mrb[0].mxu0
        %v456 = vadd.f32 0.0, %v455
        %v457 = vpop.f32.mrb[0].mxu0
        %v458 = vpop.f32.mrb[0].mxu0
        %v459 = vadd.f32 0.0, %v458
        %v460 = vpop.f32.mrb[0].mxu0
        %461 = vmatprep.mubr.bf16.mxu0 0
        %462 = vmatmul.mubr.bf16.gmra.mrb[0].mxu0 %v332
        %v463 = vpop.f32.mrb[0].mxu0
        %v464 = vadd.f32 0.0, %v463
        %v465 = vpop.f32.mrb[0].mxu0
        %v466 = vpop.f32.mrb[0].mxu0
        %v467 = vadd.f32 0.0, %v466
        %v468 = vpop.f32.mrb[0].mxu0
        %469 = vmatprep.mubr.bf16.mxu0 0
        %470 = vmatmul.mubr.bf16.gmra.mrb[0].mxu0 %v335
        %v471 = vpop.f32.mrb[0].mxu0
        %v472 = vadd.f32 0.0, %v471
        %v473 = vpop.f32.mrb[0].mxu0
        %v474 = vpop.f32.mrb[0].mxu0
        %v475 = vadd.f32 0.0, %v474
        %v476 = vpop.f32.mrb[0].mxu0
        %477 = vmatprep.mubr.bf16.mxu0 0
        %478 = vmatmul.mubr.bf16.gmra.mrb[0].mxu0 %v338
        %v479 = vpop.f32.mrb[0].mxu0
        %v480 = vadd.f32 0.0, %v479
        %v481 = vpop.f32.mrb[0].mxu0
        %v482 = vpop.f32.mrb[0].mxu0
        %v483 = vadd.f32 0.0, %v482
        %v484 = vpop.f32.mrb[0].mxu0
        %485 = vmatprep.mubr.bf16.mxu0 0
        %486 = vmatmul.mubr.bf16.gmra.mrb[0].mxu0 %v341
        %v487 = vpop.f32.mrb[0].mxu0
        %v488 = vadd.f32 0.0, %v487
        %v489 = vpop.f32.mrb[0].mxu0
        %v490 = vpop.f32.mrb[0].mxu0
        %v491 = vadd.f32 0.0, %v490
        %v492 = vpop.f32.mrb[0].mxu0
        %493 = vmatprep.mubr.bf16.mxu0 0
        %494 = vmatmul.mubr.bf16.gmra.mrb[0].mxu0 %v344
        %v495 = vpop.f32.mrb[0].mxu0
        %v496 = vadd.f32 0.0, %v495
        %v497 = vpop.f32.mrb[0].mxu0
        %v498 = vpop.f32.mrb[0].mxu0
        %v499 = vadd.f32 0.0, %v498
        %v500 = vpop.f32.mrb[0].mxu0
        %501 = vmatprep.mubr.bf16.mxu0 0
        %502 = vmatmul.mubr.bf16.gmra.mrb[0].mxu0 %v347
        %v503 = vpop.f32.mrb[0].mxu0
        %v504 = vadd.f32 0.0, %v503
        %v505 = vpop.f32.mrb[0].mxu0
        %v506 = vpop.f32.mrb[0].mxu0
        %v507 = vadd.f32 0.0, %v506
        %v508 = vpop.f32.mrb[0].mxu0
        %509 = vdwg.mxu0
        %v510 = vld [vmem:[%s4] sm:$0x1]
        %v512 = vlaneseq
        %v513 = vshrl.u32 %v512, 7
        %v514 = vsub.s32 0, %v513
        %v515 = vrot.slane %v510, %v514
        %v517 = vmul.f32 %v384, %v515
        %v518 = vmul.f32 %v387, %v515
        %v519 = vmul.f32 %v392, %v515
        %v520 = vmul.f32 %v395, %v515
        %v521 = vmul.f32 %v400, %v515
        %v522 = vmul.f32 %v403, %v515
        %v523 = vmul.f32 %v408, %v515
        %v524 = vmul.f32 %v411, %v515
        %v525 = vmul.f32 %v416, %v515
        %v526 = vmul.f32 %v419, %v515
        %v527 = vmul.f32 %v424, %v515
        %v528 = vmul.f32 %v427, %v515
        %v529 = vmul.f32 %v432, %v515
        %v530 = vmul.f32 %v435, %v515
        %v531 = vmul.f32 %v440, %v515
        %v532 = vmul.f32 %v443, %v515
        %v533 = vmul.f32 %v448, %v515
        %v534 = vmul.f32 %v451, %v515
        %v535 = vmul.f32 %v456, %v515
        %v536 = vmul.f32 %v459, %v515
        %v537 = vmul.f32 %v464, %v515
        %v538 = vmul.f32 %v467, %v515
        %v539 = vmul.f32 %v472, %v515
        %v540 = vmul.f32 %v475, %v515
        %v541 = vmul.f32 %v480, %v515
        %v542 = vmul.f32 %v483, %v515
        %v543 = vmul.f32 %v488, %v515
        %v544 = vmul.f32 %v491, %v515
        %v545 = vmul.f32 %v496, %v515
        %v546 = vmul.f32 %v499, %v515
        %v547 = vmul.f32 %v504, %v515
        %v548 = vmul.f32 %v507, %v515
        %s549 = scalar_lea.vmem %s4, 1
        %v550 = vld [vmem:[%s549] sm:$0x1]
        %v552 = vlaneseq
        %v553 = vshrl.u32 %v552, 7
        %v554 = vsub.s32 0, %v553
        %v555 = vrot.slane %v550, %v554
        %v557 = vadd.f32 %v517, %v555
        %v558 = vadd.f32 %v518, %v555
        %v559 = vadd.f32 %v519, %v555
        %v560 = vadd.f32 %v520, %v555
        %v561 = vadd.f32 %v521, %v555
        %v562 = vadd.f32 %v522, %v555
        %v563 = vadd.f32 %v523, %v555
        %v564 = vadd.f32 %v524, %v555
        %v565 = vadd.f32 %v525, %v555
        %v566 = vadd.f32 %v526, %v555
        %v567 = vadd.f32 %v527, %v555
        %v568 = vadd.f32 %v528, %v555
        %v569 = vadd.f32 %v529, %v555
        %v570 = vadd.f32 %v530, %v555
        %v571 = vadd.f32 %v531, %v555
        %v572 = vadd.f32 %v532, %v555
        %v573 = vadd.f32 %v533, %v555
        %v574 = vadd.f32 %v534, %v555
        %v575 = vadd.f32 %v535, %v555
        %v576 = vadd.f32 %v536, %v555
        %v577 = vadd.f32 %v537, %v555
        %v578 = vadd.f32 %v538, %v555
        %v579 = vadd.f32 %v539, %v555
        %v580 = vadd.f32 %v540, %v555
        %v581 = vadd.f32 %v541, %v555
        %v582 = vadd.f32 %v542, %v555
        %v583 = vadd.f32 %v543, %v555
        %v584 = vadd.f32 %v544, %v555
        %v585 = vadd.f32 %v545, %v555
        %v586 = vadd.f32 %v546, %v555
        %v587 = vadd.f32 %v547, %v555
        %v588 = vadd.f32 %v548, %v555
        %v589 = vmax.f32 %v557, 0.0
        %v590 = vmax.f32 %v558, 0.0
        %v591 = vmax.f32 %v559, 0.0
        %v592 = vmax.f32 %v560, 0.0
        %v593 = vmax.f32 %v561, 0.0
        %v594 = vmax.f32 %v562, 0.0
        %v595 = vmax.f32 %v563, 0.0
        %v596 = vmax.f32 %v564, 0.0
        %v597 = vmax.f32 %v565, 0.0
        %v598 = vmax.f32 %v566, 0.0
        %v599 = vmax.f32 %v567, 0.0
        %v600 = vmax.f32 %v568, 0.0
        %v601 = vmax.f32 %v569, 0.0
        %v602 = vmax.f32 %v570, 0.0
        %v603 = vmax.f32 %v571, 0.0
        %v604 = vmax.f32 %v572, 0.0
        %v605 = vmax.f32 %v573, 0.0
        %v606 = vmax.f32 %v574, 0.0
        %v607 = vmax.f32 %v575, 0.0
        %v608 = vmax.f32 %v576, 0.0
        %v609 = vmax.f32 %v577, 0.0
        %v610 = vmax.f32 %v578, 0.0
        %v611 = vmax.f32 %v579, 0.0
        %v612 = vmax.f32 %v580, 0.0
        %v613 = vmax.f32 %v581, 0.0
        %v614 = vmax.f32 %v582, 0.0
        %v615 = vmax.f32 %v583, 0.0
        %v616 = vmax.f32 %v584, 0.0
        %v617 = vmax.f32 %v585, 0.0
        %v618 = vmax.f32 %v586, 0.0
        %v619 = vmax.f32 %v587, 0.0
        %v620 = vmax.f32 %v588, 0.0
        %v621 = vpack.c.bf16 %v590, %v589
        %v622 = vpack.c.bf16 %v592, %v591
        %v623 = vpack.c.bf16 %v594, %v593
        %v624 = vpack.c.bf16 %v596, %v595
        %v625 = vpack.c.bf16 %v598, %v597
        %v626 = vpack.c.bf16 %v600, %v599
        %v627 = vpack.c.bf16 %v602, %v601
        %v628 = vpack.c.bf16 %v604, %v603
        %v629 = vpack.c.bf16 %v606, %v605
        %v630 = vpack.c.bf16 %v608, %v607
        %v631 = vpack.c.bf16 %v610, %v609
        %v632 = vpack.c.bf16 %v612, %v611
        %v633 = vpack.c.bf16 %v614, %v613
        %v634 = vpack.c.bf16 %v616, %v615
        %v635 = vpack.c.bf16 %v618, %v617
        %v636 = vpack.c.bf16 %v620, %v619
        %s637 = scalar_lea.vmem %s2, 8
        %v638 = vld [vmem:[%s637] sm:$0xf]
        %v639 = vld [vmem:[%s637 + $0x4] sm:$0xf]
        %v642 = vunpack.c.l.b16 %v638
        %v643 = vunpack.c.l.b16 %v639
        %v644 = vpack.c.b16 %v643, %v642
        %v647 = vsel %vm300, %v621, 0
        %v650 = vsel %vm300, %v622, 0
        %v653 = vsel %vm300, %v623, 0
        %v656 = vsel %vm300, %v624, 0
        %v659 = vsel %vm300, %v625, 0
        %v662 = vsel %vm300, %v626, 0
        %v665 = vsel %vm300, %v627, 0
        %v668 = vsel %vm300, %v628, 0
        %v671 = vsel %vm300, %v629, 0
        %v674 = vsel %vm300, %v630, 0
        %v677 = vsel %vm300, %v631, 0
        %v680 = vsel %vm300, %v632, 0
        %v683 = vsel %vm300, %v633, 0
        %v686 = vsel %vm300, %v634, 0
        %v689 = vsel %vm300, %v635, 0
        %v692 = vsel %vm300, %v636, 0
        %694 = vmatprep.subr.bf16.mxu0 0
        %695 = vmatpush1.bf16.msra.mxu0 %v644
        %696 = vmatprep.subr.bf16.mxu0 0
        %697 = vmatpush1.bf16.msra.mxu0 0
        %698 = vmatprep.subr.bf16.mxu0 0
        %699 = vmatpush1.bf16.msra.mxu0 0
        %700 = vmatprep.subr.bf16.mxu0 0
        %701 = vmatpush1.bf16.msra.mxu0 0
        %702 = vmatprep.subr.bf16.mxu0 0
        %703 = vmatpush1.bf16.msra.mxu0 0
        %704 = vmatprep.subr.bf16.mxu0 0
        %705 = vmatpush1.bf16.msra.mxu0 0
        %706 = vmatprep.subr.bf16.mxu0 0
        %707 = vmatpush1.bf16.msra.mxu0 0
        %708 = vmatprep.subr.bf16.mxu0 0
        %709 = vmatpush1.bf16.msra.mxu0 0
        %710 = vmatprep.subr.bf16.mxu0 0
        %711 = vmatpush1.bf16.msra.mxu0 0
        %712 = vmatprep.subr.bf16.mxu0 0
        %713 = vmatpush1.bf16.msra.mxu0 0
        %714 = vmatprep.subr.bf16.mxu0 0
        %715 = vmatpush1.bf16.msra.mxu0 0
        %716 = vmatprep.subr.bf16.mxu0 0
        %717 = vmatpush1.bf16.msra.mxu0 0
        %718 = vmatprep.subr.bf16.mxu0 0
        %719 = vmatpush1.bf16.msra.mxu0 0
        %720 = vmatprep.subr.bf16.mxu0 0
        %721 = vmatpush1.bf16.msra.mxu0 0
        %722 = vmatprep.subr.bf16.mxu0 0
        %723 = vmatpush1.bf16.msra.mxu0 0
        %724 = vmatprep.subr.bf16.mxu0 0
        %725 = vmatpush1.bf16.msra.mxu0 0
        %726 = vmatprep.mubr.bf16.mxu0 0
        %727 = vmatmul.mubr.bf16.gmra.mrb[0].mxu0 %v647
        %v728 = vpop.f32.mrb[0].mxu0
        %v729 = vadd.f32 0.0, %v728
        %v730 = vpop.f32.mrb[0].mxu0
        %v731 = vpop.f32.mrb[0].mxu0
        %v732 = vadd.f32 0.0, %v731
        %v733 = vpop.f32.mrb[0].mxu0
        %734 = vmatprep.mubr.bf16.mxu0 0
        %735 = vmatmul.mubr.bf16.gmra.mrb[0].mxu0 %v650
        %v736 = vpop.f32.mrb[0].mxu0
        %v737 = vadd.f32 0.0, %v736
        %v738 = vpop.f32.mrb[0].mxu0
        %v739 = vpop.f32.mrb[0].mxu0
        %v740 = vadd.f32 0.0, %v739
        %v741 = vpop.f32.mrb[0].mxu0
        %742 = vmatprep.mubr.bf16.mxu0 0
        %743 = vmatmul.mubr.bf16.gmra.mrb[0].mxu0 %v653
        %v744 = vpop.f32.mrb[0].mxu0
        %v745 = vadd.f32 0.0, %v744
        %v746 = vpop.f32.mrb[0].mxu0
        %v747 = vpop.f32.mrb[0].mxu0
        %v748 = vadd.f32 0.0, %v747
        %v749 = vpop.f32.mrb[0].mxu0
        %750 = vmatprep.mubr.bf16.mxu0 0
        %751 = vmatmul.mubr.bf16.gmra.mrb[0].mxu0 %v656
        %v752 = vpop.f32.mrb[0].mxu0
        %v753 = vadd.f32 0.0, %v752
        %v754 = vpop.f32.mrb[0].mxu0
        %v755 = vpop.f32.mrb[0].mxu0
        %v756 = vadd.f32 0.0, %v755
        %v757 = vpop.f32.mrb[0].mxu0
        %758 = vmatprep.mubr.bf16.mxu0 0
        %759 = vmatmul.mubr.bf16.gmra.mrb[0].mxu0 %v659
        %v760 = vpop.f32.mrb[0].mxu0
        %v761 = vadd.f32 0.0, %v760
        %v762 = vpop.f32.mrb[0].mxu0
        %v763 = vpop.f32.mrb[0].mxu0
        %v764 = vadd.f32 0.0, %v763
        %v765 = vpop.f32.mrb[0].mxu0
        %766 = vmatprep.mubr.bf16.mxu0 0
        %767 = vmatmul.mubr.bf16.gmra.mrb[0].mxu0 %v662
        %v768 = vpop.f32.mrb[0].mxu0
        %v769 = vadd.f32 0.0, %v768
        %v770 = vpop.f32.mrb[0].mxu0
        %v771 = vpop.f32.mrb[0].mxu0
        %v772 = vadd.f32 0.0, %v771
        %v773 = vpop.f32.mrb[0].mxu0
        %774 = vmatprep.mubr.bf16.mxu0 0
        %775 = vmatmul.mubr.bf16.gmra.mrb[0].mxu0 %v665
        %v776 = vpop.f32.mrb[0].mxu0
        %v777 = vadd.f32 0.0, %v776
        %v778 = vpop.f32.mrb[0].mxu0
        %v779 = vpop.f32.mrb[0].mxu0
        %v780 = vadd.f32 0.0, %v779
        %v781 = vpop.f32.mrb[0].mxu0
        %782 = vmatprep.mubr.bf16.mxu0 0
        %783 = vmatmul.mubr.bf16.gmra.mrb[0].mxu0 %v668
        %v784 = vpop.f32.mrb[0].mxu0
        %v785 = vadd.f32 0.0, %v784
        %v786 = vpop.f32.mrb[0].mxu0
        %v787 = vpop.f32.mrb[0].mxu0
        %v788 = vadd.f32 0.0, %v787
        %v789 = vpop.f32.mrb[0].mxu0
        %790 = vmatprep.mubr.bf16.mxu0 0
        %791 = vmatmul.mubr.bf16.gmra.mrb[0].mxu0 %v671
        %v792 = vpop.f32.mrb[0].mxu0
        %v793 = vadd.f32 0.0, %v792
        %v794 = vpop.f32.mrb[0].mxu0
        %v795 = vpop.f32.mrb[0].mxu0
        %v796 = vadd.f32 0.0, %v795
        %v797 = vpop.f32.mrb[0].mxu0
        %798 = vmatprep.mubr.bf16.mxu0 0
        %799 = vmatmul.mubr.bf16.gmra.mrb[0].mxu0 %v674
        %v800 = vpop.f32.mrb[0].mxu0
        %v801 = vadd.f32 0.0, %v800
        %v802 = vpop.f32.mrb[0].mxu0
        %v803 = vpop.f32.mrb[0].mxu0
        %v804 = vadd.f32 0.0, %v803
        %v805 = vpop.f32.mrb[0].mxu0
        %806 = vmatprep.mubr.bf16.mxu0 0
        %807 = vmatmul.mubr.bf16.gmra.mrb[0].mxu0 %v677
        %v808 = vpop.f32.mrb[0].mxu0
        %v809 = vadd.f32 0.0, %v808
        %v810 = vpop.f32.mrb[0].mxu0
        %v811 = vpop.f32.mrb[0].mxu0
        %v812 = vadd.f32 0.0, %v811
        %v813 = vpop.f32.mrb[0].mxu0
        %814 = vmatprep.mubr.bf16.mxu0 0
        %815 = vmatmul.mubr.bf16.gmra.mrb[0].mxu0 %v680
        %v816 = vpop.f32.mrb[0].mxu0
        %v817 = vadd.f32 0.0, %v816
        %v818 = vpop.f32.mrb[0].mxu0
        %v819 = vpop.f32.mrb[0].mxu0
        %v820 = vadd.f32 0.0, %v819
        %v821 = vpop.f32.mrb[0].mxu0
        %822 = vmatprep.mubr.bf16.mxu0 0
        %823 = vmatmul.mubr.bf16.gmra.mrb[0].mxu0 %v683
        %v824 = vpop.f32.mrb[0].mxu0
        %v825 = vadd.f32 0.0, %v824
        %v826 = vpop.f32.mrb[0].mxu0
        %v827 = vpop.f32.mrb[0].mxu0
        %v828 = vadd.f32 0.0, %v827
        %v829 = vpop.f32.mrb[0].mxu0
        %830 = vmatprep.mubr.bf16.mxu0 0
        %831 = vmatmul.mubr.bf16.gmra.mrb[0].mxu0 %v686
        %v832 = vpop.f32.mrb[0].mxu0
        %v833 = vadd.f32 0.0, %v832
        %v834 = vpop.f32.mrb[0].mxu0
        %v835 = vpop.f32.mrb[0].mxu0
        %v836 = vadd.f32 0.0, %v835
        %v837 = vpop.f32.mrb[0].mxu0
        %838 = vmatprep.mubr.bf16.mxu0 0
        %839 = vmatmul.mubr.bf16.gmra.mrb[0].mxu0 %v689
        %v840 = vpop.f32.mrb[0].mxu0
        %v841 = vadd.f32 0.0, %v840
        %v842 = vpop.f32.mrb[0].mxu0
        %v843 = vpop.f32.mrb[0].mxu0
        %v844 = vadd.f32 0.0, %v843
        %v845 = vpop.f32.mrb[0].mxu0
        %846 = vmatprep.mubr.bf16.mxu0 0
        %847 = vmatmul.mubr.bf16.gmra.mrb[0].mxu0 %v692
        %v848 = vpop.f32.mrb[0].mxu0
        %v849 = vadd.f32 0.0, %v848
        %v850 = vpop.f32.mrb[0].mxu0
        %v851 = vpop.f32.mrb[0].mxu0
        %v852 = vadd.f32 0.0, %v851
        %v853 = vpop.f32.mrb[0].mxu0
        %854 = vdwg.mxu0
        %s855 = scalar_lea.vmem %s4, 2
        %v856 = vld [vmem:[%s855] sm:$0x1]
        %v858 = vlaneseq
        %v859 = vshrl.u32 %v858, 7
        %v860 = vsub.s32 0, %v859
        %v861 = vrot.slane %v856, %v860
        %v863 = vmul.f32 %v729, %v861
        %v864 = vmul.f32 %v732, %v861
        %v865 = vmul.f32 %v737, %v861
        %v866 = vmul.f32 %v740, %v861
        %v867 = vmul.f32 %v745, %v861
        %v868 = vmul.f32 %v748, %v861
        %v869 = vmul.f32 %v753, %v861
        %v870 = vmul.f32 %v756, %v861
        %v871 = vmul.f32 %v761, %v861
        %v872 = vmul.f32 %v764, %v861
        %v873 = vmul.f32 %v769, %v861
        %v874 = vmul.f32 %v772, %v861
        %v875 = vmul.f32 %v777, %v861
        %v876 = vmul.f32 %v780, %v861
        %v877 = vmul.f32 %v785, %v861
        %v878 = vmul.f32 %v788, %v861
        %v879 = vmul.f32 %v793, %v861
        %v880 = vmul.f32 %v796, %v861
        %v881 = vmul.f32 %v801, %v861
        %v882 = vmul.f32 %v804, %v861
        %v883 = vmul.f32 %v809, %v861
        %v884 = vmul.f32 %v812, %v861
        %v885 = vmul.f32 %v817, %v861
        %v886 = vmul.f32 %v820, %v861
        %v887 = vmul.f32 %v825, %v861
        %v888 = vmul.f32 %v828, %v861
        %v889 = vmul.f32 %v833, %v861
        %v890 = vmul.f32 %v836, %v861
        %v891 = vmul.f32 %v841, %v861
        %v892 = vmul.f32 %v844, %v861
        %v893 = vmul.f32 %v849, %v861
        %v894 = vmul.f32 %v852, %v861
        %s895 = scalar_lea.vmem %s4, 3
        %v896 = vld [vmem:[%s895] sm:$0x1]
        %v898 = vlaneseq
        %v899 = vshrl.u32 %v898, 7
        %v900 = vsub.s32 0, %v899
        %v901 = vrot.slane %v896, %v900
        %v903 = vadd.f32 %v863, %v901
        %v904 = vadd.f32 %v864, %v901
        %v905 = vadd.f32 %v865, %v901
        %v906 = vadd.f32 %v866, %v901
        %v907 = vadd.f32 %v867, %v901
        %v908 = vadd.f32 %v868, %v901
        %v909 = vadd.f32 %v869, %v901
        %v910 = vadd.f32 %v870, %v901
        %v911 = vadd.f32 %v871, %v901
        %v912 = vadd.f32 %v872, %v901
        %v913 = vadd.f32 %v873, %v901
        %v914 = vadd.f32 %v874, %v901
        %v915 = vadd.f32 %v875, %v901
        %v916 = vadd.f32 %v876, %v901
        %v917 = vadd.f32 %v877, %v901
        %v918 = vadd.f32 %v878, %v901
        %v919 = vadd.f32 %v879, %v901
        %v920 = vadd.f32 %v880, %v901
        %v921 = vadd.f32 %v881, %v901
        %v922 = vadd.f32 %v882, %v901
        %v923 = vadd.f32 %v883, %v901
        %v924 = vadd.f32 %v884, %v901
        %v925 = vadd.f32 %v885, %v901
        %v926 = vadd.f32 %v886, %v901
        %v927 = vadd.f32 %v887, %v901
        %v928 = vadd.f32 %v888, %v901
        %v929 = vadd.f32 %v889, %v901
        %v930 = vadd.f32 %v890, %v901
        %v931 = vadd.f32 %v891, %v901
        %v932 = vadd.f32 %v892, %v901
        %v933 = vadd.f32 %v893, %v901
        %v934 = vadd.f32 %v894, %v901
        %v935 = vmax.f32 %v903, 0.0
        %v936 = vmax.f32 %v904, 0.0
        %v937 = vmax.f32 %v905, 0.0
        %v938 = vmax.f32 %v906, 0.0
        %v939 = vmax.f32 %v907, 0.0
        %v940 = vmax.f32 %v908, 0.0
        %v941 = vmax.f32 %v909, 0.0
        %v942 = vmax.f32 %v910, 0.0
        %v943 = vmax.f32 %v911, 0.0
        %v944 = vmax.f32 %v912, 0.0
        %v945 = vmax.f32 %v913, 0.0
        %v946 = vmax.f32 %v914, 0.0
        %v947 = vmax.f32 %v915, 0.0
        %v948 = vmax.f32 %v916, 0.0
        %v949 = vmax.f32 %v917, 0.0
        %v950 = vmax.f32 %v918, 0.0
        %v951 = vmax.f32 %v919, 0.0
        %v952 = vmax.f32 %v920, 0.0
        %v953 = vmax.f32 %v921, 0.0
        %v954 = vmax.f32 %v922, 0.0
        %v955 = vmax.f32 %v923, 0.0
        %v956 = vmax.f32 %v924, 0.0
        %v957 = vmax.f32 %v925, 0.0
        %v958 = vmax.f32 %v926, 0.0
        %v959 = vmax.f32 %v927, 0.0
        %v960 = vmax.f32 %v928, 0.0
        %v961 = vmax.f32 %v929, 0.0
        %v962 = vmax.f32 %v930, 0.0
        %v963 = vmax.f32 %v931, 0.0
        %v964 = vmax.f32 %v932, 0.0
        %v965 = vmax.f32 %v933, 0.0
        %v966 = vmax.f32 %v934, 0.0
        %975 = vrot.lane.b32.xlu0 %v605, 1
        %v976 = vpop.permute.xlu0 %975
        %977 = vrot.lane.b32.xlu0 %v607, 1
        %v978 = vpop.permute.xlu0 %977
        %979 = vrot.lane.b32.xlu0 %v609, 1
        %v980 = vpop.permute.xlu0 %979
        %981 = vrot.lane.b32.xlu0 %v611, 1
        %v982 = vpop.permute.xlu0 %981
        %983 = vrot.lane.b32.xlu0 %v613, 1
        %v984 = vpop.permute.xlu0 %983
        %985 = vrot.lane.b32.xlu0 %v615, 1
        %v986 = vpop.permute.xlu0 %985
        %987 = vrot.lane.b32.xlu0 %v617, 1
        %v988 = vpop.permute.xlu0 %987
        %989 = vrot.lane.b32.xlu0 %v619, 1
        %v990 = vpop.permute.xlu0 %989
        %1007 = vrot.lane.b32.xlu0 %v590, 2
        %v1008 = vpop.permute.xlu0 %1007
        %1009 = vrot.lane.b32.xlu0 %v592, 2
        %v1010 = vpop.permute.xlu0 %1009
        %1011 = vrot.lane.b32.xlu0 %v594, 2
        %v1012 = vpop.permute.xlu0 %1011
        %1013 = vrot.lane.b32.xlu0 %v596, 2
        %v1014 = vpop.permute.xlu0 %1013
        %1015 = vrot.lane.b32.xlu0 %v598, 2
        %v1016 = vpop.permute.xlu0 %1015
        %1017 = vrot.lane.b32.xlu0 %v600, 2
        %v1018 = vpop.permute.xlu0 %1017
        %1019 = vrot.lane.b32.xlu0 %v602, 2
        %v1020 = vpop.permute.xlu0 %1019
        %1021 = vrot.lane.b32.xlu0 %v604, 2
        %v1022 = vpop.permute.xlu0 %1021
        %1039 = vrot.lane.b32.xlu0 %v606, 3
        %v1040 = vpop.permute.xlu0 %1039
        %1041 = vrot.lane.b32.xlu0 %v608, 3
        %v1042 = vpop.permute.xlu0 %1041
        %1043 = vrot.lane.b32.xlu0 %v610, 3
        %v1044 = vpop.permute.xlu0 %1043
        %1045 = vrot.lane.b32.xlu0 %v612, 3
        %v1046 = vpop.permute.xlu0 %1045
        %1047 = vrot.lane.b32.xlu0 %v614, 3
        %v1048 = vpop.permute.xlu0 %1047
        %1049 = vrot.lane.b32.xlu0 %v616, 3
        %v1050 = vpop.permute.xlu0 %1049
        %1051 = vrot.lane.b32.xlu0 %v618, 3
        %v1052 = vpop.permute.xlu0 %1051
        %1053 = vrot.lane.b32.xlu0 %v620, 3
        %v1054 = vpop.permute.xlu0 %1053
        %vm1063 = vcmask 7168
        %v1064 = vsel %vm1063, %v589, %v976
        %v1065 = vsel %vm1063, %v591, %v978
        %v1066 = vsel %vm1063, %v593, %v980
        %v1067 = vsel %vm1063, %v595, %v982
        %v1068 = vsel %vm1063, %v597, %v984
        %v1069 = vsel %vm1063, %v599, %v986
        %v1070 = vsel %vm1063, %v601, %v988
        %v1071 = vsel %vm1063, %v603, %v990
        %vm1072 = vcmask 15360
        %v1073 = vsel %vm1072, %v1064, %v1008
        %v1074 = vsel %vm1072, %v1065, %v1010
        %v1075 = vsel %vm1072, %v1066, %v1012
        %v1076 = vsel %vm1072, %v1067, %v1014
        %v1077 = vsel %vm1072, %v1068, %v1016
        %v1078 = vsel %vm1072, %v1069, %v1018
        %v1079 = vsel %vm1072, %v1070, %v1020
        %v1080 = vsel %vm1072, %v1071, %v1022
        %vm1081 = vcmask 23552
        %v1082 = vsel %vm1081, %v1073, %v1040
        %v1083 = vsel %vm1081, %v1074, %v1042
        %v1084 = vsel %vm1081, %v1075, %v1044
        %v1085 = vsel %vm1081, %v1076, %v1046
        %v1086 = vsel %vm1081, %v1077, %v1048
        %v1087 = vsel %vm1081, %v1078, %v1050
        %v1088 = vsel %vm1081, %v1079, %v1052
        %v1089 = vsel %vm1081, %v1080, %v1054
        %vm1090 = vcmask 31744
        %v1091 = vsel %vm1090, %v1082, 0.0
        %v1092 = vsel %vm1090, %v1083, 0.0
        %v1093 = vsel %vm1090, %v1084, 0.0
        %v1094 = vsel %vm1090, %v1085, 0.0
        %v1095 = vsel %vm1090, %v1086, 0.0
        %v1096 = vsel %vm1090, %v1087, 0.0
        %v1097 = vsel %vm1090, %v1088, 0.0
        %v1098 = vsel %vm1090, %v1089, 0.0
        %v1099 = vpack.c.bf16 %v1091, %v1091
        %v1100 = vpack.c.bf16 %v1092, %v1092
        %v1101 = vpack.c.bf16 %v1093, %v1093
        %v1102 = vpack.c.bf16 %v1094, %v1094
        %v1103 = vpack.c.bf16 %v1095, %v1095
        %v1104 = vpack.c.bf16 %v1096, %v1096
        %v1105 = vpack.c.bf16 %v1097, %v1097
        %v1106 = vpack.c.bf16 %v1098, %v1098
        %s1107 = scalar_lea.vmem %s2, 16
        %v1108 = vld [vmem:[%s1107] sm:$0xf]
        %v1109 = vld [vmem:[%s1107 + $0x4] sm:$0xf]
        %v1118 = vunpack.c.l.b16 %v1099
        %v1119 = vunpack.c.l.b16 %v1100
        %v1120 = vunpack.c.l.b16 %v1101
        %v1121 = vunpack.c.l.b16 %v1102
        %v1122 = vunpack.c.l.b16 %v1103
        %v1123 = vunpack.c.l.b16 %v1104
        %v1124 = vunpack.c.l.b16 %v1105
        %v1125 = vunpack.c.l.b16 %v1106
        %v1126 = vpack.c.b16 %v1119, %v1118
        %v1127 = vpack.c.b16 %v1121, %v1120
        %v1128 = vpack.c.b16 %v1123, %v1122
        %v1129 = vpack.c.b16 %v1125, %v1124
        %v1132 = vunpack.c.l.b16 %v1108
        %v1133 = vunpack.c.l.b16 %v1109
        %v1134 = vpack.c.b16 %v1133, %v1132
        %v1137 = vsel %vm300, %v1126, 0
        %v1140 = vsel %vm300, %v1127, 0
        %v1143 = vsel %vm300, %v1128, 0
        %v1146 = vsel %vm300, %v1129, 0
        %1148 = vmatprep.subr.bf16.mxu0 0
        %1149 = vmatpush1.bf16.msra.mxu0 %v1134
        %1150 = vmatprep.subr.bf16.mxu0 0
        %1151 = vmatpush1.bf16.msra.mxu0 0
        %1152 = vmatprep.subr.bf16.mxu0 0
        %1153 = vmatpush1.bf16.msra.mxu0 0
        %1154 = vmatprep.subr.bf16.mxu0 0
        %1155 = vmatpush1.bf16.msra.mxu0 0
        %1156 = vmatprep.subr.bf16.mxu0 0
        %1157 = vmatpush1.bf16.msra.mxu0 0
        %1158 = vmatprep.subr.bf16.mxu0 0
        %1159 = vmatpush1.bf16.msra.mxu0 0
        %1160 = vmatprep.subr.bf16.mxu0 0
        %1161 = vmatpush1.bf16.msra.mxu0 0
        %1162 = vmatprep.subr.bf16.mxu0 0
        %1163 = vmatpush1.bf16.msra.mxu0 0
        %1164 = vmatprep.subr.bf16.mxu0 0
        %1165 = vmatpush1.bf16.msra.mxu0 0
        %1166 = vmatprep.subr.bf16.mxu0 0
        %1167 = vmatpush1.bf16.msra.mxu0 0
        %1168 = vmatprep.subr.bf16.mxu0 0
        %1169 = vmatpush1.bf16.msra.mxu0 0
        %1170 = vmatprep.subr.bf16.mxu0 0
        %1171 = vmatpush1.bf16.msra.mxu0 0
        %1172 = vmatprep.subr.bf16.mxu0 0
        %1173 = vmatpush1.bf16.msra.mxu0 0
        %1174 = vmatprep.subr.bf16.mxu0 0
        %1175 = vmatpush1.bf16.msra.mxu0 0
        %1176 = vmatprep.subr.bf16.mxu0 0
        %1177 = vmatpush1.bf16.msra.mxu0 0
        %1178 = vmatprep.subr.bf16.mxu0 0
        %1179 = vmatpush1.bf16.msra.mxu0 0
        %1180 = vmatprep.mubr.bf16.mxu0 0
        %1181 = vmatmul.mubr.bf16.gmra.mrb[0].mxu0 %v1137
        %v1182 = vpop.f32.mrb[0].mxu0
        %v1183 = vadd.f32 0.0, %v1182
        %v1184 = vpop.f32.mrb[0].mxu0
        %v1185 = vpop.f32.mrb[0].mxu0
        %v1186 = vadd.f32 0.0, %v1185
        %v1187 = vpop.f32.mrb[0].mxu0
        %1188 = vmatprep.mubr.bf16.mxu0 0
        %1189 = vmatmul.mubr.bf16.gmra.mrb[0].mxu0 %v1140
        %v1190 = vpop.f32.mrb[0].mxu0
        %v1191 = vadd.f32 0.0, %v1190
        %v1192 = vpop.f32.mrb[0].mxu0
        %v1193 = vpop.f32.mrb[0].mxu0
        %v1194 = vadd.f32 0.0, %v1193
        %v1195 = vpop.f32.mrb[0].mxu0
        %1196 = vmatprep.mubr.bf16.mxu0 0
        %1197 = vmatmul.mubr.bf16.gmra.mrb[0].mxu0 %v1143
        %v1198 = vpop.f32.mrb[0].mxu0
        %v1199 = vadd.f32 0.0, %v1198
        %v1200 = vpop.f32.mrb[0].mxu0
        %v1201 = vpop.f32.mrb[0].mxu0
        %v1202 = vadd.f32 0.0, %v1201
        %v1203 = vpop.f32.mrb[0].mxu0
        %1204 = vmatprep.mubr.bf16.mxu0 0
        %1205 = vmatmul.mubr.bf16.gmra.mrb[0].mxu0 %v1146
        %v1206 = vpop.f32.mrb[0].mxu0
        %v1207 = vadd.f32 0.0, %v1206
        %v1208 = vpop.f32.mrb[0].mxu0
        %v1209 = vpop.f32.mrb[0].mxu0
        %v1210 = vadd.f32 0.0, %v1209
        %v1211 = vpop.f32.mrb[0].mxu0
        %1212 = vdwg.mxu0
        %s1213 = scalar_lea.vmem %s4, 4
        %v1214 = vld [vmem:[%s1213] sm:$0x1]
        %v1216 = vlaneseq
        %v1217 = vshrl.u32 %v1216, 7
        %v1218 = vsub.s32 0, %v1217
        %v1219 = vrot.slane %v1214, %v1218
        %v1221 = vmul.f32 %v1183, %v1219
        %v1222 = vmul.f32 %v1186, %v1219
        %v1223 = vmul.f32 %v1191, %v1219
        %v1224 = vmul.f32 %v1194, %v1219
        %v1225 = vmul.f32 %v1199, %v1219
        %v1226 = vmul.f32 %v1202, %v1219
        %v1227 = vmul.f32 %v1207, %v1219
        %v1228 = vmul.f32 %v1210, %v1219
        %s1229 = scalar_lea.vmem %s4, 5
        %v1230 = vld [vmem:[%s1229] sm:$0x1]
        %v1232 = vlaneseq
        %v1233 = vshrl.u32 %v1232, 7
        %v1234 = vsub.s32 0, %v1233
        %v1235 = vrot.slane %v1230, %v1234
        %v1237 = vadd.f32 %v1221, %v1235
        %v1238 = vadd.f32 %v1222, %v1235
        %v1239 = vadd.f32 %v1223, %v1235
        %v1240 = vadd.f32 %v1224, %v1235
        %v1241 = vadd.f32 %v1225, %v1235
        %v1242 = vadd.f32 %v1226, %v1235
        %v1243 = vadd.f32 %v1227, %v1235
        %v1244 = vadd.f32 %v1228, %v1235
        %v1245 = vmax.f32 %v1237, 0.0
        %v1246 = vmax.f32 %v1238, 0.0
        %v1247 = vmax.f32 %v1239, 0.0
        %v1248 = vmax.f32 %v1240, 0.0
        %v1249 = vmax.f32 %v1241, 0.0
        %v1250 = vmax.f32 %v1242, 0.0
        %v1251 = vmax.f32 %v1243, 0.0
        %v1252 = vmax.f32 %v1244, 0.0
        %v1253 = vadd.f32 %v589, %v935
        %v1254 = vadd.f32 %v590, %v936
        %v1255 = vadd.f32 %v591, %v937
        %v1256 = vadd.f32 %v592, %v938
        %v1257 = vadd.f32 %v593, %v939
        %v1258 = vadd.f32 %v594, %v940
        %v1259 = vadd.f32 %v595, %v941
        %v1260 = vadd.f32 %v596, %v942
        %v1261 = vadd.f32 %v597, %v943
        %v1262 = vadd.f32 %v598, %v944
        %v1263 = vadd.f32 %v599, %v945
        %v1264 = vadd.f32 %v600, %v946
        %v1265 = vadd.f32 %v601, %v947
        %v1266 = vadd.f32 %v602, %v948
        %v1267 = vadd.f32 %v603, %v949
        %v1268 = vadd.f32 %v604, %v950
        %v1269 = vadd.f32 %v605, %v951
        %v1270 = vadd.f32 %v606, %v952
        %v1271 = vadd.f32 %v607, %v953
        %v1272 = vadd.f32 %v608, %v954
        %v1273 = vadd.f32 %v609, %v955
        %v1274 = vadd.f32 %v610, %v956
        %v1275 = vadd.f32 %v611, %v957
        %v1276 = vadd.f32 %v612, %v958
        %v1277 = vadd.f32 %v613, %v959
        %v1278 = vadd.f32 %v614, %v960
        %v1279 = vadd.f32 %v615, %v961
        %v1280 = vadd.f32 %v616, %v962
        %v1281 = vadd.f32 %v617, %v963
        %v1282 = vadd.f32 %v618, %v964
        %v1283 = vadd.f32 %v619, %v965
        %v1284 = vadd.f32 %v620, %v966
        %v1285 = vadd.f32 %v1253, %v1245
        %v1286 = vadd.f32 %v1254, %v1245
        %v1287 = vadd.f32 %v1255, %v1246
        %v1288 = vadd.f32 %v1256, %v1246
        %v1289 = vadd.f32 %v1257, %v1247
        %v1290 = vadd.f32 %v1258, %v1247
        %v1291 = vadd.f32 %v1259, %v1248
        %v1292 = vadd.f32 %v1260, %v1248
        %v1293 = vadd.f32 %v1261, %v1249
        %v1294 = vadd.f32 %v1262, %v1249
        %v1295 = vadd.f32 %v1263, %v1250
        %v1296 = vadd.f32 %v1264, %v1250
        %v1297 = vadd.f32 %v1265, %v1251
        %v1298 = vadd.f32 %v1266, %v1251
        %v1299 = vadd.f32 %v1267, %v1252
        %v1300 = vadd.f32 %v1268, %v1252
        %v1301 = vadd.f32 %v1269, %v1245
        %v1302 = vadd.f32 %v1270, %v1245
        %v1303 = vadd.f32 %v1271, %v1246
        %v1304 = vadd.f32 %v1272, %v1246
        %v1305 = vadd.f32 %v1273, %v1247
        %v1306 = vadd.f32 %v1274, %v1247
        %v1307 = vadd.f32 %v1275, %v1248
        %v1308 = vadd.f32 %v1276, %v1248
        %v1309 = vadd.f32 %v1277, %v1249
        %v1310 = vadd.f32 %v1278, %v1249
        %v1311 = vadd.f32 %v1279, %v1250
        %v1312 = vadd.f32 %v1280, %v1250
        %v1313 = vadd.f32 %v1281, %v1251
        %v1314 = vadd.f32 %v1282, %v1251
        %v1315 = vadd.f32 %v1283, %v1252
        %v1316 = vadd.f32 %v1284, %v1252
        %v1317 = vpack.c.bf16 %v1286, %v1285
        %v1318 = vpack.c.bf16 %v1288, %v1287
        %v1319 = vpack.c.bf16 %v1290, %v1289
        %v1320 = vpack.c.bf16 %v1292, %v1291
        %v1321 = vpack.c.bf16 %v1294, %v1293
        %v1322 = vpack.c.bf16 %v1296, %v1295
        %v1323 = vpack.c.bf16 %v1298, %v1297
        %v1324 = vpack.c.bf16 %v1300, %v1299
        %v1325 = vpack.c.bf16 %v1302, %v1301
        %v1326 = vpack.c.bf16 %v1304, %v1303
        %v1327 = vpack.c.bf16 %v1306, %v1305
        %v1328 = vpack.c.bf16 %v1308, %v1307
        %v1329 = vpack.c.bf16 %v1310, %v1309
        %v1330 = vpack.c.bf16 %v1312, %v1311
        %v1331 = vpack.c.bf16 %v1314, %v1313
        %v1332 = vpack.c.bf16 %v1316, %v1315
        %s1333 = scalar_lea.vmem %s2, 24
        %v1334 = vld [vmem:[%s1333] sm:$0xf]
        %v1335 = vld [vmem:[%s1333 + $0x4] sm:$0xf]
        %v1338 = vunpack.c.l.b16 %v1334
        %v1339 = vunpack.c.l.b16 %v1335
        %v1340 = vpack.c.b16 %v1339, %v1338
        %v1343 = vsel %vm300, %v1317, 0
        %v1346 = vsel %vm300, %v1318, 0
        %v1349 = vsel %vm300, %v1319, 0
        %v1352 = vsel %vm300, %v1320, 0
        %v1355 = vsel %vm300, %v1321, 0
        %v1358 = vsel %vm300, %v1322, 0
        %v1361 = vsel %vm300, %v1323, 0
        %v1364 = vsel %vm300, %v1324, 0
        %v1367 = vsel %vm300, %v1325, 0
        %v1370 = vsel %vm300, %v1326, 0
        %v1373 = vsel %vm300, %v1327, 0
        %v1376 = vsel %vm300, %v1328, 0
        %v1379 = vsel %vm300, %v1329, 0
        %v1382 = vsel %vm300, %v1330, 0
        %v1385 = vsel %vm300, %v1331, 0
        %v1388 = vsel %vm300, %v1332, 0
        %1390 = vmatprep.subr.bf16.mxu0 0
        %1391 = vmatpush1.bf16.msra.mxu0 %v1340
        %1392 = vmatprep.subr.bf16.mxu0 0
        %1393 = vmatpush1.bf16.msra.mxu0 0
        %1394 = vmatprep.subr.bf16.mxu0 0
        %1395 = vmatpush1.bf16.msra.mxu0 0
        %1396 = vmatprep.subr.bf16.mxu0 0
        %1397 = vmatpush1.bf16.msra.mxu0 0
        %1398 = vmatprep.subr.bf16.mxu0 0
        %1399 = vmatpush1.bf16.msra.mxu0 0
        %1400 = vmatprep.subr.bf16.mxu0 0
        %1401 = vmatpush1.bf16.msra.mxu0 0
        %1402 = vmatprep.subr.bf16.mxu0 0
        %1403 = vmatpush1.bf16.msra.mxu0 0
        %1404 = vmatprep.subr.bf16.mxu0 0
        %1405 = vmatpush1.bf16.msra.mxu0 0
        %1406 = vmatprep.subr.bf16.mxu0 0
        %1407 = vmatpush1.bf16.msra.mxu0 0
        %1408 = vmatprep.subr.bf16.mxu0 0
        %1409 = vmatpush1.bf16.msra.mxu0 0
        %1410 = vmatprep.subr.bf16.mxu0 0
        %1411 = vmatpush1.bf16.msra.mxu0 0
        %1412 = vmatprep.subr.bf16.mxu0 0
        %1413 = vmatpush1.bf16.msra.mxu0 0
        %1414 = vmatprep.subr.bf16.mxu0 0
        %1415 = vmatpush1.bf16.msra.mxu0 0
        %1416 = vmatprep.subr.bf16.mxu0 0
        %1417 = vmatpush1.bf16.msra.mxu0 0
        %1418 = vmatprep.subr.bf16.mxu0 0
        %1419 = vmatpush1.bf16.msra.mxu0 0
        %1420 = vmatprep.subr.bf16.mxu0 0
        %1421 = vmatpush1.bf16.msra.mxu0 0
        %1422 = vmatprep.mubr.bf16.mxu0 0
        %1423 = vmatmul.mubr.bf16.gmra.mrb[0].mxu0 %v1343
        %v1424 = vpop.f32.mrb[0].mxu0
        %v1425 = vadd.f32 0.0, %v1424
        %v1426 = vpop.f32.mrb[0].mxu0
        %v1427 = vpop.f32.mrb[0].mxu0
        %v1428 = vadd.f32 0.0, %v1427
        %v1429 = vpop.f32.mrb[0].mxu0
        %1430 = vmatprep.mubr.bf16.mxu0 0
        %1431 = vmatmul.mubr.bf16.gmra.mrb[0].mxu0 %v1346
        %v1432 = vpop.f32.mrb[0].mxu0
        %v1433 = vadd.f32 0.0, %v1432
        %v1434 = vpop.f32.mrb[0].mxu0
        %v1435 = vpop.f32.mrb[0].mxu0
        %v1436 = vadd.f32 0.0, %v1435
        %v1437 = vpop.f32.mrb[0].mxu0
        %1438 = vmatprep.mubr.bf16.mxu0 0
        %1439 = vmatmul.mubr.bf16.gmra.mrb[0].mxu0 %v1349
        %v1440 = vpop.f32.mrb[0].mxu0
        %v1441 = vadd.f32 0.0, %v1440
        %v1442 = vpop.f32.mrb[0].mxu0
        %v1443 = vpop.f32.mrb[0].mxu0
        %v1444 = vadd.f32 0.0, %v1443
        %v1445 = vpop.f32.mrb[0].mxu0
        %1446 = vmatprep.mubr.bf16.mxu0 0
        %1447 = vmatmul.mubr.bf16.gmra.mrb[0].mxu0 %v1352
        %v1448 = vpop.f32.mrb[0].mxu0
        %v1449 = vadd.f32 0.0, %v1448
        %v1450 = vpop.f32.mrb[0].mxu0
        %v1451 = vpop.f32.mrb[0].mxu0
        %v1452 = vadd.f32 0.0, %v1451
        %v1453 = vpop.f32.mrb[0].mxu0
        %1454 = vmatprep.mubr.bf16.mxu0 0
        %1455 = vmatmul.mubr.bf16.gmra.mrb[0].mxu0 %v1355
        %v1456 = vpop.f32.mrb[0].mxu0
        %v1457 = vadd.f32 0.0, %v1456
        %v1458 = vpop.f32.mrb[0].mxu0
        %v1459 = vpop.f32.mrb[0].mxu0
        %v1460 = vadd.f32 0.0, %v1459
        %v1461 = vpop.f32.mrb[0].mxu0
        %1462 = vmatprep.mubr.bf16.mxu0 0
        %1463 = vmatmul.mubr.bf16.gmra.mrb[0].mxu0 %v1358
        %v1464 = vpop.f32.mrb[0].mxu0
        %v1465 = vadd.f32 0.0, %v1464
        %v1466 = vpop.f32.mrb[0].mxu0
        %v1467 = vpop.f32.mrb[0].mxu0
        %v1468 = vadd.f32 0.0, %v1467
        %v1469 = vpop.f32.mrb[0].mxu0
        %1470 = vmatprep.mubr.bf16.mxu0 0
        %1471 = vmatmul.mubr.bf16.gmra.mrb[0].mxu0 %v1361
        %v1472 = vpop.f32.mrb[0].mxu0
        %v1473 = vadd.f32 0.0, %v1472
        %v1474 = vpop.f32.mrb[0].mxu0
        %v1475 = vpop.f32.mrb[0].mxu0
        %v1476 = vadd.f32 0.0, %v1475
        %v1477 = vpop.f32.mrb[0].mxu0
        %1478 = vmatprep.mubr.bf16.mxu0 0
        %1479 = vmatmul.mubr.bf16.gmra.mrb[0].mxu0 %v1364
        %v1480 = vpop.f32.mrb[0].mxu0
        %v1481 = vadd.f32 0.0, %v1480
        %v1482 = vpop.f32.mrb[0].mxu0
        %v1483 = vpop.f32.mrb[0].mxu0
        %v1484 = vadd.f32 0.0, %v1483
        %v1485 = vpop.f32.mrb[0].mxu0
        %1486 = vmatprep.mubr.bf16.mxu0 0
        %1487 = vmatmul.mubr.bf16.gmra.mrb[0].mxu0 %v1367
        %v1488 = vpop.f32.mrb[0].mxu0
        %v1489 = vadd.f32 0.0, %v1488
        %v1490 = vpop.f32.mrb[0].mxu0
        %v1491 = vpop.f32.mrb[0].mxu0
        %v1492 = vadd.f32 0.0, %v1491
        %v1493 = vpop.f32.mrb[0].mxu0
        %1494 = vmatprep.mubr.bf16.mxu0 0
        %1495 = vmatmul.mubr.bf16.gmra.mrb[0].mxu0 %v1370
        %v1496 = vpop.f32.mrb[0].mxu0
        %v1497 = vadd.f32 0.0, %v1496
        %v1498 = vpop.f32.mrb[0].mxu0
        %v1499 = vpop.f32.mrb[0].mxu0
        %v1500 = vadd.f32 0.0, %v1499
        %v1501 = vpop.f32.mrb[0].mxu0
        %1502 = vmatprep.mubr.bf16.mxu0 0
        %1503 = vmatmul.mubr.bf16.gmra.mrb[0].mxu0 %v1373
        %v1504 = vpop.f32.mrb[0].mxu0
        %v1505 = vadd.f32 0.0, %v1504
        %v1506 = vpop.f32.mrb[0].mxu0
        %v1507 = vpop.f32.mrb[0].mxu0
        %v1508 = vadd.f32 0.0, %v1507
        %v1509 = vpop.f32.mrb[0].mxu0
        %1510 = vmatprep.mubr.bf16.mxu0 0
        %1511 = vmatmul.mubr.bf16.gmra.mrb[0].mxu0 %v1376
        %v1512 = vpop.f32.mrb[0].mxu0
        %v1513 = vadd.f32 0.0, %v1512
        %v1514 = vpop.f32.mrb[0].mxu0
        %v1515 = vpop.f32.mrb[0].mxu0
        %v1516 = vadd.f32 0.0, %v1515
        %v1517 = vpop.f32.mrb[0].mxu0
        %1518 = vmatprep.mubr.bf16.mxu0 0
        %1519 = vmatmul.mubr.bf16.gmra.mrb[0].mxu0 %v1379
        %v1520 = vpop.f32.mrb[0].mxu0
        %v1521 = vadd.f32 0.0, %v1520
        %v1522 = vpop.f32.mrb[0].mxu0
        %v1523 = vpop.f32.mrb[0].mxu0
        %v1524 = vadd.f32 0.0, %v1523
        %v1525 = vpop.f32.mrb[0].mxu0
        %1526 = vmatprep.mubr.bf16.mxu0 0
        %1527 = vmatmul.mubr.bf16.gmra.mrb[0].mxu0 %v1382
        %v1528 = vpop.f32.mrb[0].mxu0
        %v1529 = vadd.f32 0.0, %v1528
        %v1530 = vpop.f32.mrb[0].mxu0
        %v1531 = vpop.f32.mrb[0].mxu0
        %v1532 = vadd.f32 0.0, %v1531
        %v1533 = vpop.f32.mrb[0].mxu0
        %1534 = vmatprep.mubr.bf16.mxu0 0
        %1535 = vmatmul.mubr.bf16.gmra.mrb[0].mxu0 %v1385
        %v1536 = vpop.f32.mrb[0].mxu0
        %v1537 = vadd.f32 0.0, %v1536
        %v1538 = vpop.f32.mrb[0].mxu0
        %v1539 = vpop.f32.mrb[0].mxu0
        %v1540 = vadd.f32 0.0, %v1539
        %v1541 = vpop.f32.mrb[0].mxu0
        %1542 = vmatprep.mubr.bf16.mxu0 0
        %1543 = vmatmul.mubr.bf16.gmra.mrb[0].mxu0 %v1388
        %v1544 = vpop.f32.mrb[0].mxu0
        %v1545 = vadd.f32 0.0, %v1544
        %v1546 = vpop.f32.mrb[0].mxu0
        %v1547 = vpop.f32.mrb[0].mxu0
        %v1548 = vadd.f32 0.0, %v1547
        %v1549 = vpop.f32.mrb[0].mxu0
        %1550 = vdwg.mxu0
        %v1567 = vrot.slane %v246, 1
        %v1568 = vrot.slane %v244, 1
        %v1569 = vrot.slane %v248, 1
        %v1570 = vrot.slane %v250, 1
        %v1571 = vrot.slane %v252, 1
        %v1572 = vrot.slane %v254, 1
        %v1573 = vrot.slane %v256, 1
        %v1574 = vrot.slane %v258, 1
        %v1575 = vrot.slane %v260, 1
        %v1576 = vrot.slane %v262, 1
        %v1577 = vrot.slane %v264, 1
        %v1578 = vrot.slane %v266, 1
        %v1579 = vrot.slane %v268, 1
        %v1580 = vrot.slane %v270, 1
        %v1581 = vrot.slane %v272, 1
        %v1582 = vrot.slane %v274, 1
        %vm1615 = vcmask 1040384
        %v1616 = vrot.slane %v246, 7
        %v1617 = vrot.slane %v247, 7
        %v1618 = vsel %vm1615, %v1616, %v1617
        %v1619 = vrot.slane %v244, 7
        %v1620 = vrot.slane %v245, 7
        %v1621 = vsel %vm1615, %v1619, %v1620
        %v1622 = vrot.slane %v248, 7
        %v1623 = vrot.slane %v249, 7
        %v1624 = vsel %vm1615, %v1622, %v1623
        %v1625 = vrot.slane %v250, 7
        %v1626 = vrot.slane %v251, 7
        %v1627 = vsel %vm1615, %v1625, %v1626
        %v1628 = vrot.slane %v252, 7
        %v1629 = vrot.slane %v253, 7
        %v1630 = vsel %vm1615, %v1628, %v1629
        %v1631 = vrot.slane %v254, 7
        %v1632 = vrot.slane %v255, 7
        %v1633 = vsel %vm1615, %v1631, %v1632
        %v1634 = vrot.slane %v256, 7
        %v1635 = vrot.slane %v257, 7
        %v1636 = vsel %vm1615, %v1634, %v1635
        %v1637 = vrot.slane %v258, 7
        %v1638 = vrot.slane %v259, 7
        %v1639 = vsel %vm1615, %v1637, %v1638
        %v1640 = vrot.slane %v260, 7
        %v1641 = vrot.slane %v261, 7
        %v1642 = vsel %vm1615, %v1640, %v1641
        %v1643 = vrot.slane %v262, 7
        %v1644 = vrot.slane %v263, 7
        %v1645 = vsel %vm1615, %v1643, %v1644
        %v1646 = vrot.slane %v264, 7
        %v1647 = vrot.slane %v265, 7
        %v1648 = vsel %vm1615, %v1646, %v1647
        %v1649 = vrot.slane %v266, 7
        %v1650 = vrot.slane %v267, 7
        %v1651 = vsel %vm1615, %v1649, %v1650
        %v1652 = vrot.slane %v268, 7
        %v1653 = vrot.slane %v269, 7
        %v1654 = vsel %vm1615, %v1652, %v1653
        %v1655 = vrot.slane %v270, 7
        %v1656 = vrot.slane %v271, 7
        %v1657 = vsel %vm1615, %v1655, %v1656
        %v1658 = vrot.slane %v272, 7
        %v1659 = vrot.slane %v273, 7
        %v1660 = vsel %vm1615, %v1658, %v1659
        %v1661 = vrot.slane %v274, 7
        %v1662 = vrot.slane %v275, 7
        %v1663 = vsel %vm1615, %v1661, %v1662
        %v1712 = vrot.slane %v247, 5
        %v1713 = vrot.slane %v245, 5
        %v1714 = vrot.slane %v249, 5
        %v1715 = vrot.slane %v251, 5
        %v1716 = vrot.slane %v253, 5
        %v1717 = vrot.slane %v255, 5
        %v1718 = vrot.slane %v257, 5
        %v1719 = vrot.slane %v259, 5
        %v1720 = vrot.slane %v261, 5
        %v1721 = vrot.slane %v263, 5
        %v1722 = vrot.slane %v265, 5
        %v1723 = vrot.slane %v267, 5
        %v1724 = vrot.slane %v269, 5
        %v1725 = vrot.slane %v271, 5
        %v1726 = vrot.slane %v273, 5
        %v1727 = vrot.slane %v275, 5
        %v1744 = vsel %vm1615, %v1567, %v1616
        %v1745 = vsel %vm1615, %v1568, %v1619
        %v1746 = vsel %vm1615, %v1569, %v1622
        %v1747 = vsel %vm1615, %v1570, %v1625
        %v1748 = vsel %vm1615, %v1571, %v1628
        %v1749 = vsel %vm1615, %v1572, %v1631
        %v1750 = vsel %vm1615, %v1573, %v1634
        %v1751 = vsel %vm1615, %v1574, %v1637
        %v1752 = vsel %vm1615, %v1575, %v1640
        %v1753 = vsel %vm1615, %v1576, %v1643
        %v1754 = vsel %vm1615, %v1577, %v1646
        %v1755 = vsel %vm1615, %v1578, %v1649
        %v1756 = vsel %vm1615, %v1579, %v1652
        %v1757 = vsel %vm1615, %v1580, %v1655
        %v1758 = vsel %vm1615, %v1581, %v1658
        %v1759 = vsel %vm1615, %v1582, %v1661
        %v1760 = vsel %vm1615, %v1617, %v1712
        %v1761 = vsel %vm1615, %v1620, %v1713
        %v1762 = vsel %vm1615, %v1623, %v1714
        %v1763 = vsel %vm1615, %v1626, %v1715
        %v1764 = vsel %vm1615, %v1629, %v1716
        %v1765 = vsel %vm1615, %v1632, %v1717
        %v1766 = vsel %vm1615, %v1635, %v1718
        %v1767 = vsel %vm1615, %v1638, %v1719
        %v1768 = vsel %vm1615, %v1641, %v1720
        %v1769 = vsel %vm1615, %v1644, %v1721
        %v1770 = vsel %vm1615, %v1647, %v1722
        %v1771 = vsel %vm1615, %v1650, %v1723
        %v1772 = vsel %vm1615, %v1653, %v1724
        %v1773 = vsel %vm1615, %v1656, %v1725
        %v1774 = vsel %vm1615, %v1659, %v1726
        %v1775 = vsel %vm1615, %v1662, %v1727
        %v1776 = vpack.c.bf16 %v1618, %v1744
        %v1777 = vpack.c.bf16 %v1760, %v1760
        %v1778 = vpack.c.bf16 %v1621, %v1745
        %v1779 = vpack.c.bf16 %v1761, %v1761
        %v1780 = vpack.c.bf16 %v1624, %v1746
        %v1781 = vpack.c.bf16 %v1762, %v1762
        %v1782 = vpack.c.bf16 %v1627, %v1747
        %v1783 = vpack.c.bf16 %v1763, %v1763
        %v1784 = vpack.c.bf16 %v1630, %v1748
        %v1785 = vpack.c.bf16 %v1764, %v1764
        %v1786 = vpack.c.bf16 %v1633, %v1749
        %v1787 = vpack.c.bf16 %v1765, %v1765
        %v1788 = vpack.c.bf16 %v1636, %v1750
        %v1789 = vpack.c.bf16 %v1766, %v1766
        %v1790 = vpack.c.bf16 %v1639, %v1751
        %v1791 = vpack.c.bf16 %v1767, %v1767
        %v1792 = vpack.c.bf16 %v1642, %v1752
        %v1793 = vpack.c.bf16 %v1768, %v1768
        %v1794 = vpack.c.bf16 %v1645, %v1753
        %v1795 = vpack.c.bf16 %v1769, %v1769
        %v1796 = vpack.c.bf16 %v1648, %v1754
        %v1797 = vpack.c.bf16 %v1770, %v1770
        %v1798 = vpack.c.bf16 %v1651, %v1755
        %v1799 = vpack.c.bf16 %v1771, %v1771
        %v1800 = vpack.c.bf16 %v1654, %v1756
        %v1801 = vpack.c.bf16 %v1772, %v1772
        %v1802 = vpack.c.bf16 %v1657, %v1757
        %v1803 = vpack.c.bf16 %v1773, %v1773
        %v1804 = vpack.c.bf16 %v1660, %v1758
        %v1805 = vpack.c.bf16 %v1774, %v1774
        %v1806 = vpack.c.bf16 %v1663, %v1759
        %v1807 = vpack.c.bf16 %v1775, %v1775
        %vm1808 = vsmask.f32 7424
        %v1810 = vshrl.u32 %v1776, 16
        %v1812 = vshll.u32 %v1776, 16
        %v1814 = vrot.slane %v1812, 1
        %v1815 = vor.u32 %v1810, %v1814
        %v1817 = vshll.u32 %v1777, 16
        %v1819 = vrot.slane %v1817, 1
        %v1820 = vsel %vm1808, %v1815, %v1819
        %v1822 = vshrl.u32 %v1778, 16
        %v1824 = vshll.u32 %v1778, 16
        %v1826 = vrot.slane %v1824, 1
        %v1827 = vor.u32 %v1822, %v1826
        %v1829 = vshll.u32 %v1779, 16
        %v1831 = vrot.slane %v1829, 1
        %v1832 = vsel %vm1808, %v1827, %v1831
        %v1834 = vshrl.u32 %v1780, 16
        %v1836 = vshll.u32 %v1780, 16
        %v1838 = vrot.slane %v1836, 1
        %v1839 = vor.u32 %v1834, %v1838
        %v1841 = vshll.u32 %v1781, 16
        %v1843 = vrot.slane %v1841, 1
        %v1844 = vsel %vm1808, %v1839, %v1843
        %v1846 = vshrl.u32 %v1782, 16
        %v1848 = vshll.u32 %v1782, 16
        %v1850 = vrot.slane %v1848, 1
        %v1851 = vor.u32 %v1846, %v1850
        %v1853 = vshll.u32 %v1783, 16
        %v1855 = vrot.slane %v1853, 1
        %v1856 = vsel %vm1808, %v1851, %v1855
        %v1858 = vshrl.u32 %v1784, 16
        %v1860 = vshll.u32 %v1784, 16
        %v1862 = vrot.slane %v1860, 1
        %v1863 = vor.u32 %v1858, %v1862
        %v1865 = vshll.u32 %v1785, 16
        %v1867 = vrot.slane %v1865, 1
        %v1868 = vsel %vm1808, %v1863, %v1867
        %v1870 = vshrl.u32 %v1786, 16
        %v1872 = vshll.u32 %v1786, 16
        %v1874 = vrot.slane %v1872, 1
        %v1875 = vor.u32 %v1870, %v1874
        %v1877 = vshll.u32 %v1787, 16
        %v1879 = vrot.slane %v1877, 1
        %v1880 = vsel %vm1808, %v1875, %v1879
        %v1882 = vshrl.u32 %v1788, 16
        %v1884 = vshll.u32 %v1788, 16
        %v1886 = vrot.slane %v1884, 1
        %v1887 = vor.u32 %v1882, %v1886
        %v1889 = vshll.u32 %v1789, 16
        %v1891 = vrot.slane %v1889, 1
        %v1892 = vsel %vm1808, %v1887, %v1891
        %v1894 = vshrl.u32 %v1790, 16
        %v1896 = vshll.u32 %v1790, 16
        %v1898 = vrot.slane %v1896, 1
        %v1899 = vor.u32 %v1894, %v1898
        %v1901 = vshll.u32 %v1791, 16
        %v1903 = vrot.slane %v1901, 1
        %v1904 = vsel %vm1808, %v1899, %v1903
        %v1906 = vshrl.u32 %v1792, 16
        %v1908 = vshll.u32 %v1792, 16
        %v1910 = vrot.slane %v1908, 1
        %v1911 = vor.u32 %v1906, %v1910
        %v1913 = vshll.u32 %v1793, 16
        %v1915 = vrot.slane %v1913, 1
        %v1916 = vsel %vm1808, %v1911, %v1915
        %v1918 = vshrl.u32 %v1794, 16
        %v1920 = vshll.u32 %v1794, 16
        %v1922 = vrot.slane %v1920, 1
        %v1923 = vor.u32 %v1918, %v1922
        %v1925 = vshll.u32 %v1795, 16
        %v1927 = vrot.slane %v1925, 1
        %v1928 = vsel %vm1808, %v1923, %v1927
        %v1930 = vshrl.u32 %v1796, 16
        %v1932 = vshll.u32 %v1796, 16
        %v1934 = vrot.slane %v1932, 1
        %v1935 = vor.u32 %v1930, %v1934
        %v1937 = vshll.u32 %v1797, 16
        %v1939 = vrot.slane %v1937, 1
        %v1940 = vsel %vm1808, %v1935, %v1939
        %v1942 = vshrl.u32 %v1798, 16
        %v1944 = vshll.u32 %v1798, 16
        %v1946 = vrot.slane %v1944, 1
        %v1947 = vor.u32 %v1942, %v1946
        %v1949 = vshll.u32 %v1799, 16
        %v1951 = vrot.slane %v1949, 1
        %v1952 = vsel %vm1808, %v1947, %v1951
        %v1954 = vshrl.u32 %v1800, 16
        %v1956 = vshll.u32 %v1800, 16
        %v1958 = vrot.slane %v1956, 1
        %v1959 = vor.u32 %v1954, %v1958
        %v1961 = vshll.u32 %v1801, 16
        %v1963 = vrot.slane %v1961, 1
        %v1964 = vsel %vm1808, %v1959, %v1963
        %v1966 = vshrl.u32 %v1802, 16
        %v1968 = vshll.u32 %v1802, 16
        %v1970 = vrot.slane %v1968, 1
        %v1971 = vor.u32 %v1966, %v1970
        %v1973 = vshll.u32 %v1803, 16
        %v1975 = vrot.slane %v1973, 1
        %v1976 = vsel %vm1808, %v1971, %v1975
        %v1978 = vshrl.u32 %v1804, 16
        %v1980 = vshll.u32 %v1804, 16
        %v1982 = vrot.slane %v1980, 1
        %v1983 = vor.u32 %v1978, %v1982
        %v1985 = vshll.u32 %v1805, 16
        %v1987 = vrot.slane %v1985, 1
        %v1988 = vsel %vm1808, %v1983, %v1987
        %v1990 = vshrl.u32 %v1806, 16
        %v1992 = vshll.u32 %v1806, 16
        %v1994 = vrot.slane %v1992, 1
        %v1995 = vor.u32 %v1990, %v1994
        %v1997 = vshll.u32 %v1807, 16
        %v1999 = vrot.slane %v1997, 1
        %v2000 = vsel %vm1808, %v1995, %v1999
        %2001 = vrot.lane.b32.xlu0 %v1820, 16
        %v2002 = vpop.permute.xlu0 %2001
        %2003 = vrot.lane.b32.xlu0 %v1832, 16
        %v2004 = vpop.permute.xlu0 %2003
        %2005 = vrot.lane.b32.xlu0 %v1844, 16
        %v2006 = vpop.permute.xlu0 %2005
        %2007 = vrot.lane.b32.xlu0 %v1856, 16
        %v2008 = vpop.permute.xlu0 %2007
        %2009 = vrot.lane.b32.xlu0 %v1868, 16
        %v2010 = vpop.permute.xlu0 %2009
        %2011 = vrot.lane.b32.xlu0 %v1880, 16
        %v2012 = vpop.permute.xlu0 %2011
        %2013 = vrot.lane.b32.xlu0 %v1892, 16
        %v2014 = vpop.permute.xlu0 %2013
        %2015 = vrot.lane.b32.xlu0 %v1904, 16
        %v2016 = vpop.permute.xlu0 %2015
        %2017 = vrot.lane.b32.xlu0 %v1916, 16
        %v2018 = vpop.permute.xlu0 %2017
        %2019 = vrot.lane.b32.xlu0 %v1928, 16
        %v2020 = vpop.permute.xlu0 %2019
        %2021 = vrot.lane.b32.xlu0 %v1940, 16
        %v2022 = vpop.permute.xlu0 %2021
        %2023 = vrot.lane.b32.xlu0 %v1952, 16
        %v2024 = vpop.permute.xlu0 %2023
        %2025 = vrot.lane.b32.xlu0 %v1964, 16
        %v2026 = vpop.permute.xlu0 %2025
        %2027 = vrot.lane.b32.xlu0 %v1976, 16
        %v2028 = vpop.permute.xlu0 %2027
        %2029 = vrot.lane.b32.xlu0 %v1988, 16
        %v2030 = vpop.permute.xlu0 %2029
        %2031 = vrot.lane.b32.xlu0 %v2000, 16
        %v2032 = vpop.permute.xlu0 %2031
        %vm2065 = vcmask 1046528
        %v2066 = vrot.slane %v1776, 1
        %v2067 = vrot.slane %v1777, 1
        %v2068 = vsel %vm2065, %v2066, %v2067
        %v2069 = vrot.slane %v1778, 1
        %v2070 = vrot.slane %v1779, 1
        %v2071 = vsel %vm2065, %v2069, %v2070
        %v2072 = vrot.slane %v1780, 1
        %v2073 = vrot.slane %v1781, 1
        %v2074 = vsel %vm2065, %v2072, %v2073
        %v2075 = vrot.slane %v1782, 1
        %v2076 = vrot.slane %v1783, 1
        %v2077 = vsel %vm2065, %v2075, %v2076
        %v2078 = vrot.slane %v1784, 1
        %v2079 = vrot.slane %v1785, 1
        %v2080 = vsel %vm2065, %v2078, %v2079
        %v2081 = vrot.slane %v1786, 1
        %v2082 = vrot.slane %v1787, 1
        %v2083 = vsel %vm2065, %v2081, %v2082
        %v2084 = vrot.slane %v1788, 1
        %v2085 = vrot.slane %v1789, 1
        %v2086 = vsel %vm2065, %v2084, %v2085
        %v2087 = vrot.slane %v1790, 1
        %v2088 = vrot.slane %v1791, 1
        %v2089 = vsel %vm2065, %v2087, %v2088
        %v2090 = vrot.slane %v1792, 1
        %v2091 = vrot.slane %v1793, 1
        %v2092 = vsel %vm2065, %v2090, %v2091
        %v2093 = vrot.slane %v1794, 1
        %v2094 = vrot.slane %v1795, 1
        %v2095 = vsel %vm2065, %v2093, %v2094
        %v2096 = vrot.slane %v1796, 1
        %v2097 = vrot.slane %v1797, 1
        %v2098 = vsel %vm2065, %v2096, %v2097
        %v2099 = vrot.slane %v1798, 1
        %v2100 = vrot.slane %v1799, 1
        %v2101 = vsel %vm2065, %v2099, %v2100
        %v2102 = vrot.slane %v1800, 1
        %v2103 = vrot.slane %v1801, 1
        %v2104 = vsel %vm2065, %v2102, %v2103
        %v2105 = vrot.slane %v1802, 1
        %v2106 = vrot.slane %v1803, 1
        %v2107 = vsel %vm2065, %v2105, %v2106
        %v2108 = vrot.slane %v1804, 1
        %v2109 = vrot.slane %v1805, 1
        %v2110 = vsel %vm2065, %v2108, %v2109
        %v2111 = vrot.slane %v1806, 1
        %v2112 = vrot.slane %v1807, 1
        %v2113 = vsel %vm2065, %v2111, %v2112
        %2114 = vrot.lane.b32.xlu0 %v2068, 32
        %v2115 = vpop.permute.xlu0 %2114
        %2116 = vrot.lane.b32.xlu0 %v2071, 32
        %v2117 = vpop.permute.xlu0 %2116
        %2118 = vrot.lane.b32.xlu0 %v2074, 32
        %v2119 = vpop.permute.xlu0 %2118
        %2120 = vrot.lane.b32.xlu0 %v2077, 32
        %v2121 = vpop.permute.xlu0 %2120
        %2122 = vrot.lane.b32.xlu0 %v2080, 32
        %v2123 = vpop.permute.xlu0 %2122
        %2124 = vrot.lane.b32.xlu0 %v2083, 32
        %v2125 = vpop.permute.xlu0 %2124
        %2126 = vrot.lane.b32.xlu0 %v2086, 32
        %v2127 = vpop.permute.xlu0 %2126
        %2128 = vrot.lane.b32.xlu0 %v2089, 32
        %v2129 = vpop.permute.xlu0 %2128
        %2130 = vrot.lane.b32.xlu0 %v2092, 32
        %v2131 = vpop.permute.xlu0 %2130
        %2132 = vrot.lane.b32.xlu0 %v2095, 32
        %v2133 = vpop.permute.xlu0 %2132
        %2134 = vrot.lane.b32.xlu0 %v2098, 32
        %v2135 = vpop.permute.xlu0 %2134
        %2136 = vrot.lane.b32.xlu0 %v2101, 32
        %v2137 = vpop.permute.xlu0 %2136
        %2138 = vrot.lane.b32.xlu0 %v2104, 32
        %v2139 = vpop.permute.xlu0 %2138
        %2140 = vrot.lane.b32.xlu0 %v2107, 32
        %v2141 = vpop.permute.xlu0 %2140
        %2142 = vrot.lane.b32.xlu0 %v2110, 32
        %v2143 = vpop.permute.xlu0 %2142
        %2144 = vrot.lane.b32.xlu0 %v2113, 32
        %v2145 = vpop.permute.xlu0 %2144
        %v2147 = vsel %vm300, %v1776, %v2002
        %v2149 = vsel %vm300, %v1778, %v2004
        %v2151 = vsel %vm300, %v1780, %v2006
        %v2153 = vsel %vm300, %v1782, %v2008
        %v2155 = vsel %vm300, %v1784, %v2010
        %v2157 = vsel %vm300, %v1786, %v2012
        %v2159 = vsel %vm300, %v1788, %v2014
        %v2161 = vsel %vm300, %v1790, %v2016
        %v2163 = vsel %vm300, %v1792, %v2018
        %v2165 = vsel %vm300, %v1794, %v2020
        %v2167 = vsel %vm300, %v1796, %v2022
        %v2169 = vsel %vm300, %v1798, %v2024
        %v2171 = vsel %vm300, %v1800, %v2026
        %v2173 = vsel %vm300, %v1802, %v2028
        %v2175 = vsel %vm300, %v1804, %v2030
        %v2177 = vsel %vm300, %v1806, %v2032
        %vm2178 = vcmask 261120
        %v2180 = vsel %vm2178, %v2147, %v2115
        %v2182 = vsel %vm2178, %v2149, %v2117
        %v2184 = vsel %vm2178, %v2151, %v2119
        %v2186 = vsel %vm2178, %v2153, %v2121
        %v2188 = vsel %vm2178, %v2155, %v2123
        %v2190 = vsel %vm2178, %v2157, %v2125
        %v2192 = vsel %vm2178, %v2159, %v2127
        %v2194 = vsel %vm2178, %v2161, %v2129
        %v2196 = vsel %vm2178, %v2163, %v2131
        %v2198 = vsel %vm2178, %v2165, %v2133
        %v2200 = vsel %vm2178, %v2167, %v2135
        %v2202 = vsel %vm2178, %v2169, %v2137
        %v2204 = vsel %vm2178, %v2171, %v2139
        %v2206 = vsel %vm2178, %v2173, %v2141
        %v2208 = vsel %vm2178, %v2175, %v2143
        %v2210 = vsel %vm2178, %v2177, %v2145
        %2227 = vrot.lane.b32.xlu0 %v2182, 48
        %v2228 = vpop.permute.xlu0 %2227
        %2229 = vrot.lane.b32.xlu0 %v2180, 48
        %v2230 = vpop.permute.xlu0 %2229
        %2231 = vrot.lane.b32.xlu0 %v2184, 48
        %v2232 = vpop.permute.xlu0 %2231
        %2233 = vrot.lane.b32.xlu0 %v2186, 48
        %v2234 = vpop.permute.xlu0 %2233
        %2235 = vrot.lane.b32.xlu0 %v2188, 48
        %v2236 = vpop.permute.xlu0 %2235
        %2237 = vrot.lane.b32.xlu0 %v2190, 48
        %v2238 = vpop.permute.xlu0 %2237
        %2239 = vrot.lane.b32.xlu0 %v2192, 48
        %v2240 = vpop.permute.xlu0 %2239
        %2241 = vrot.lane.b32.xlu0 %v2194, 48
        %v2242 = vpop.permute.xlu0 %2241
        %2243 = vrot.lane.b32.xlu0 %v2196, 48
        %v2244 = vpop.permute.xlu0 %2243
        %2245 = vrot.lane.b32.xlu0 %v2198, 48
        %v2246 = vpop.permute.xlu0 %2245
        %2247 = vrot.lane.b32.xlu0 %v2200, 48
        %v2248 = vpop.permute.xlu0 %2247
        %2249 = vrot.lane.b32.xlu0 %v2202, 48
        %v2250 = vpop.permute.xlu0 %2249
        %2251 = vrot.lane.b32.xlu0 %v2204, 48
        %v2252 = vpop.permute.xlu0 %2251
        %2253 = vrot.lane.b32.xlu0 %v2206, 48
        %v2254 = vpop.permute.xlu0 %2253
        %2255 = vrot.lane.b32.xlu0 %v2208, 48
        %v2256 = vpop.permute.xlu0 %2255
        %2257 = vrot.lane.b32.xlu0 %v2210, 48
        %v2258 = vpop.permute.xlu0 %2257
        %2259 = vrot.lane.b32.xlu0 %v2180, 96
        %v2260 = vpop.permute.xlu0 %2259
        %2261 = vrot.lane.b32.xlu0 %v2184, 96
        %v2262 = vpop.permute.xlu0 %2261
        %2263 = vrot.lane.b32.xlu0 %v2186, 96
        %v2264 = vpop.permute.xlu0 %2263
        %2265 = vrot.lane.b32.xlu0 %v2188, 96
        %v2266 = vpop.permute.xlu0 %2265
        %2267 = vrot.lane.b32.xlu0 %v2190, 96
        %v2268 = vpop.permute.xlu0 %2267
        %2269 = vrot.lane.b32.xlu0 %v2192, 96
        %v2270 = vpop.permute.xlu0 %2269
        %2271 = vrot.lane.b32.xlu0 %v2194, 96
        %v2272 = vpop.permute.xlu0 %2271
        %2273 = vrot.lane.b32.xlu0 %v2196, 96
        %v2274 = vpop.permute.xlu0 %2273
        %2275 = vrot.lane.b32.xlu0 %v2198, 96
        %v2276 = vpop.permute.xlu0 %2275
        %2277 = vrot.lane.b32.xlu0 %v2200, 96
        %v2278 = vpop.permute.xlu0 %2277
        %2279 = vrot.lane.b32.xlu0 %v2202, 96
        %v2280 = vpop.permute.xlu0 %2279
        %2281 = vrot.lane.b32.xlu0 %v2204, 96
        %v2282 = vpop.permute.xlu0 %2281
        %2283 = vrot.lane.b32.xlu0 %v2206, 96
        %v2284 = vpop.permute.xlu0 %2283
        %2285 = vrot.lane.b32.xlu0 %v2208, 96
        %v2286 = vpop.permute.xlu0 %2285
        %2287 = vrot.lane.b32.xlu0 %v2210, 96
        %v2288 = vpop.permute.xlu0 %2287
        %vm2289 = vcmask 392192
        %v2291 = vsel %vm2289, %v2180, %v2228
        %v2293 = vsel %vm2289, %v2182, %v2230
        %v2295 = vsel %vm2289, %v2180, %v2232
        %v2297 = vsel %vm2289, %v2184, %v2234
        %v2299 = vsel %vm2289, %v2186, %v2236
        %v2301 = vsel %vm2289, %v2188, %v2238
        %v2303 = vsel %vm2289, %v2190, %v2240
        %v2305 = vsel %vm2289, %v2192, %v2242
        %v2307 = vsel %vm2289, %v2194, %v2244
        %v2309 = vsel %vm2289, %v2196, %v2246
        %v2311 = vsel %vm2289, %v2198, %v2248
        %v2313 = vsel %vm2289, %v2200, %v2250
        %v2315 = vsel %vm2289, %v2202, %v2252
        %v2317 = vsel %vm2289, %v2204, %v2254
        %v2319 = vsel %vm2289, %v2206, %v2256
        %v2321 = vsel %vm2289, %v2208, %v2258
        %vm2322 = vcmask 785408
        %v2324 = vsel %vm2322, %v2291, %v2260
        %v2327 = vsel %vm2322, %v2293, %v2262
        %v2330 = vsel %vm2322, %v2295, %v2264
        %v2333 = vsel %vm2322, %v2297, %v2266
        %v2336 = vsel %vm2322, %v2299, %v2268
        %v2339 = vsel %vm2322, %v2301, %v2270
        %v2342 = vsel %vm2322, %v2303, %v2272
        %v2345 = vsel %vm2322, %v2305, %v2274
        %v2348 = vsel %vm2322, %v2307, %v2276
        %v2351 = vsel %vm2322, %v2309, %v2278
        %v2354 = vsel %vm2322, %v2311, %v2280
        %v2357 = vsel %vm2322, %v2313, %v2282
        %v2360 = vsel %vm2322, %v2315, %v2284
        %v2363 = vsel %vm2322, %v2317, %v2286
        %v2366 = vsel %vm2322, %v2319, %v2288
        %v2368 = vsel %vm2322, %v2321, %v2286
        %v2370 = vld [vmem:[%s1] sm:$0xf]
        %v2371 = vld [vmem:[%s1 + $0x4] sm:$0xf]
        %v2372 = vld [vmem:[%s1 + $0x8] sm:$0xf]
        %v2373 = vld [vmem:[%s1 + $0xc] sm:$0xf]
        %v2374 = vld [vmem:[%s1 + $0x10] sm:$0xf]
        %v2375 = vld [vmem:[%s1 + $0x14] sm:$0xf]
        %v2376 = vld [vmem:[%s1 + $0x18] sm:$0xf]
        %v2377 = vld [vmem:[%s1 + $0x1c] sm:$0xf]
        %v2378 = vld [vmem:[%s1 + $0x20] sm:$0xf]
        %v2379 = vld [vmem:[%s1 + $0x24] sm:$0xf]
        %v2380 = vld [vmem:[%s1 + $0x28] sm:$0xf]
        %v2381 = vld [vmem:[%s1 + $0x2c] sm:$0xf]
        %v2382 = vld [vmem:[%s1 + $0x30] sm:$0xf]
        %v2383 = vld [vmem:[%s1 + $0x34] sm:$0xf]
        %v2384 = vld [vmem:[%s1 + $0x38] sm:$0xf]
        %v2385 = vld [vmem:[%s1 + $0x3c] sm:$0xf]
        %v2386 = vld [vmem:[%s1 + $0x40] sm:$0xf]
        %v2387 = vld [vmem:[%s1 + $0x44] sm:$0xf]
        %v2406 = vunpack.c.l.b16 %v2370
        %v2407 = vunpack.c.l.b16 %v2371
        %v2408 = vunpack.c.l.b16 %v2372
        %v2409 = vunpack.c.l.b16 %v2373
        %v2410 = vunpack.c.l.b16 %v2374
        %v2411 = vunpack.c.l.b16 %v2375
        %v2412 = vunpack.c.l.b16 %v2376
        %v2413 = vunpack.c.l.b16 %v2377
        %v2414 = vunpack.c.l.b16 %v2378
        %v2415 = vunpack.c.l.b16 %v2379
        %v2416 = vunpack.c.l.b16 %v2380
        %v2417 = vunpack.c.l.b16 %v2381
        %v2418 = vunpack.c.l.b16 %v2382
        %v2419 = vunpack.c.l.b16 %v2383
        %v2420 = vunpack.c.l.b16 %v2384
        %v2421 = vunpack.c.l.b16 %v2385
        %v2422 = vunpack.c.l.b16 %v2386
        %v2423 = vunpack.c.l.b16 %v2387
        %v2424 = vpack.c.b16 %v2407, %v2406
        %v2425 = vpack.c.b16 %v2409, %v2408
        %v2426 = vpack.c.b16 %v2411, %v2410
        %v2427 = vpack.c.b16 %v2413, %v2412
        %v2428 = vpack.c.b16 %v2415, %v2414
        %v2429 = vpack.c.b16 %v2417, %v2416
        %v2430 = vpack.c.b16 %v2419, %v2418
        %v2431 = vpack.c.b16 %v2421, %v2420
        %v2432 = vpack.c.b16 %v2423, %v2422
        %v2442 = vsel %vm300, %v2260, 0
        %v2444 = vsel %vm300, %v2262, 0
        %v2446 = vsel %vm300, %v2264, 0
        %v2448 = vsel %vm300, %v2266, 0
        %v2450 = vsel %vm300, %v2268, 0
        %v2452 = vsel %vm300, %v2270, 0
        %v2454 = vsel %vm300, %v2272, 0
        %v2456 = vsel %vm300, %v2274, 0
        %v2458 = vsel %vm300, %v2276, 0
        %v2460 = vsel %vm300, %v2278, 0
        %v2462 = vsel %vm300, %v2280, 0
        %v2464 = vsel %vm300, %v2282, 0
        %v2466 = vsel %vm300, %v2284, 0
        %v2468 = vsel %vm300, %v2286, 0
        %v2470 = vsel %vm300, %v2288, 0
        %2472 = vmatprep.subr.bf16.mxu0 0
        %2473 = vmatpush1.bf16.msra.mxu0 %v2424
        %2474 = vmatprep.subr.bf16.mxu0 0
        %2475 = vmatpush1.bf16.msra.mxu0 %v2425
        %2476 = vmatprep.subr.bf16.mxu0 0
        %2477 = vmatpush1.bf16.msra.mxu0 %v2426
        %2478 = vmatprep.subr.bf16.mxu0 0
        %2479 = vmatpush1.bf16.msra.mxu0 %v2427
        %2480 = vmatprep.subr.bf16.mxu0 0
        %2481 = vmatpush1.bf16.msra.mxu0 %v2428
        %2482 = vmatprep.subr.bf16.mxu0 0
        %2483 = vmatpush1.bf16.msra.mxu0 %v2429
        %2484 = vmatprep.subr.bf16.mxu0 0
        %2485 = vmatpush1.bf16.msra.mxu0 %v2430
        %2486 = vmatprep.subr.bf16.mxu0 0
        %2487 = vmatpush1.bf16.msra.mxu0 %v2431
        %2488 = vmatprep.subr.bf16.mxu0 0
        %2489 = vmatpush1.bf16.msra.mxu0 %v2432
        %2490 = vmatprep.subr.bf16.mxu0 0
        %2491 = vmatpush1.bf16.msra.mxu0 0
        %2492 = vmatprep.subr.bf16.mxu0 0
        %2493 = vmatpush1.bf16.msra.mxu0 0
        %2494 = vmatprep.subr.bf16.mxu0 0
        %2495 = vmatpush1.bf16.msra.mxu0 0
        %2496 = vmatprep.subr.bf16.mxu0 0
        %2497 = vmatpush1.bf16.msra.mxu0 0
        %2498 = vmatprep.subr.bf16.mxu0 0
        %2499 = vmatpush1.bf16.msra.mxu0 0
        %2500 = vmatprep.subr.bf16.mxu0 0
        %2501 = vmatpush1.bf16.msra.mxu0 0
        %2502 = vmatprep.subr.bf16.mxu0 0
        %2503 = vmatpush1.bf16.msra.mxu0 0
        %2504 = vmatprep.mubr.bf16.mxu0 %v2442
        %2505 = vmatmul.mubr.bf16.gmra.mrb[0].mxu0 %v2324
        %v2506 = vpop.f32.mrb[0].mxu0
        %v2507 = vadd.f32 %v1425, %v2506
        %v2508 = vpop.f32.mrb[0].mxu0
        %v2509 = vpop.f32.mrb[0].mxu0
        %v2510 = vadd.f32 %v1428, %v2509
        %v2511 = vpop.f32.mrb[0].mxu0
        %2512 = vmatprep.mubr.bf16.mxu0 %v2444
        %2513 = vmatmul.mubr.bf16.gmra.mrb[0].mxu0 %v2327
        %v2514 = vpop.f32.mrb[0].mxu0
        %v2515 = vadd.f32 %v1433, %v2514
        %v2516 = vpop.f32.mrb[0].mxu0
        %v2517 = vpop.f32.mrb[0].mxu0
        %v2518 = vadd.f32 %v1436, %v2517
        %v2519 = vpop.f32.mrb[0].mxu0
        %2520 = vmatprep.mubr.bf16.mxu0 %v2446
        %2521 = vmatmul.mubr.bf16.gmra.mrb[0].mxu0 %v2330
        %v2522 = vpop.f32.mrb[0].mxu0
        %v2523 = vadd.f32 %v1441, %v2522
        %v2524 = vpop.f32.mrb[0].mxu0
        %v2525 = vpop.f32.mrb[0].mxu0
        %v2526 = vadd.f32 %v1444, %v2525
        %v2527 = vpop.f32.mrb[0].mxu0
        %2528 = vmatprep.mubr.bf16.mxu0 %v2448
        %2529 = vmatmul.mubr.bf16.gmra.mrb[0].mxu0 %v2333
        %v2530 = vpop.f32.mrb[0].mxu0
        %v2531 = vadd.f32 %v1449, %v2530
        %v2532 = vpop.f32.mrb[0].mxu0
        %v2533 = vpop.f32.mrb[0].mxu0
        %v2534 = vadd.f32 %v1452, %v2533
        %v2535 = vpop.f32.mrb[0].mxu0
        %2536 = vmatprep.mubr.bf16.mxu0 %v2450
        %2537 = vmatmul.mubr.bf16.gmra.mrb[0].mxu0 %v2336
        %v2538 = vpop.f32.mrb[0].mxu0
        %v2539 = vadd.f32 %v1457, %v2538
        %v2540 = vpop.f32.mrb[0].mxu0
        %v2541 = vpop.f32.mrb[0].mxu0
        %v2542 = vadd.f32 %v1460, %v2541
        %v2543 = vpop.f32.mrb[0].mxu0
        %2544 = vmatprep.mubr.bf16.mxu0 %v2452
        %2545 = vmatmul.mubr.bf16.gmra.mrb[0].mxu0 %v2339
        %v2546 = vpop.f32.mrb[0].mxu0
        %v2547 = vadd.f32 %v1465, %v2546
        %v2548 = vpop.f32.mrb[0].mxu0
        %v2549 = vpop.f32.mrb[0].mxu0
        %v2550 = vadd.f32 %v1468, %v2549
        %v2551 = vpop.f32.mrb[0].mxu0
        %2552 = vmatprep.mubr.bf16.mxu0 %v2454
        %2553 = vmatmul.mubr.bf16.gmra.mrb[0].mxu0 %v2342
        %v2554 = vpop.f32.mrb[0].mxu0
        %v2555 = vadd.f32 %v1473, %v2554
        %v2556 = vpop.f32.mrb[0].mxu0
        %v2557 = vpop.f32.mrb[0].mxu0
        %v2558 = vadd.f32 %v1476, %v2557
        %v2559 = vpop.f32.mrb[0].mxu0
        %2560 = vmatprep.mubr.bf16.mxu0 %v2456
        %2561 = vmatmul.mubr.bf16.gmra.mrb[0].mxu0 %v2345
        %v2562 = vpop.f32.mrb[0].mxu0
        %v2563 = vadd.f32 %v1481, %v2562
        %v2564 = vpop.f32.mrb[0].mxu0
        %v2565 = vpop.f32.mrb[0].mxu0
        %v2566 = vadd.f32 %v1484, %v2565
        %v2567 = vpop.f32.mrb[0].mxu0
        %2568 = vmatprep.mubr.bf16.mxu0 %v2458
        %2569 = vmatmul.mubr.bf16.gmra.mrb[0].mxu0 %v2348
        %v2570 = vpop.f32.mrb[0].mxu0
        %v2571 = vadd.f32 %v1489, %v2570
        %v2572 = vpop.f32.mrb[0].mxu0
        %v2573 = vpop.f32.mrb[0].mxu0
        %v2574 = vadd.f32 %v1492, %v2573
        %v2575 = vpop.f32.mrb[0].mxu0
        %2576 = vmatprep.mubr.bf16.mxu0 %v2460
        %2577 = vmatmul.mubr.bf16.gmra.mrb[0].mxu0 %v2351
        %v2578 = vpop.f32.mrb[0].mxu0
        %v2579 = vadd.f32 %v1497, %v2578
        %v2580 = vpop.f32.mrb[0].mxu0
        %v2581 = vpop.f32.mrb[0].mxu0
        %v2582 = vadd.f32 %v1500, %v2581
        %v2583 = vpop.f32.mrb[0].mxu0
        %2584 = vmatprep.mubr.bf16.mxu0 %v2462
        %2585 = vmatmul.mubr.bf16.gmra.mrb[0].mxu0 %v2354
        %v2586 = vpop.f32.mrb[0].mxu0
        %v2587 = vadd.f32 %v1505, %v2586
        %v2588 = vpop.f32.mrb[0].mxu0
        %v2589 = vpop.f32.mrb[0].mxu0
        %v2590 = vadd.f32 %v1508, %v2589
        %v2591 = vpop.f32.mrb[0].mxu0
        %2592 = vmatprep.mubr.bf16.mxu0 %v2464
        %2593 = vmatmul.mubr.bf16.gmra.mrb[0].mxu0 %v2357
        %v2594 = vpop.f32.mrb[0].mxu0
        %v2595 = vadd.f32 %v1513, %v2594
        %v2596 = vpop.f32.mrb[0].mxu0
        %v2597 = vpop.f32.mrb[0].mxu0
        %v2598 = vadd.f32 %v1516, %v2597
        %v2599 = vpop.f32.mrb[0].mxu0
        %2600 = vmatprep.mubr.bf16.mxu0 %v2466
        %2601 = vmatmul.mubr.bf16.gmra.mrb[0].mxu0 %v2360
        %v2602 = vpop.f32.mrb[0].mxu0
        %v2603 = vadd.f32 %v1521, %v2602
        %v2604 = vpop.f32.mrb[0].mxu0
        %v2605 = vpop.f32.mrb[0].mxu0
        %v2606 = vadd.f32 %v1524, %v2605
        %v2607 = vpop.f32.mrb[0].mxu0
        %2608 = vmatprep.mubr.bf16.mxu0 %v2468
        %2609 = vmatmul.mubr.bf16.gmra.mrb[0].mxu0 %v2363
        %v2610 = vpop.f32.mrb[0].mxu0
        %v2611 = vadd.f32 %v1529, %v2610
        %v2612 = vpop.f32.mrb[0].mxu0
        %v2613 = vpop.f32.mrb[0].mxu0
        %v2614 = vadd.f32 %v1532, %v2613
        %v2615 = vpop.f32.mrb[0].mxu0
        %2616 = vmatprep.mubr.bf16.mxu0 %v2470
        %2617 = vmatmul.mubr.bf16.gmra.mrb[0].mxu0 %v2366
        %v2618 = vpop.f32.mrb[0].mxu0
        %v2619 = vadd.f32 %v1537, %v2618
        %v2620 = vpop.f32.mrb[0].mxu0
        %v2621 = vpop.f32.mrb[0].mxu0
        %v2622 = vadd.f32 %v1540, %v2621
        %v2623 = vpop.f32.mrb[0].mxu0
        %2624 = vmatprep.mubr.bf16.mxu0 %v2468
        %2625 = vmatmul.mubr.bf16.gmra.mrb[0].mxu0 %v2368
        %v2626 = vpop.f32.mrb[0].mxu0
        %v2627 = vadd.f32 %v1545, %v2626
        %v2628 = vpop.f32.mrb[0].mxu0
        %v2629 = vpop.f32.mrb[0].mxu0
        %v2630 = vadd.f32 %v1548, %v2629
        %v2631 = vpop.f32.mrb[0].mxu0
        %2632 = vdwg.mxu0
        %v2633 = vld [vmem:[%s3] sm:$0x1]
        %v2635 = vlaneseq
        %v2636 = vshrl.u32 %v2635, 7
        %v2637 = vsub.s32 0, %v2636
        %v2638 = vrot.slane %v2633, %v2637
        %v2640 = vmul.f32 %v2507, %v2638
        %v2641 = vmul.f32 %v2510, %v2638
        %v2642 = vmul.f32 %v2515, %v2638
        %v2643 = vmul.f32 %v2518, %v2638
        %v2644 = vmul.f32 %v2523, %v2638
        %v2645 = vmul.f32 %v2526, %v2638
        %v2646 = vmul.f32 %v2531, %v2638
        %v2647 = vmul.f32 %v2534, %v2638
        %v2648 = vmul.f32 %v2539, %v2638
        %v2649 = vmul.f32 %v2542, %v2638
        %v2650 = vmul.f32 %v2547, %v2638
        %v2651 = vmul.f32 %v2550, %v2638
        %v2652 = vmul.f32 %v2555, %v2638
        %v2653 = vmul.f32 %v2558, %v2638
        %v2654 = vmul.f32 %v2563, %v2638
        %v2655 = vmul.f32 %v2566, %v2638
        %v2656 = vmul.f32 %v2571, %v2638
        %v2657 = vmul.f32 %v2574, %v2638
        %v2658 = vmul.f32 %v2579, %v2638
        %v2659 = vmul.f32 %v2582, %v2638
        %v2660 = vmul.f32 %v2587, %v2638
        %v2661 = vmul.f32 %v2590, %v2638
        %v2662 = vmul.f32 %v2595, %v2638
        %v2663 = vmul.f32 %v2598, %v2638
        %v2664 = vmul.f32 %v2603, %v2638
        %v2665 = vmul.f32 %v2606, %v2638
        %v2666 = vmul.f32 %v2611, %v2638
        %v2667 = vmul.f32 %v2614, %v2638
        %v2668 = vmul.f32 %v2619, %v2638
        %v2669 = vmul.f32 %v2622, %v2638
        %v2670 = vmul.f32 %v2627, %v2638
        %v2671 = vmul.f32 %v2630, %v2638
        %s2672 = scalar_lea.vmem %s3, 1
        %v2673 = vld [vmem:[%s2672] sm:$0x1]
        %v2675 = vlaneseq
        %v2676 = vshrl.u32 %v2675, 7
        %v2677 = vsub.s32 0, %v2676
        %v2678 = vrot.slane %v2673, %v2677
        %v2680 = vadd.f32 %v2640, %v2678
        %v2681 = vadd.f32 %v2641, %v2678
        %v2682 = vadd.f32 %v2642, %v2678
        %v2683 = vadd.f32 %v2643, %v2678
        %v2684 = vadd.f32 %v2644, %v2678
        %v2685 = vadd.f32 %v2645, %v2678
        %v2686 = vadd.f32 %v2646, %v2678
        %v2687 = vadd.f32 %v2647, %v2678
        %v2688 = vadd.f32 %v2648, %v2678
        %v2689 = vadd.f32 %v2649, %v2678
        %v2690 = vadd.f32 %v2650, %v2678
        %v2691 = vadd.f32 %v2651, %v2678
        %v2692 = vadd.f32 %v2652, %v2678
        %v2693 = vadd.f32 %v2653, %v2678
        %v2694 = vadd.f32 %v2654, %v2678
        %v2695 = vadd.f32 %v2655, %v2678
        %v2696 = vadd.f32 %v2656, %v2678
        %v2697 = vadd.f32 %v2657, %v2678
        %v2698 = vadd.f32 %v2658, %v2678
        %v2699 = vadd.f32 %v2659, %v2678
        %v2700 = vadd.f32 %v2660, %v2678
        %v2701 = vadd.f32 %v2661, %v2678
        %v2702 = vadd.f32 %v2662, %v2678
        %v2703 = vadd.f32 %v2663, %v2678
        %v2704 = vadd.f32 %v2664, %v2678
        %v2705 = vadd.f32 %v2665, %v2678
        %v2706 = vadd.f32 %v2666, %v2678
        %v2707 = vadd.f32 %v2667, %v2678
        %v2708 = vadd.f32 %v2668, %v2678
        %v2709 = vadd.f32 %v2669, %v2678
        %v2710 = vadd.f32 %v2670, %v2678
        %v2711 = vadd.f32 %v2671, %v2678
        %v2712 = vmax.f32 %v2680, 0.0
        %v2713 = vmax.f32 %v2681, 0.0
        %v2714 = vmax.f32 %v2682, 0.0
        %v2715 = vmax.f32 %v2683, 0.0
        %v2716 = vmax.f32 %v2684, 0.0
        %v2717 = vmax.f32 %v2685, 0.0
        %v2718 = vmax.f32 %v2686, 0.0
        %v2719 = vmax.f32 %v2687, 0.0
        %v2720 = vmax.f32 %v2688, 0.0
        %v2721 = vmax.f32 %v2689, 0.0
        %v2722 = vmax.f32 %v2690, 0.0
        %v2723 = vmax.f32 %v2691, 0.0
        %v2724 = vmax.f32 %v2692, 0.0
        %v2725 = vmax.f32 %v2693, 0.0
        %v2726 = vmax.f32 %v2694, 0.0
        %v2727 = vmax.f32 %v2695, 0.0
        %v2728 = vmax.f32 %v2696, 0.0
        %v2729 = vmax.f32 %v2697, 0.0
        %v2730 = vmax.f32 %v2698, 0.0
        %v2731 = vmax.f32 %v2699, 0.0
        %v2732 = vmax.f32 %v2700, 0.0
        %v2733 = vmax.f32 %v2701, 0.0
        %v2734 = vmax.f32 %v2702, 0.0
        %v2735 = vmax.f32 %v2703, 0.0
        %v2736 = vmax.f32 %v2704, 0.0
        %v2737 = vmax.f32 %v2705, 0.0
        %v2738 = vmax.f32 %v2706, 0.0
        %v2739 = vmax.f32 %v2707, 0.0
        %v2740 = vmax.f32 %v2708, 0.0
        %v2741 = vmax.f32 %v2709, 0.0
        %v2742 = vmax.f32 %v2710, 0.0
        %v2743 = vmax.f32 %v2711, 0.0
        %v2744 = vpack.c.bf16 %v2713, %v2712
        %v2745 = vpack.c.bf16 %v2715, %v2714
        %v2746 = vpack.c.bf16 %v2717, %v2716
        %v2747 = vpack.c.bf16 %v2719, %v2718
        %v2748 = vpack.c.bf16 %v2721, %v2720
        %v2749 = vpack.c.bf16 %v2723, %v2722
        %v2750 = vpack.c.bf16 %v2725, %v2724
        %v2751 = vpack.c.bf16 %v2727, %v2726
        %v2752 = vpack.c.bf16 %v2729, %v2728
        %v2753 = vpack.c.bf16 %v2731, %v2730
        %v2754 = vpack.c.bf16 %v2733, %v2732
        %v2755 = vpack.c.bf16 %v2735, %v2734
        %v2756 = vpack.c.bf16 %v2737, %v2736
        %v2757 = vpack.c.bf16 %v2739, %v2738
        %v2758 = vpack.c.bf16 %v2741, %v2740
        %v2759 = vpack.c.bf16 %v2743, %v2742
        %s2760 = scalar_lea.vmem %s2, 32
        %v2761 = vld [vmem:[%s2760] sm:$0xf]
        %v2762 = vld [vmem:[%s2760 + $0x4] sm:$0xf]
        %v2765 = vunpack.c.l.b16 %v2761
        %v2766 = vunpack.c.l.b16 %v2762
        %v2767 = vpack.c.b16 %v2766, %v2765
        %v2770 = vsel %vm300, %v2744, 0
        %v2773 = vsel %vm300, %v2745, 0
        %v2776 = vsel %vm300, %v2746, 0
        %v2779 = vsel %vm300, %v2747, 0
        %v2782 = vsel %vm300, %v2748, 0
        %v2785 = vsel %vm300, %v2749, 0
        %v2788 = vsel %vm300, %v2750, 0
        %v2791 = vsel %vm300, %v2751, 0
        %v2794 = vsel %vm300, %v2752, 0
        %v2797 = vsel %vm300, %v2753, 0
        %v2800 = vsel %vm300, %v2754, 0
        %v2803 = vsel %vm300, %v2755, 0
        %v2806 = vsel %vm300, %v2756, 0
        %v2809 = vsel %vm300, %v2757, 0
        %v2812 = vsel %vm300, %v2758, 0
        %v2815 = vsel %vm300, %v2759, 0
        %2817 = vmatprep.subr.bf16.mxu0 0
        %2818 = vmatpush1.bf16.msra.mxu0 %v2767
        %2819 = vmatprep.subr.bf16.mxu0 0
        %2820 = vmatpush1.bf16.msra.mxu0 0
        %2821 = vmatprep.subr.bf16.mxu0 0
        %2822 = vmatpush1.bf16.msra.mxu0 0
        %2823 = vmatprep.subr.bf16.mxu0 0
        %2824 = vmatpush1.bf16.msra.mxu0 0
        %2825 = vmatprep.subr.bf16.mxu0 0
        %2826 = vmatpush1.bf16.msra.mxu0 0
        %2827 = vmatprep.subr.bf16.mxu0 0
        %2828 = vmatpush1.bf16.msra.mxu0 0
        %2829 = vmatprep.subr.bf16.mxu0 0
        %2830 = vmatpush1.bf16.msra.mxu0 0
        %2831 = vmatprep.subr.bf16.mxu0 0
        %2832 = vmatpush1.bf16.msra.mxu0 0
        %2833 = vmatprep.subr.bf16.mxu0 0
        %2834 = vmatpush1.bf16.msra.mxu0 0
        %2835 = vmatprep.subr.bf16.mxu0 0
        %2836 = vmatpush1.bf16.msra.mxu0 0
        %2837 = vmatprep.subr.bf16.mxu0 0
        %2838 = vmatpush1.bf16.msra.mxu0 0
        %2839 = vmatprep.subr.bf16.mxu0 0
        %2840 = vmatpush1.bf16.msra.mxu0 0
        %2841 = vmatprep.subr.bf16.mxu0 0
        %2842 = vmatpush1.bf16.msra.mxu0 0
        %2843 = vmatprep.subr.bf16.mxu0 0
        %2844 = vmatpush1.bf16.msra.mxu0 0
        %2845 = vmatprep.subr.bf16.mxu0 0
        %2846 = vmatpush1.bf16.msra.mxu0 0
        %2847 = vmatprep.subr.bf16.mxu0 0
        %2848 = vmatpush1.bf16.msra.mxu0 0
        %2849 = vmatprep.mubr.bf16.mxu0 0
        %2850 = vmatmul.mubr.bf16.gmra.mrb[0].mxu0 %v2770
        %v2851 = vpop.f32.mrb[0].mxu0
        %v2852 = vadd.f32 0.0, %v2851
        %v2853 = vpop.f32.mrb[0].mxu0
        %v2854 = vpop.f32.mrb[0].mxu0
        %v2855 = vadd.f32 0.0, %v2854
        %v2856 = vpop.f32.mrb[0].mxu0
        %2857 = vmatprep.mubr.bf16.mxu0 0
        %2858 = vmatmul.mubr.bf16.gmra.mrb[0].mxu0 %v2773
        %v2859 = vpop.f32.mrb[0].mxu0
        %v2860 = vadd.f32 0.0, %v2859
        %v2861 = vpop.f32.mrb[0].mxu0
        %v2862 = vpop.f32.mrb[0].mxu0
        %v2863 = vadd.f32 0.0, %v2862
        %v2864 = vpop.f32.mrb[0].mxu0
        %2865 = vmatprep.mubr.bf16.mxu0 0
        %2866 = vmatmul.mubr.bf16.gmra.mrb[0].mxu0 %v2776
        %v2867 = vpop.f32.mrb[0].mxu0
        %v2868 = vadd.f32 0.0, %v2867
        %v2869 = vpop.f32.mrb[0].mxu0
        %v2870 = vpop.f32.mrb[0].mxu0
        %v2871 = vadd.f32 0.0, %v2870
        %v2872 = vpop.f32.mrb[0].mxu0
        %2873 = vmatprep.mubr.bf16.mxu0 0
        %2874 = vmatmul.mubr.bf16.gmra.mrb[0].mxu0 %v2779
        %v2875 = vpop.f32.mrb[0].mxu0
        %v2876 = vadd.f32 0.0, %v2875
        %v2877 = vpop.f32.mrb[0].mxu0
        %v2878 = vpop.f32.mrb[0].mxu0
        %v2879 = vadd.f32 0.0, %v2878
        %v2880 = vpop.f32.mrb[0].mxu0
        %2881 = vmatprep.mubr.bf16.mxu0 0
        %2882 = vmatmul.mubr.bf16.gmra.mrb[0].mxu0 %v2782
        %v2883 = vpop.f32.mrb[0].mxu0
        %v2884 = vadd.f32 0.0, %v2883
        %v2885 = vpop.f32.mrb[0].mxu0
        %v2886 = vpop.f32.mrb[0].mxu0
        %v2887 = vadd.f32 0.0, %v2886
        %v2888 = vpop.f32.mrb[0].mxu0
        %2889 = vmatprep.mubr.bf16.mxu0 0
        %2890 = vmatmul.mubr.bf16.gmra.mrb[0].mxu0 %v2785
        %v2891 = vpop.f32.mrb[0].mxu0
        %v2892 = vadd.f32 0.0, %v2891
        %v2893 = vpop.f32.mrb[0].mxu0
        %v2894 = vpop.f32.mrb[0].mxu0
        %v2895 = vadd.f32 0.0, %v2894
        %v2896 = vpop.f32.mrb[0].mxu0
        %2897 = vmatprep.mubr.bf16.mxu0 0
        %2898 = vmatmul.mubr.bf16.gmra.mrb[0].mxu0 %v2788
        %v2899 = vpop.f32.mrb[0].mxu0
        %v2900 = vadd.f32 0.0, %v2899
        %v2901 = vpop.f32.mrb[0].mxu0
        %v2902 = vpop.f32.mrb[0].mxu0
        %v2903 = vadd.f32 0.0, %v2902
        %v2904 = vpop.f32.mrb[0].mxu0
        %2905 = vmatprep.mubr.bf16.mxu0 0
        %2906 = vmatmul.mubr.bf16.gmra.mrb[0].mxu0 %v2791
        %v2907 = vpop.f32.mrb[0].mxu0
        %v2908 = vadd.f32 0.0, %v2907
        %v2909 = vpop.f32.mrb[0].mxu0
        %v2910 = vpop.f32.mrb[0].mxu0
        %v2911 = vadd.f32 0.0, %v2910
        %v2912 = vpop.f32.mrb[0].mxu0
        %2913 = vmatprep.mubr.bf16.mxu0 0
        %2914 = vmatmul.mubr.bf16.gmra.mrb[0].mxu0 %v2794
        %v2915 = vpop.f32.mrb[0].mxu0
        %v2916 = vadd.f32 0.0, %v2915
        %v2917 = vpop.f32.mrb[0].mxu0
        %v2918 = vpop.f32.mrb[0].mxu0
        %v2919 = vadd.f32 0.0, %v2918
        %v2920 = vpop.f32.mrb[0].mxu0
        %2921 = vmatprep.mubr.bf16.mxu0 0
        %2922 = vmatmul.mubr.bf16.gmra.mrb[0].mxu0 %v2797
        %v2923 = vpop.f32.mrb[0].mxu0
        %v2924 = vadd.f32 0.0, %v2923
        %v2925 = vpop.f32.mrb[0].mxu0
        %v2926 = vpop.f32.mrb[0].mxu0
        %v2927 = vadd.f32 0.0, %v2926
        %v2928 = vpop.f32.mrb[0].mxu0
        %2929 = vmatprep.mubr.bf16.mxu0 0
        %2930 = vmatmul.mubr.bf16.gmra.mrb[0].mxu0 %v2800
        %v2931 = vpop.f32.mrb[0].mxu0
        %v2932 = vadd.f32 0.0, %v2931
        %v2933 = vpop.f32.mrb[0].mxu0
        %v2934 = vpop.f32.mrb[0].mxu0
        %v2935 = vadd.f32 0.0, %v2934
        %v2936 = vpop.f32.mrb[0].mxu0
        %2937 = vmatprep.mubr.bf16.mxu0 0
        %2938 = vmatmul.mubr.bf16.gmra.mrb[0].mxu0 %v2803
        %v2939 = vpop.f32.mrb[0].mxu0
        %v2940 = vadd.f32 0.0, %v2939
        %v2941 = vpop.f32.mrb[0].mxu0
        %v2942 = vpop.f32.mrb[0].mxu0
        %v2943 = vadd.f32 0.0, %v2942
        %v2944 = vpop.f32.mrb[0].mxu0
        %2945 = vmatprep.mubr.bf16.mxu0 0
        %2946 = vmatmul.mubr.bf16.gmra.mrb[0].mxu0 %v2806
        %v2947 = vpop.f32.mrb[0].mxu0
        %v2948 = vadd.f32 0.0, %v2947
        %v2949 = vpop.f32.mrb[0].mxu0
        %v2950 = vpop.f32.mrb[0].mxu0
        %v2951 = vadd.f32 0.0, %v2950
        %v2952 = vpop.f32.mrb[0].mxu0
        %2953 = vmatprep.mubr.bf16.mxu0 0
        %2954 = vmatmul.mubr.bf16.gmra.mrb[0].mxu0 %v2809
        %v2955 = vpop.f32.mrb[0].mxu0
        %v2956 = vadd.f32 0.0, %v2955
        %v2957 = vpop.f32.mrb[0].mxu0
        %v2958 = vpop.f32.mrb[0].mxu0
        %v2959 = vadd.f32 0.0, %v2958
        %v2960 = vpop.f32.mrb[0].mxu0
        %2961 = vmatprep.mubr.bf16.mxu0 0
        %2962 = vmatmul.mubr.bf16.gmra.mrb[0].mxu0 %v2812
        %v2963 = vpop.f32.mrb[0].mxu0
        %v2964 = vadd.f32 0.0, %v2963
        %v2965 = vpop.f32.mrb[0].mxu0
        %v2966 = vpop.f32.mrb[0].mxu0
        %v2967 = vadd.f32 0.0, %v2966
        %v2968 = vpop.f32.mrb[0].mxu0
        %2969 = vmatprep.mubr.bf16.mxu0 0
        %2970 = vmatmul.mubr.bf16.gmra.mrb[0].mxu0 %v2815
        %v2971 = vpop.f32.mrb[0].mxu0
        %v2972 = vadd.f32 0.0, %v2971
        %v2973 = vpop.f32.mrb[0].mxu0
        %v2974 = vpop.f32.mrb[0].mxu0
        %v2975 = vadd.f32 0.0, %v2974
        %v2976 = vpop.f32.mrb[0].mxu0
        %2977 = vdwg.mxu0
        %s2978 = scalar_lea.vmem %s4, 6
        %v2979 = vld [vmem:[%s2978] sm:$0x1]
        %v2981 = vlaneseq
        %v2982 = vshrl.u32 %v2981, 7
        %v2983 = vsub.s32 0, %v2982
        %v2984 = vrot.slane %v2979, %v2983
        %v2986 = vmul.f32 %v2852, %v2984
        %v2987 = vmul.f32 %v2855, %v2984
        %v2988 = vmul.f32 %v2860, %v2984
        %v2989 = vmul.f32 %v2863, %v2984
        %v2990 = vmul.f32 %v2868, %v2984
        %v2991 = vmul.f32 %v2871, %v2984
        %v2992 = vmul.f32 %v2876, %v2984
        %v2993 = vmul.f32 %v2879, %v2984
        %v2994 = vmul.f32 %v2884, %v2984
        %v2995 = vmul.f32 %v2887, %v2984
        %v2996 = vmul.f32 %v2892, %v2984
        %v2997 = vmul.f32 %v2895, %v2984
        %v2998 = vmul.f32 %v2900, %v2984
        %v2999 = vmul.f32 %v2903, %v2984
        %v3000 = vmul.f32 %v2908, %v2984
        %v3001 = vmul.f32 %v2911, %v2984
        %v3002 = vmul.f32 %v2916, %v2984
        %v3003 = vmul.f32 %v2919, %v2984
        %v3004 = vmul.f32 %v2924, %v2984
        %v3005 = vmul.f32 %v2927, %v2984
        %v3006 = vmul.f32 %v2932, %v2984
        %v3007 = vmul.f32 %v2935, %v2984
        %v3008 = vmul.f32 %v2940, %v2984
        %v3009 = vmul.f32 %v2943, %v2984
        %v3010 = vmul.f32 %v2948, %v2984
        %v3011 = vmul.f32 %v2951, %v2984
        %v3012 = vmul.f32 %v2956, %v2984
        %v3013 = vmul.f32 %v2959, %v2984
        %v3014 = vmul.f32 %v2964, %v2984
        %v3015 = vmul.f32 %v2967, %v2984
        %v3016 = vmul.f32 %v2972, %v2984
        %v3017 = vmul.f32 %v2975, %v2984
        %s3018 = scalar_lea.vmem %s4, 7
        %v3019 = vld [vmem:[%s3018] sm:$0x1]
        %v3021 = vlaneseq
        %v3022 = vshrl.u32 %v3021, 7
        %v3023 = vsub.s32 0, %v3022
        %v3024 = vrot.slane %v3019, %v3023
        %v3026 = vadd.f32 %v2986, %v3024
        %v3027 = vadd.f32 %v2987, %v3024
        %v3028 = vadd.f32 %v2988, %v3024
        %v3029 = vadd.f32 %v2989, %v3024
        %v3030 = vadd.f32 %v2990, %v3024
        %v3031 = vadd.f32 %v2991, %v3024
        %v3032 = vadd.f32 %v2992, %v3024
        %v3033 = vadd.f32 %v2993, %v3024
        %v3034 = vadd.f32 %v2994, %v3024
        %v3035 = vadd.f32 %v2995, %v3024
        %v3036 = vadd.f32 %v2996, %v3024
        %v3037 = vadd.f32 %v2997, %v3024
        %v3038 = vadd.f32 %v2998, %v3024
        %v3039 = vadd.f32 %v2999, %v3024
        %v3040 = vadd.f32 %v3000, %v3024
        %v3041 = vadd.f32 %v3001, %v3024
        %v3042 = vadd.f32 %v3002, %v3024
        %v3043 = vadd.f32 %v3003, %v3024
        %v3044 = vadd.f32 %v3004, %v3024
        %v3045 = vadd.f32 %v3005, %v3024
        %v3046 = vadd.f32 %v3006, %v3024
        %v3047 = vadd.f32 %v3007, %v3024
        %v3048 = vadd.f32 %v3008, %v3024
        %v3049 = vadd.f32 %v3009, %v3024
        %v3050 = vadd.f32 %v3010, %v3024
        %v3051 = vadd.f32 %v3011, %v3024
        %v3052 = vadd.f32 %v3012, %v3024
        %v3053 = vadd.f32 %v3013, %v3024
        %v3054 = vadd.f32 %v3014, %v3024
        %v3055 = vadd.f32 %v3015, %v3024
        %v3056 = vadd.f32 %v3016, %v3024
        %v3057 = vadd.f32 %v3017, %v3024
        %v3058 = vmax.f32 %v3026, 0.0
        %v3059 = vmax.f32 %v3027, 0.0
        %v3060 = vmax.f32 %v3028, 0.0
        %v3061 = vmax.f32 %v3029, 0.0
        %v3062 = vmax.f32 %v3030, 0.0
        %v3063 = vmax.f32 %v3031, 0.0
        %v3064 = vmax.f32 %v3032, 0.0
        %v3065 = vmax.f32 %v3033, 0.0
        %v3066 = vmax.f32 %v3034, 0.0
        %v3067 = vmax.f32 %v3035, 0.0
        %v3068 = vmax.f32 %v3036, 0.0
        %v3069 = vmax.f32 %v3037, 0.0
        %v3070 = vmax.f32 %v3038, 0.0
        %v3071 = vmax.f32 %v3039, 0.0
        %v3072 = vmax.f32 %v3040, 0.0
        %v3073 = vmax.f32 %v3041, 0.0
        %v3074 = vmax.f32 %v3042, 0.0
        %v3075 = vmax.f32 %v3043, 0.0
        %v3076 = vmax.f32 %v3044, 0.0
        %v3077 = vmax.f32 %v3045, 0.0
        %v3078 = vmax.f32 %v3046, 0.0
        %v3079 = vmax.f32 %v3047, 0.0
        %v3080 = vmax.f32 %v3048, 0.0
        %v3081 = vmax.f32 %v3049, 0.0
        %v3082 = vmax.f32 %v3050, 0.0
        %v3083 = vmax.f32 %v3051, 0.0
        %v3084 = vmax.f32 %v3052, 0.0
        %v3085 = vmax.f32 %v3053, 0.0
        %v3086 = vmax.f32 %v3054, 0.0
        %v3087 = vmax.f32 %v3055, 0.0
        %v3088 = vmax.f32 %v3056, 0.0
        %v3089 = vmax.f32 %v3057, 0.0
        %v3090 = vpack.c.bf16 %v3059, %v3058
        %v3091 = vpack.c.bf16 %v3061, %v3060
        %v3092 = vpack.c.bf16 %v3063, %v3062
        %v3093 = vpack.c.bf16 %v3065, %v3064
        %v3094 = vpack.c.bf16 %v3067, %v3066
        %v3095 = vpack.c.bf16 %v3069, %v3068
        %v3096 = vpack.c.bf16 %v3071, %v3070
        %v3097 = vpack.c.bf16 %v3073, %v3072
        %v3098 = vpack.c.bf16 %v3075, %v3074
        %v3099 = vpack.c.bf16 %v3077, %v3076
        %v3100 = vpack.c.bf16 %v3079, %v3078
        %v3101 = vpack.c.bf16 %v3081, %v3080
        %v3102 = vpack.c.bf16 %v3083, %v3082
        %v3103 = vpack.c.bf16 %v3085, %v3084
        %v3104 = vpack.c.bf16 %v3087, %v3086
        %v3105 = vpack.c.bf16 %v3089, %v3088
        %s3106 = scalar_lea.vmem %s2, 40
        %v3107 = vld [vmem:[%s3106] sm:$0xf]
        %v3108 = vld [vmem:[%s3106 + $0x4] sm:$0xf]
        %v3111 = vunpack.c.l.b16 %v3107
        %v3112 = vunpack.c.l.b16 %v3108
        %v3113 = vpack.c.b16 %v3112, %v3111
        %v3116 = vsel %vm300, %v3090, 0
        %v3119 = vsel %vm300, %v3091, 0
        %v3122 = vsel %vm300, %v3092, 0
        %v3125 = vsel %vm300, %v3093, 0
        %v3128 = vsel %vm300, %v3094, 0
        %v3131 = vsel %vm300, %v3095, 0
        %v3134 = vsel %vm300, %v3096, 0
        %v3137 = vsel %vm300, %v3097, 0
        %v3140 = vsel %vm300, %v3098, 0
        %v3143 = vsel %vm300, %v3099, 0
        %v3146 = vsel %vm300, %v3100, 0
        %v3149 = vsel %vm300, %v3101, 0
        %v3152 = vsel %vm300, %v3102, 0
        %v3155 = vsel %vm300, %v3103, 0
        %v3158 = vsel %vm300, %v3104, 0
        %v3161 = vsel %vm300, %v3105, 0
        %3163 = vmatprep.subr.bf16.mxu0 0
        %3164 = vmatpush1.bf16.msra.mxu0 %v3113
        %3165 = vmatprep.subr.bf16.mxu0 0
        %3166 = vmatpush1.bf16.msra.mxu0 0
        %3167 = vmatprep.subr.bf16.mxu0 0
        %3168 = vmatpush1.bf16.msra.mxu0 0
        %3169 = vmatprep.subr.bf16.mxu0 0
        %3170 = vmatpush1.bf16.msra.mxu0 0
        %3171 = vmatprep.subr.bf16.mxu0 0
        %3172 = vmatpush1.bf16.msra.mxu0 0
        %3173 = vmatprep.subr.bf16.mxu0 0
        %3174 = vmatpush1.bf16.msra.mxu0 0
        %3175 = vmatprep.subr.bf16.mxu0 0
        %3176 = vmatpush1.bf16.msra.mxu0 0
        %3177 = vmatprep.subr.bf16.mxu0 0
        %3178 = vmatpush1.bf16.msra.mxu0 0
        %3179 = vmatprep.subr.bf16.mxu0 0
        %3180 = vmatpush1.bf16.msra.mxu0 0
        %3181 = vmatprep.subr.bf16.mxu0 0
        %3182 = vmatpush1.bf16.msra.mxu0 0
        %3183 = vmatprep.subr.bf16.mxu0 0
        %3184 = vmatpush1.bf16.msra.mxu0 0
        %3185 = vmatprep.subr.bf16.mxu0 0
        %3186 = vmatpush1.bf16.msra.mxu0 0
        %3187 = vmatprep.subr.bf16.mxu0 0
        %3188 = vmatpush1.bf16.msra.mxu0 0
        %3189 = vmatprep.subr.bf16.mxu0 0
        %3190 = vmatpush1.bf16.msra.mxu0 0
        %3191 = vmatprep.subr.bf16.mxu0 0
        %3192 = vmatpush1.bf16.msra.mxu0 0
        %3193 = vmatprep.subr.bf16.mxu0 0
        %3194 = vmatpush1.bf16.msra.mxu0 0
        %3195 = vmatprep.mubr.bf16.mxu0 0
        %3196 = vmatmul.mubr.bf16.gmra.mrb[0].mxu0 %v3116
        %v3197 = vpop.f32.mrb[0].mxu0
        %v3198 = vadd.f32 0.0, %v3197
        %v3199 = vpop.f32.mrb[0].mxu0
        %v3200 = vpop.f32.mrb[0].mxu0
        %v3201 = vadd.f32 0.0, %v3200
        %v3202 = vpop.f32.mrb[0].mxu0
        %3203 = vmatprep.mubr.bf16.mxu0 0
        %3204 = vmatmul.mubr.bf16.gmra.mrb[0].mxu0 %v3119
        %v3205 = vpop.f32.mrb[0].mxu0
        %v3206 = vadd.f32 0.0, %v3205
        %v3207 = vpop.f32.mrb[0].mxu0
        %v3208 = vpop.f32.mrb[0].mxu0
        %v3209 = vadd.f32 0.0, %v3208
        %v3210 = vpop.f32.mrb[0].mxu0
        %3211 = vmatprep.mubr.bf16.mxu0 0
        %3212 = vmatmul.mubr.bf16.gmra.mrb[0].mxu0 %v3122
        %v3213 = vpop.f32.mrb[0].mxu0
        %v3214 = vadd.f32 0.0, %v3213
        %v3215 = vpop.f32.mrb[0].mxu0
        %v3216 = vpop.f32.mrb[0].mxu0
        %v3217 = vadd.f32 0.0, %v3216
        %v3218 = vpop.f32.mrb[0].mxu0
        %3219 = vmatprep.mubr.bf16.mxu0 0
        %3220 = vmatmul.mubr.bf16.gmra.mrb[0].mxu0 %v3125
        %v3221 = vpop.f32.mrb[0].mxu0
        %v3222 = vadd.f32 0.0, %v3221
        %v3223 = vpop.f32.mrb[0].mxu0
        %v3224 = vpop.f32.mrb[0].mxu0
        %v3225 = vadd.f32 0.0, %v3224
        %v3226 = vpop.f32.mrb[0].mxu0
        %3227 = vmatprep.mubr.bf16.mxu0 0
        %3228 = vmatmul.mubr.bf16.gmra.mrb[0].mxu0 %v3128
        %v3229 = vpop.f32.mrb[0].mxu0
        %v3230 = vadd.f32 0.0, %v3229
        %v3231 = vpop.f32.mrb[0].mxu0
        %v3232 = vpop.f32.mrb[0].mxu0
        %v3233 = vadd.f32 0.0, %v3232
        %v3234 = vpop.f32.mrb[0].mxu0
        %3235 = vmatprep.mubr.bf16.mxu0 0
        %3236 = vmatmul.mubr.bf16.gmra.mrb[0].mxu0 %v3131
        %v3237 = vpop.f32.mrb[0].mxu0
        %v3238 = vadd.f32 0.0, %v3237
        %v3239 = vpop.f32.mrb[0].mxu0
        %v3240 = vpop.f32.mrb[0].mxu0
        %v3241 = vadd.f32 0.0, %v3240
        %v3242 = vpop.f32.mrb[0].mxu0
        %3243 = vmatprep.mubr.bf16.mxu0 0
        %3244 = vmatmul.mubr.bf16.gmra.mrb[0].mxu0 %v3134
        %v3245 = vpop.f32.mrb[0].mxu0
        %v3246 = vadd.f32 0.0, %v3245
        %v3247 = vpop.f32.mrb[0].mxu0
        %v3248 = vpop.f32.mrb[0].mxu0
        %v3249 = vadd.f32 0.0, %v3248
        %v3250 = vpop.f32.mrb[0].mxu0
        %3251 = vmatprep.mubr.bf16.mxu0 0
        %3252 = vmatmul.mubr.bf16.gmra.mrb[0].mxu0 %v3137
        %v3253 = vpop.f32.mrb[0].mxu0
        %v3254 = vadd.f32 0.0, %v3253
        %v3255 = vpop.f32.mrb[0].mxu0
        %v3256 = vpop.f32.mrb[0].mxu0
        %v3257 = vadd.f32 0.0, %v3256
        %v3258 = vpop.f32.mrb[0].mxu0
        %3259 = vmatprep.mubr.bf16.mxu0 0
        %3260 = vmatmul.mubr.bf16.gmra.mrb[0].mxu0 %v3140
        %v3261 = vpop.f32.mrb[0].mxu0
        %v3262 = vadd.f32 0.0, %v3261
        %v3263 = vpop.f32.mrb[0].mxu0
        %v3264 = vpop.f32.mrb[0].mxu0
        %v3265 = vadd.f32 0.0, %v3264
        %v3266 = vpop.f32.mrb[0].mxu0
        %3267 = vmatprep.mubr.bf16.mxu0 0
        %3268 = vmatmul.mubr.bf16.gmra.mrb[0].mxu0 %v3143
        %v3269 = vpop.f32.mrb[0].mxu0
        %v3270 = vadd.f32 0.0, %v3269
        %v3271 = vpop.f32.mrb[0].mxu0
        %v3272 = vpop.f32.mrb[0].mxu0
        %v3273 = vadd.f32 0.0, %v3272
        %v3274 = vpop.f32.mrb[0].mxu0
        %3275 = vmatprep.mubr.bf16.mxu0 0
        %3276 = vmatmul.mubr.bf16.gmra.mrb[0].mxu0 %v3146
        %v3277 = vpop.f32.mrb[0].mxu0
        %v3278 = vadd.f32 0.0, %v3277
        %v3279 = vpop.f32.mrb[0].mxu0
        %v3280 = vpop.f32.mrb[0].mxu0
        %v3281 = vadd.f32 0.0, %v3280
        %v3282 = vpop.f32.mrb[0].mxu0
        %3283 = vmatprep.mubr.bf16.mxu0 0
        %3284 = vmatmul.mubr.bf16.gmra.mrb[0].mxu0 %v3149
        %v3285 = vpop.f32.mrb[0].mxu0
        %v3286 = vadd.f32 0.0, %v3285
        %v3287 = vpop.f32.mrb[0].mxu0
        %v3288 = vpop.f32.mrb[0].mxu0
        %v3289 = vadd.f32 0.0, %v3288
        %v3290 = vpop.f32.mrb[0].mxu0
        %3291 = vmatprep.mubr.bf16.mxu0 0
        %3292 = vmatmul.mubr.bf16.gmra.mrb[0].mxu0 %v3152
        %v3293 = vpop.f32.mrb[0].mxu0
        %v3294 = vadd.f32 0.0, %v3293
        %v3295 = vpop.f32.mrb[0].mxu0
        %v3296 = vpop.f32.mrb[0].mxu0
        %v3297 = vadd.f32 0.0, %v3296
        %v3298 = vpop.f32.mrb[0].mxu0
        %3299 = vmatprep.mubr.bf16.mxu0 0
        %3300 = vmatmul.mubr.bf16.gmra.mrb[0].mxu0 %v3155
        %v3301 = vpop.f32.mrb[0].mxu0
        %v3302 = vadd.f32 0.0, %v3301
        %v3303 = vpop.f32.mrb[0].mxu0
        %v3304 = vpop.f32.mrb[0].mxu0
        %v3305 = vadd.f32 0.0, %v3304
        %v3306 = vpop.f32.mrb[0].mxu0
        %3307 = vmatprep.mubr.bf16.mxu0 0
        %3308 = vmatmul.mubr.bf16.gmra.mrb[0].mxu0 %v3158
        %v3309 = vpop.f32.mrb[0].mxu0
        %v3310 = vadd.f32 0.0, %v3309
        %v3311 = vpop.f32.mrb[0].mxu0
        %v3312 = vpop.f32.mrb[0].mxu0
        %v3313 = vadd.f32 0.0, %v3312
        %v3314 = vpop.f32.mrb[0].mxu0
        %3315 = vmatprep.mubr.bf16.mxu0 0
        %3316 = vmatmul.mubr.bf16.gmra.mrb[0].mxu0 %v3161
        %v3317 = vpop.f32.mrb[0].mxu0
        %v3318 = vadd.f32 0.0, %v3317
        %v3319 = vpop.f32.mrb[0].mxu0
        %v3320 = vpop.f32.mrb[0].mxu0
        %v3321 = vadd.f32 0.0, %v3320
        %v3322 = vpop.f32.mrb[0].mxu0
        %3323 = vdwg.mxu0
        %s3324 = scalar_lea.vmem %s4, 8
        %v3325 = vld [vmem:[%s3324] sm:$0x1]
        %v3327 = vlaneseq
        %v3328 = vshrl.u32 %v3327, 7
        %v3329 = vsub.s32 0, %v3328
        %v3330 = vrot.slane %v3325, %v3329
        %v3332 = vmul.f32 %v3198, %v3330
        %v3333 = vmul.f32 %v3201, %v3330
        %v3334 = vmul.f32 %v3206, %v3330
        %v3335 = vmul.f32 %v3209, %v3330
        %v3336 = vmul.f32 %v3214, %v3330
        %v3337 = vmul.f32 %v3217, %v3330
        %v3338 = vmul.f32 %v3222, %v3330
        %v3339 = vmul.f32 %v3225, %v3330
        %v3340 = vmul.f32 %v3230, %v3330
        %v3341 = vmul.f32 %v3233, %v3330
        %v3342 = vmul.f32 %v3238, %v3330
        %v3343 = vmul.f32 %v3241, %v3330
        %v3344 = vmul.f32 %v3246, %v3330
        %v3345 = vmul.f32 %v3249, %v3330
        %v3346 = vmul.f32 %v3254, %v3330
        %v3347 = vmul.f32 %v3257, %v3330
        %v3348 = vmul.f32 %v3262, %v3330
        %v3349 = vmul.f32 %v3265, %v3330
        %v3350 = vmul.f32 %v3270, %v3330
        %v3351 = vmul.f32 %v3273, %v3330
        %v3352 = vmul.f32 %v3278, %v3330
        %v3353 = vmul.f32 %v3281, %v3330
        %v3354 = vmul.f32 %v3286, %v3330
        %v3355 = vmul.f32 %v3289, %v3330
        %v3356 = vmul.f32 %v3294, %v3330
        %v3357 = vmul.f32 %v3297, %v3330
        %v3358 = vmul.f32 %v3302, %v3330
        %v3359 = vmul.f32 %v3305, %v3330
        %v3360 = vmul.f32 %v3310, %v3330
        %v3361 = vmul.f32 %v3313, %v3330
        %v3362 = vmul.f32 %v3318, %v3330
        %v3363 = vmul.f32 %v3321, %v3330
        %s3364 = scalar_lea.vmem %s4, 9
        %v3365 = vld [vmem:[%s3364] sm:$0x1]
        %v3367 = vlaneseq
        %v3368 = vshrl.u32 %v3367, 7
        %v3369 = vsub.s32 0, %v3368
        %v3370 = vrot.slane %v3365, %v3369
        %v3372 = vadd.f32 %v3332, %v3370
        %v3373 = vadd.f32 %v3333, %v3370
        %v3374 = vadd.f32 %v3334, %v3370
        %v3375 = vadd.f32 %v3335, %v3370
        %v3376 = vadd.f32 %v3336, %v3370
        %v3377 = vadd.f32 %v3337, %v3370
        %v3378 = vadd.f32 %v3338, %v3370
        %v3379 = vadd.f32 %v3339, %v3370
        %v3380 = vadd.f32 %v3340, %v3370
        %v3381 = vadd.f32 %v3341, %v3370
        %v3382 = vadd.f32 %v3342, %v3370
        %v3383 = vadd.f32 %v3343, %v3370
        %v3384 = vadd.f32 %v3344, %v3370
        %v3385 = vadd.f32 %v3345, %v3370
        %v3386 = vadd.f32 %v3346, %v3370
        %v3387 = vadd.f32 %v3347, %v3370
        %v3388 = vadd.f32 %v3348, %v3370
        %v3389 = vadd.f32 %v3349, %v3370
        %v3390 = vadd.f32 %v3350, %v3370
        %v3391 = vadd.f32 %v3351, %v3370
        %v3392 = vadd.f32 %v3352, %v3370
        %v3393 = vadd.f32 %v3353, %v3370
        %v3394 = vadd.f32 %v3354, %v3370
        %v3395 = vadd.f32 %v3355, %v3370
        %v3396 = vadd.f32 %v3356, %v3370
        %v3397 = vadd.f32 %v3357, %v3370
        %v3398 = vadd.f32 %v3358, %v3370
        %v3399 = vadd.f32 %v3359, %v3370
        %v3400 = vadd.f32 %v3360, %v3370
        %v3401 = vadd.f32 %v3361, %v3370
        %v3402 = vadd.f32 %v3362, %v3370
        %v3403 = vadd.f32 %v3363, %v3370
        %v3404 = vmax.f32 %v3372, 0.0
        %v3405 = vmax.f32 %v3373, 0.0
        %v3406 = vmax.f32 %v3374, 0.0
        %v3407 = vmax.f32 %v3375, 0.0
        %v3408 = vmax.f32 %v3376, 0.0
        %v3409 = vmax.f32 %v3377, 0.0
        %v3410 = vmax.f32 %v3378, 0.0
        %v3411 = vmax.f32 %v3379, 0.0
        %v3412 = vmax.f32 %v3380, 0.0
        %v3413 = vmax.f32 %v3381, 0.0
        %v3414 = vmax.f32 %v3382, 0.0
        %v3415 = vmax.f32 %v3383, 0.0
        %v3416 = vmax.f32 %v3384, 0.0
        %v3417 = vmax.f32 %v3385, 0.0
        %v3418 = vmax.f32 %v3386, 0.0
        %v3419 = vmax.f32 %v3387, 0.0
        %v3420 = vmax.f32 %v3388, 0.0
        %v3421 = vmax.f32 %v3389, 0.0
        %v3422 = vmax.f32 %v3390, 0.0
        %v3423 = vmax.f32 %v3391, 0.0
        %v3424 = vmax.f32 %v3392, 0.0
        %v3425 = vmax.f32 %v3393, 0.0
        %v3426 = vmax.f32 %v3394, 0.0
        %v3427 = vmax.f32 %v3395, 0.0
        %v3428 = vmax.f32 %v3396, 0.0
        %v3429 = vmax.f32 %v3397, 0.0
        %v3430 = vmax.f32 %v3398, 0.0
        %v3431 = vmax.f32 %v3399, 0.0
        %v3432 = vmax.f32 %v3400, 0.0
        %v3433 = vmax.f32 %v3401, 0.0
        %v3434 = vmax.f32 %v3402, 0.0
        %v3435 = vmax.f32 %v3403, 0.0
        %3444 = vrot.lane.b32.xlu0 %v3074, 1
        %v3445 = vpop.permute.xlu0 %3444
        %3446 = vrot.lane.b32.xlu0 %v3076, 1
        %v3447 = vpop.permute.xlu0 %3446
        %3448 = vrot.lane.b32.xlu0 %v3078, 1
        %v3449 = vpop.permute.xlu0 %3448
        %3450 = vrot.lane.b32.xlu0 %v3080, 1
        %v3451 = vpop.permute.xlu0 %3450
        %3452 = vrot.lane.b32.xlu0 %v3082, 1
        %v3453 = vpop.permute.xlu0 %3452
        %3454 = vrot.lane.b32.xlu0 %v3084, 1
        %v3455 = vpop.permute.xlu0 %3454
        %3456 = vrot.lane.b32.xlu0 %v3086, 1
        %v3457 = vpop.permute.xlu0 %3456
        %3458 = vrot.lane.b32.xlu0 %v3088, 1
        %v3459 = vpop.permute.xlu0 %3458
        %3476 = vrot.lane.b32.xlu0 %v3059, 2
        %v3477 = vpop.permute.xlu0 %3476
        %3478 = vrot.lane.b32.xlu0 %v3061, 2
        %v3479 = vpop.permute.xlu0 %3478
        %3480 = vrot.lane.b32.xlu0 %v3063, 2
        %v3481 = vpop.permute.xlu0 %3480
        %3482 = vrot.lane.b32.xlu0 %v3065, 2
        %v3483 = vpop.permute.xlu0 %3482
        %3484 = vrot.lane.b32.xlu0 %v3067, 2
        %v3485 = vpop.permute.xlu0 %3484
        %3486 = vrot.lane.b32.xlu0 %v3069, 2
        %v3487 = vpop.permute.xlu0 %3486
        %3488 = vrot.lane.b32.xlu0 %v3071, 2
        %v3489 = vpop.permute.xlu0 %3488
        %3490 = vrot.lane.b32.xlu0 %v3073, 2
        %v3491 = vpop.permute.xlu0 %3490
        %3508 = vrot.lane.b32.xlu0 %v3075, 3
        %v3509 = vpop.permute.xlu0 %3508
        %3510 = vrot.lane.b32.xlu0 %v3077, 3
        %v3511 = vpop.permute.xlu0 %3510
        %3512 = vrot.lane.b32.xlu0 %v3079, 3
        %v3513 = vpop.permute.xlu0 %3512
        %3514 = vrot.lane.b32.xlu0 %v3081, 3
        %v3515 = vpop.permute.xlu0 %3514
        %3516 = vrot.lane.b32.xlu0 %v3083, 3
        %v3517 = vpop.permute.xlu0 %3516
        %3518 = vrot.lane.b32.xlu0 %v3085, 3
        %v3519 = vpop.permute.xlu0 %3518
        %3520 = vrot.lane.b32.xlu0 %v3087, 3
        %v3521 = vpop.permute.xlu0 %3520
        %3522 = vrot.lane.b32.xlu0 %v3089, 3
        %v3523 = vpop.permute.xlu0 %3522
        %v3532 = vsel %vm1063, %v3058, %v3445
        %v3533 = vsel %vm1063, %v3060, %v3447
        %v3534 = vsel %vm1063, %v3062, %v3449
        %v3535 = vsel %vm1063, %v3064, %v3451
        %v3536 = vsel %vm1063, %v3066, %v3453
        %v3537 = vsel %vm1063, %v3068, %v3455
        %v3538 = vsel %vm1063, %v3070, %v3457
        %v3539 = vsel %vm1063, %v3072, %v3459
        %v3540 = vsel %vm1072, %v3532, %v3477
        %v3541 = vsel %vm1072, %v3533, %v3479
        %v3542 = vsel %vm1072, %v3534, %v3481
        %v3543 = vsel %vm1072, %v3535, %v3483
        %v3544 = vsel %vm1072, %v3536, %v3485
        %v3545 = vsel %vm1072, %v3537, %v3487
        %v3546 = vsel %vm1072, %v3538, %v3489
        %v3547 = vsel %vm1072, %v3539, %v3491
        %v3548 = vsel %vm1081, %v3540, %v3509
        %v3549 = vsel %vm1081, %v3541, %v3511
        %v3550 = vsel %vm1081, %v3542, %v3513
        %v3551 = vsel %vm1081, %v3543, %v3515
        %v3552 = vsel %vm1081, %v3544, %v3517
        %v3553 = vsel %vm1081, %v3545, %v3519
        %v3554 = vsel %vm1081, %v3546, %v3521
        %v3555 = vsel %vm1081, %v3547, %v3523
        %v3556 = vsel %vm1090, %v3548, 0.0
        %v3557 = vsel %vm1090, %v3549, 0.0
        %v3558 = vsel %vm1090, %v3550, 0.0
        %v3559 = vsel %vm1090, %v3551, 0.0
        %v3560 = vsel %vm1090, %v3552, 0.0
        %v3561 = vsel %vm1090, %v3553, 0.0
        %v3562 = vsel %vm1090, %v3554, 0.0
        %v3563 = vsel %vm1090, %v3555, 0.0
        %v3564 = vpack.c.bf16 %v3556, %v3556
        %v3565 = vpack.c.bf16 %v3557, %v3557
        %v3566 = vpack.c.bf16 %v3558, %v3558
        %v3567 = vpack.c.bf16 %v3559, %v3559
        %v3568 = vpack.c.bf16 %v3560, %v3560
        %v3569 = vpack.c.bf16 %v3561, %v3561
        %v3570 = vpack.c.bf16 %v3562, %v3562
        %v3571 = vpack.c.bf16 %v3563, %v3563
        %s3572 = scalar_lea.vmem %s2, 48
        %v3573 = vld [vmem:[%s3572] sm:$0xf]
        %v3574 = vld [vmem:[%s3572 + $0x4] sm:$0xf]
        %v3583 = vunpack.c.l.b16 %v3564
        %v3584 = vunpack.c.l.b16 %v3565
        %v3585 = vunpack.c.l.b16 %v3566
        %v3586 = vunpack.c.l.b16 %v3567
        %v3587 = vunpack.c.l.b16 %v3568
        %v3588 = vunpack.c.l.b16 %v3569
        %v3589 = vunpack.c.l.b16 %v3570
        %v3590 = vunpack.c.l.b16 %v3571
        %v3591 = vpack.c.b16 %v3584, %v3583
        %v3592 = vpack.c.b16 %v3586, %v3585
        %v3593 = vpack.c.b16 %v3588, %v3587
        %v3594 = vpack.c.b16 %v3590, %v3589
        %v3597 = vunpack.c.l.b16 %v3573
        %v3598 = vunpack.c.l.b16 %v3574
        %v3599 = vpack.c.b16 %v3598, %v3597
        %v3602 = vsel %vm300, %v3591, 0
        %v3605 = vsel %vm300, %v3592, 0
        %v3608 = vsel %vm300, %v3593, 0
        %v3611 = vsel %vm300, %v3594, 0
        %3613 = vmatprep.subr.bf16.mxu0 0
        %3614 = vmatpush1.bf16.msra.mxu0 %v3599
        %3615 = vmatprep.subr.bf16.mxu0 0
        %3616 = vmatpush1.bf16.msra.mxu0 0
        %3617 = vmatprep.subr.bf16.mxu0 0
        %3618 = vmatpush1.bf16.msra.mxu0 0
        %3619 = vmatprep.subr.bf16.mxu0 0
        %3620 = vmatpush1.bf16.msra.mxu0 0
        %3621 = vmatprep.subr.bf16.mxu0 0
        %3622 = vmatpush1.bf16.msra.mxu0 0
        %3623 = vmatprep.subr.bf16.mxu0 0
        %3624 = vmatpush1.bf16.msra.mxu0 0
        %3625 = vmatprep.subr.bf16.mxu0 0
        %3626 = vmatpush1.bf16.msra.mxu0 0
        %3627 = vmatprep.subr.bf16.mxu0 0
        %3628 = vmatpush1.bf16.msra.mxu0 0
        %3629 = vmatprep.subr.bf16.mxu0 0
        %3630 = vmatpush1.bf16.msra.mxu0 0
        %3631 = vmatprep.subr.bf16.mxu0 0
        %3632 = vmatpush1.bf16.msra.mxu0 0
        %3633 = vmatprep.subr.bf16.mxu0 0
        %3634 = vmatpush1.bf16.msra.mxu0 0
        %3635 = vmatprep.subr.bf16.mxu0 0
        %3636 = vmatpush1.bf16.msra.mxu0 0
        %3637 = vmatprep.subr.bf16.mxu0 0
        %3638 = vmatpush1.bf16.msra.mxu0 0
        %3639 = vmatprep.subr.bf16.mxu0 0
        %3640 = vmatpush1.bf16.msra.mxu0 0
        %3641 = vmatprep.subr.bf16.mxu0 0
        %3642 = vmatpush1.bf16.msra.mxu0 0
        %3643 = vmatprep.subr.bf16.mxu0 0
        %3644 = vmatpush1.bf16.msra.mxu0 0
        %3645 = vmatprep.mubr.bf16.mxu0 0
        %3646 = vmatmul.mubr.bf16.gmra.mrb[0].mxu0 %v3602
        %v3647 = vpop.f32.mrb[0].mxu0
        %v3648 = vadd.f32 0.0, %v3647
        %v3649 = vpop.f32.mrb[0].mxu0
        %v3650 = vpop.f32.mrb[0].mxu0
        %v3651 = vadd.f32 0.0, %v3650
        %v3652 = vpop.f32.mrb[0].mxu0
        %3653 = vmatprep.mubr.bf16.mxu0 0
        %3654 = vmatmul.mubr.bf16.gmra.mrb[0].mxu0 %v3605
        %v3655 = vpop.f32.mrb[0].mxu0
        %v3656 = vadd.f32 0.0, %v3655
        %v3657 = vpop.f32.mrb[0].mxu0
        %v3658 = vpop.f32.mrb[0].mxu0
        %v3659 = vadd.f32 0.0, %v3658
        %v3660 = vpop.f32.mrb[0].mxu0
        %3661 = vmatprep.mubr.bf16.mxu0 0
        %3662 = vmatmul.mubr.bf16.gmra.mrb[0].mxu0 %v3608
        %v3663 = vpop.f32.mrb[0].mxu0
        %v3664 = vadd.f32 0.0, %v3663
        %v3665 = vpop.f32.mrb[0].mxu0
        %v3666 = vpop.f32.mrb[0].mxu0
        %v3667 = vadd.f32 0.0, %v3666
        %v3668 = vpop.f32.mrb[0].mxu0
        %3669 = vmatprep.mubr.bf16.mxu0 0
        %3670 = vmatmul.mubr.bf16.gmra.mrb[0].mxu0 %v3611
        %v3671 = vpop.f32.mrb[0].mxu0
        %v3672 = vadd.f32 0.0, %v3671
        %v3673 = vpop.f32.mrb[0].mxu0
        %v3674 = vpop.f32.mrb[0].mxu0
        %v3675 = vadd.f32 0.0, %v3674
        %v3676 = vpop.f32.mrb[0].mxu0
        %3677 = vdwg.mxu0
        %s3678 = scalar_lea.vmem %s4, 10
        %v3679 = vld [vmem:[%s3678] sm:$0x1]
        %v3681 = vlaneseq
        %v3682 = vshrl.u32 %v3681, 7
        %v3683 = vsub.s32 0, %v3682
        %v3684 = vrot.slane %v3679, %v3683
        %v3686 = vmul.f32 %v3648, %v3684
        %v3687 = vmul.f32 %v3651, %v3684
        %v3688 = vmul.f32 %v3656, %v3684
        %v3689 = vmul.f32 %v3659, %v3684
        %v3690 = vmul.f32 %v3664, %v3684
        %v3691 = vmul.f32 %v3667, %v3684
        %v3692 = vmul.f32 %v3672, %v3684
        %v3693 = vmul.f32 %v3675, %v3684
        %s3694 = scalar_lea.vmem %s4, 11
        %v3695 = vld [vmem:[%s3694] sm:$0x1]
        %v3697 = vlaneseq
        %v3698 = vshrl.u32 %v3697, 7
        %v3699 = vsub.s32 0, %v3698
        %v3700 = vrot.slane %v3695, %v3699
        %v3702 = vadd.f32 %v3686, %v3700
        %v3703 = vadd.f32 %v3687, %v3700
        %v3704 = vadd.f32 %v3688, %v3700
        %v3705 = vadd.f32 %v3689, %v3700
        %v3706 = vadd.f32 %v3690, %v3700
        %v3707 = vadd.f32 %v3691, %v3700
        %v3708 = vadd.f32 %v3692, %v3700
        %v3709 = vadd.f32 %v3693, %v3700
        %v3710 = vmax.f32 %v3702, 0.0
        %v3711 = vmax.f32 %v3703, 0.0
        %v3712 = vmax.f32 %v3704, 0.0
        %v3713 = vmax.f32 %v3705, 0.0
        %v3714 = vmax.f32 %v3706, 0.0
        %v3715 = vmax.f32 %v3707, 0.0
        %v3716 = vmax.f32 %v3708, 0.0
        %v3717 = vmax.f32 %v3709, 0.0
        %v3718 = vadd.f32 %v3058, %v3404
        %v3719 = vadd.f32 %v3059, %v3405
        %v3720 = vadd.f32 %v3060, %v3406
        %v3721 = vadd.f32 %v3061, %v3407
        %v3722 = vadd.f32 %v3062, %v3408
        %v3723 = vadd.f32 %v3063, %v3409
        %v3724 = vadd.f32 %v3064, %v3410
        %v3725 = vadd.f32 %v3065, %v3411
        %v3726 = vadd.f32 %v3066, %v3412
        %v3727 = vadd.f32 %v3067, %v3413
        %v3728 = vadd.f32 %v3068, %v3414
        %v3729 = vadd.f32 %v3069, %v3415
        %v3730 = vadd.f32 %v3070, %v3416
        %v3731 = vadd.f32 %v3071, %v3417
        %v3732 = vadd.f32 %v3072, %v3418
        %v3733 = vadd.f32 %v3073, %v3419
        %v3734 = vadd.f32 %v3074, %v3420
        %v3735 = vadd.f32 %v3075, %v3421
        %v3736 = vadd.f32 %v3076, %v3422
        %v3737 = vadd.f32 %v3077, %v3423
        %v3738 = vadd.f32 %v3078, %v3424
        %v3739 = vadd.f32 %v3079, %v3425
        %v3740 = vadd.f32 %v3080, %v3426
        %v3741 = vadd.f32 %v3081, %v3427
        %v3742 = vadd.f32 %v3082, %v3428
        %v3743 = vadd.f32 %v3083, %v3429
        %v3744 = vadd.f32 %v3084, %v3430
        %v3745 = vadd.f32 %v3085, %v3431
        %v3746 = vadd.f32 %v3086, %v3432
        %v3747 = vadd.f32 %v3087, %v3433
        %v3748 = vadd.f32 %v3088, %v3434
        %v3749 = vadd.f32 %v3089, %v3435
        %v3750 = vadd.f32 %v3718, %v3710
        %v3751 = vadd.f32 %v3719, %v3710
        %v3752 = vadd.f32 %v3720, %v3711
        %v3753 = vadd.f32 %v3721, %v3711
        %v3754 = vadd.f32 %v3722, %v3712
        %v3755 = vadd.f32 %v3723, %v3712
        %v3756 = vadd.f32 %v3724, %v3713
        %v3757 = vadd.f32 %v3725, %v3713
        %v3758 = vadd.f32 %v3726, %v3714
        %v3759 = vadd.f32 %v3727, %v3714
        %v3760 = vadd.f32 %v3728, %v3715
        %v3761 = vadd.f32 %v3729, %v3715
        %v3762 = vadd.f32 %v3730, %v3716
        %v3763 = vadd.f32 %v3731, %v3716
        %v3764 = vadd.f32 %v3732, %v3717
        %v3765 = vadd.f32 %v3733, %v3717
        %v3766 = vadd.f32 %v3734, %v3710
        %v3767 = vadd.f32 %v3735, %v3710
        %v3768 = vadd.f32 %v3736, %v3711
        %v3769 = vadd.f32 %v3737, %v3711
        %v3770 = vadd.f32 %v3738, %v3712
        %v3771 = vadd.f32 %v3739, %v3712
        %v3772 = vadd.f32 %v3740, %v3713
        %v3773 = vadd.f32 %v3741, %v3713
        %v3774 = vadd.f32 %v3742, %v3714
        %v3775 = vadd.f32 %v3743, %v3714
        %v3776 = vadd.f32 %v3744, %v3715
        %v3777 = vadd.f32 %v3745, %v3715
        %v3778 = vadd.f32 %v3746, %v3716
        %v3779 = vadd.f32 %v3747, %v3716
        %v3780 = vadd.f32 %v3748, %v3717
        %v3781 = vadd.f32 %v3749, %v3717
        %v3782 = vpack.c.bf16 %v3751, %v3750
        %v3783 = vpack.c.bf16 %v3753, %v3752
        %v3784 = vpack.c.bf16 %v3755, %v3754
        %v3785 = vpack.c.bf16 %v3757, %v3756
        %v3786 = vpack.c.bf16 %v3759, %v3758
        %v3787 = vpack.c.bf16 %v3761, %v3760
        %v3788 = vpack.c.bf16 %v3763, %v3762
        %v3789 = vpack.c.bf16 %v3765, %v3764
        %v3790 = vpack.c.bf16 %v3767, %v3766
        %v3791 = vpack.c.bf16 %v3769, %v3768
        %v3792 = vpack.c.bf16 %v3771, %v3770
        %v3793 = vpack.c.bf16 %v3773, %v3772
        %v3794 = vpack.c.bf16 %v3775, %v3774
        %v3795 = vpack.c.bf16 %v3777, %v3776
        %v3796 = vpack.c.bf16 %v3779, %v3778
        %v3797 = vpack.c.bf16 %v3781, %v3780
        %s3798 = scalar_lea.vmem %s2, 56
        %v3799 = vld [vmem:[%s3798] sm:$0xf]
        %v3800 = vld [vmem:[%s3798 + $0x4] sm:$0xf]
        %v3803 = vunpack.c.l.b16 %v3799
        %v3804 = vunpack.c.l.b16 %v3800
        %v3805 = vpack.c.b16 %v3804, %v3803
        %v3808 = vsel %vm300, %v3782, 0
        %v3811 = vsel %vm300, %v3783, 0
        %v3814 = vsel %vm300, %v3784, 0
        %v3817 = vsel %vm300, %v3785, 0
        %v3820 = vsel %vm300, %v3786, 0
        %v3823 = vsel %vm300, %v3787, 0
        %v3826 = vsel %vm300, %v3788, 0
        %v3829 = vsel %vm300, %v3789, 0
        %v3832 = vsel %vm300, %v3790, 0
        %v3835 = vsel %vm300, %v3791, 0
        %v3838 = vsel %vm300, %v3792, 0
        %v3841 = vsel %vm300, %v3793, 0
        %v3844 = vsel %vm300, %v3794, 0
        %v3847 = vsel %vm300, %v3795, 0
        %v3850 = vsel %vm300, %v3796, 0
        %v3853 = vsel %vm300, %v3797, 0
        %3855 = vmatprep.subr.bf16.mxu0 0
        %3856 = vmatpush1.bf16.msra.mxu0 %v3805
        %3857 = vmatprep.subr.bf16.mxu0 0
        %3858 = vmatpush1.bf16.msra.mxu0 0
        %3859 = vmatprep.subr.bf16.mxu0 0
        %3860 = vmatpush1.bf16.msra.mxu0 0
        %3861 = vmatprep.subr.bf16.mxu0 0
        %3862 = vmatpush1.bf16.msra.mxu0 0
        %3863 = vmatprep.subr.bf16.mxu0 0
        %3864 = vmatpush1.bf16.msra.mxu0 0
        %3865 = vmatprep.subr.bf16.mxu0 0
        %3866 = vmatpush1.bf16.msra.mxu0 0
        %3867 = vmatprep.subr.bf16.mxu0 0
        %3868 = vmatpush1.bf16.msra.mxu0 0
        %3869 = vmatprep.subr.bf16.mxu0 0
        %3870 = vmatpush1.bf16.msra.mxu0 0
        %3871 = vmatprep.subr.bf16.mxu0 0
        %3872 = vmatpush1.bf16.msra.mxu0 0
        %3873 = vmatprep.subr.bf16.mxu0 0
        %3874 = vmatpush1.bf16.msra.mxu0 0
        %3875 = vmatprep.subr.bf16.mxu0 0
        %3876 = vmatpush1.bf16.msra.mxu0 0
        %3877 = vmatprep.subr.bf16.mxu0 0
        %3878 = vmatpush1.bf16.msra.mxu0 0
        %3879 = vmatprep.subr.bf16.mxu0 0
        %3880 = vmatpush1.bf16.msra.mxu0 0
        %3881 = vmatprep.subr.bf16.mxu0 0
        %3882 = vmatpush1.bf16.msra.mxu0 0
        %3883 = vmatprep.subr.bf16.mxu0 0
        %3884 = vmatpush1.bf16.msra.mxu0 0
        %3885 = vmatprep.subr.bf16.mxu0 0
        %3886 = vmatpush1.bf16.msra.mxu0 0
        %3887 = vmatprep.mubr.bf16.mxu0 0
        %3888 = vmatmul.mubr.bf16.gmra.mrb[0].mxu0 %v3808
        %v3889 = vpop.f32.mrb[0].mxu0
        %v3890 = vadd.f32 0.0, %v3889
        %v3891 = vpop.f32.mrb[0].mxu0
        %v3892 = vpop.f32.mrb[0].mxu0
        %v3893 = vadd.f32 0.0, %v3892
        %v3894 = vpop.f32.mrb[0].mxu0
        %3895 = vmatprep.mubr.bf16.mxu0 0
        %3896 = vmatmul.mubr.bf16.gmra.mrb[0].mxu0 %v3811
        %v3897 = vpop.f32.mrb[0].mxu0
        %v3898 = vadd.f32 0.0, %v3897
        %v3899 = vpop.f32.mrb[0].mxu0
        %v3900 = vpop.f32.mrb[0].mxu0
        %v3901 = vadd.f32 0.0, %v3900
        %v3902 = vpop.f32.mrb[0].mxu0
        %3903 = vmatprep.mubr.bf16.mxu0 0
        %3904 = vmatmul.mubr.bf16.gmra.mrb[0].mxu0 %v3814
        %v3905 = vpop.f32.mrb[0].mxu0
        %v3906 = vadd.f32 0.0, %v3905
        %v3907 = vpop.f32.mrb[0].mxu0
        %v3908 = vpop.f32.mrb[0].mxu0
        %v3909 = vadd.f32 0.0, %v3908
        %v3910 = vpop.f32.mrb[0].mxu0
        %3911 = vmatprep.mubr.bf16.mxu0 0
        %3912 = vmatmul.mubr.bf16.gmra.mrb[0].mxu0 %v3817
        %v3913 = vpop.f32.mrb[0].mxu0
        %v3914 = vadd.f32 0.0, %v3913
        %v3915 = vpop.f32.mrb[0].mxu0
        %v3916 = vpop.f32.mrb[0].mxu0
        %v3917 = vadd.f32 0.0, %v3916
        %v3918 = vpop.f32.mrb[0].mxu0
        %3919 = vmatprep.mubr.bf16.mxu0 0
        %3920 = vmatmul.mubr.bf16.gmra.mrb[0].mxu0 %v3820
        %v3921 = vpop.f32.mrb[0].mxu0
        %v3922 = vadd.f32 0.0, %v3921
        %v3923 = vpop.f32.mrb[0].mxu0
        %v3924 = vpop.f32.mrb[0].mxu0
        %v3925 = vadd.f32 0.0, %v3924
        %v3926 = vpop.f32.mrb[0].mxu0
        %3927 = vmatprep.mubr.bf16.mxu0 0
        %3928 = vmatmul.mubr.bf16.gmra.mrb[0].mxu0 %v3823
        %v3929 = vpop.f32.mrb[0].mxu0
        %v3930 = vadd.f32 0.0, %v3929
        %v3931 = vpop.f32.mrb[0].mxu0
        %v3932 = vpop.f32.mrb[0].mxu0
        %v3933 = vadd.f32 0.0, %v3932
        %v3934 = vpop.f32.mrb[0].mxu0
        %3935 = vmatprep.mubr.bf16.mxu0 0
        %3936 = vmatmul.mubr.bf16.gmra.mrb[0].mxu0 %v3826
        %v3937 = vpop.f32.mrb[0].mxu0
        %v3938 = vadd.f32 0.0, %v3937
        %v3939 = vpop.f32.mrb[0].mxu0
        %v3940 = vpop.f32.mrb[0].mxu0
        %v3941 = vadd.f32 0.0, %v3940
        %v3942 = vpop.f32.mrb[0].mxu0
        %3943 = vmatprep.mubr.bf16.mxu0 0
        %3944 = vmatmul.mubr.bf16.gmra.mrb[0].mxu0 %v3829
        %v3945 = vpop.f32.mrb[0].mxu0
        %v3946 = vadd.f32 0.0, %v3945
        %v3947 = vpop.f32.mrb[0].mxu0
        %v3948 = vpop.f32.mrb[0].mxu0
        %v3949 = vadd.f32 0.0, %v3948
        %v3950 = vpop.f32.mrb[0].mxu0
        %3951 = vmatprep.mubr.bf16.mxu0 0
        %3952 = vmatmul.mubr.bf16.gmra.mrb[0].mxu0 %v3832
        %v3953 = vpop.f32.mrb[0].mxu0
        %v3954 = vadd.f32 0.0, %v3953
        %v3955 = vpop.f32.mrb[0].mxu0
        %v3956 = vpop.f32.mrb[0].mxu0
        %v3957 = vadd.f32 0.0, %v3956
        %v3958 = vpop.f32.mrb[0].mxu0
        %3959 = vmatprep.mubr.bf16.mxu0 0
        %3960 = vmatmul.mubr.bf16.gmra.mrb[0].mxu0 %v3835
        %v3961 = vpop.f32.mrb[0].mxu0
        %v3962 = vadd.f32 0.0, %v3961
        %v3963 = vpop.f32.mrb[0].mxu0
        %v3964 = vpop.f32.mrb[0].mxu0
        %v3965 = vadd.f32 0.0, %v3964
        %v3966 = vpop.f32.mrb[0].mxu0
        %3967 = vmatprep.mubr.bf16.mxu0 0
        %3968 = vmatmul.mubr.bf16.gmra.mrb[0].mxu0 %v3838
        %v3969 = vpop.f32.mrb[0].mxu0
        %v3970 = vadd.f32 0.0, %v3969
        %v3971 = vpop.f32.mrb[0].mxu0
        %v3972 = vpop.f32.mrb[0].mxu0
        %v3973 = vadd.f32 0.0, %v3972
        %v3974 = vpop.f32.mrb[0].mxu0
        %3975 = vmatprep.mubr.bf16.mxu0 0
        %3976 = vmatmul.mubr.bf16.gmra.mrb[0].mxu0 %v3841
        %v3977 = vpop.f32.mrb[0].mxu0
        %v3978 = vadd.f32 0.0, %v3977
        %v3979 = vpop.f32.mrb[0].mxu0
        %v3980 = vpop.f32.mrb[0].mxu0
        %v3981 = vadd.f32 0.0, %v3980
        %v3982 = vpop.f32.mrb[0].mxu0
        %3983 = vmatprep.mubr.bf16.mxu0 0
        %3984 = vmatmul.mubr.bf16.gmra.mrb[0].mxu0 %v3844
        %v3985 = vpop.f32.mrb[0].mxu0
        %v3986 = vadd.f32 0.0, %v3985
        %v3987 = vpop.f32.mrb[0].mxu0
        %v3988 = vpop.f32.mrb[0].mxu0
        %v3989 = vadd.f32 0.0, %v3988
        %v3990 = vpop.f32.mrb[0].mxu0
        %3991 = vmatprep.mubr.bf16.mxu0 0
        %3992 = vmatmul.mubr.bf16.gmra.mrb[0].mxu0 %v3847
        %v3993 = vpop.f32.mrb[0].mxu0
        %v3994 = vadd.f32 0.0, %v3993
        %v3995 = vpop.f32.mrb[0].mxu0
        %v3996 = vpop.f32.mrb[0].mxu0
        %v3997 = vadd.f32 0.0, %v3996
        %v3998 = vpop.f32.mrb[0].mxu0
        %3999 = vmatprep.mubr.bf16.mxu0 0
        %4000 = vmatmul.mubr.bf16.gmra.mrb[0].mxu0 %v3850
        %v4001 = vpop.f32.mrb[0].mxu0
        %v4002 = vadd.f32 0.0, %v4001
        %v4003 = vpop.f32.mrb[0].mxu0
        %v4004 = vpop.f32.mrb[0].mxu0
        %v4005 = vadd.f32 0.0, %v4004
        %v4006 = vpop.f32.mrb[0].mxu0
        %4007 = vmatprep.mubr.bf16.mxu0 0
        %4008 = vmatmul.mubr.bf16.gmra.mrb[0].mxu0 %v3853
        %v4009 = vpop.f32.mrb[0].mxu0
        %v4010 = vadd.f32 0.0, %v4009
        %v4011 = vpop.f32.mrb[0].mxu0
        %v4012 = vpop.f32.mrb[0].mxu0
        %v4013 = vadd.f32 0.0, %v4012
        %v4014 = vpop.f32.mrb[0].mxu0
        %4015 = vdwg.mxu0
        %v4032 = vrot.slane %v2714, 1
        %v4033 = vrot.slane %v2712, 1
        %v4034 = vrot.slane %v2716, 1
        %v4035 = vrot.slane %v2718, 1
        %v4036 = vrot.slane %v2720, 1
        %v4037 = vrot.slane %v2722, 1
        %v4038 = vrot.slane %v2724, 1
        %v4039 = vrot.slane %v2726, 1
        %v4040 = vrot.slane %v2728, 1
        %v4041 = vrot.slane %v2730, 1
        %v4042 = vrot.slane %v2732, 1
        %v4043 = vrot.slane %v2734, 1
        %v4044 = vrot.slane %v2736, 1
        %v4045 = vrot.slane %v2738, 1
        %v4046 = vrot.slane %v2740, 1
        %v4047 = vrot.slane %v2742, 1
        %v4080 = vrot.slane %v2714, 7
        %v4081 = vrot.slane %v2715, 7
        %v4082 = vsel %vm1615, %v4080, %v4081
        %v4083 = vrot.slane %v2712, 7
        %v4084 = vrot.slane %v2713, 7
        %v4085 = vsel %vm1615, %v4083, %v4084
        %v4086 = vrot.slane %v2716, 7
        %v4087 = vrot.slane %v2717, 7
        %v4088 = vsel %vm1615, %v4086, %v4087
        %v4089 = vrot.slane %v2718, 7
        %v4090 = vrot.slane %v2719, 7
        %v4091 = vsel %vm1615, %v4089, %v4090
        %v4092 = vrot.slane %v2720, 7
        %v4093 = vrot.slane %v2721, 7
        %v4094 = vsel %vm1615, %v4092, %v4093
        %v4095 = vrot.slane %v2722, 7
        %v4096 = vrot.slane %v2723, 7
        %v4097 = vsel %vm1615, %v4095, %v4096
        %v4098 = vrot.slane %v2724, 7
        %v4099 = vrot.slane %v2725, 7
        %v4100 = vsel %vm1615, %v4098, %v4099
        %v4101 = vrot.slane %v2726, 7
        %v4102 = vrot.slane %v2727, 7
        %v4103 = vsel %vm1615, %v4101, %v4102
        %v4104 = vrot.slane %v2728, 7
        %v4105 = vrot.slane %v2729, 7
        %v4106 = vsel %vm1615, %v4104, %v4105
        %v4107 = vrot.slane %v2730, 7
        %v4108 = vrot.slane %v2731, 7
        %v4109 = vsel %vm1615, %v4107, %v4108
        %v4110 = vrot.slane %v2732, 7
        %v4111 = vrot.slane %v2733, 7
        %v4112 = vsel %vm1615, %v4110, %v4111
        %v4113 = vrot.slane %v2734, 7
        %v4114 = vrot.slane %v2735, 7
        %v4115 = vsel %vm1615, %v4113, %v4114
        %v4116 = vrot.slane %v2736, 7
        %v4117 = vrot.slane %v2737, 7
        %v4118 = vsel %vm1615, %v4116, %v4117
        %v4119 = vrot.slane %v2738, 7
        %v4120 = vrot.slane %v2739, 7
        %v4121 = vsel %vm1615, %v4119, %v4120
        %v4122 = vrot.slane %v2740, 7
        %v4123 = vrot.slane %v2741, 7
        %v4124 = vsel %vm1615, %v4122, %v4123
        %v4125 = vrot.slane %v2742, 7
        %v4126 = vrot.slane %v2743, 7
        %v4127 = vsel %vm1615, %v4125, %v4126
        %v4176 = vrot.slane %v2715, 5
        %v4177 = vrot.slane %v2713, 5
        %v4178 = vrot.slane %v2717, 5
        %v4179 = vrot.slane %v2719, 5
        %v4180 = vrot.slane %v2721, 5
        %v4181 = vrot.slane %v2723, 5
        %v4182 = vrot.slane %v2725, 5
        %v4183 = vrot.slane %v2727, 5
        %v4184 = vrot.slane %v2729, 5
        %v4185 = vrot.slane %v2731, 5
        %v4186 = vrot.slane %v2733, 5
        %v4187 = vrot.slane %v2735, 5
        %v4188 = vrot.slane %v2737, 5
        %v4189 = vrot.slane %v2739, 5
        %v4190 = vrot.slane %v2741, 5
        %v4191 = vrot.slane %v2743, 5
        %v4208 = vsel %vm1615, %v4032, %v4080
        %v4209 = vsel %vm1615, %v4033, %v4083
        %v4210 = vsel %vm1615, %v4034, %v4086
        %v4211 = vsel %vm1615, %v4035, %v4089
        %v4212 = vsel %vm1615, %v4036, %v4092
        %v4213 = vsel %vm1615, %v4037, %v4095
        %v4214 = vsel %vm1615, %v4038, %v4098
        %v4215 = vsel %vm1615, %v4039, %v4101
        %v4216 = vsel %vm1615, %v4040, %v4104
        %v4217 = vsel %vm1615, %v4041, %v4107
        %v4218 = vsel %vm1615, %v4042, %v4110
        %v4219 = vsel %vm1615, %v4043, %v4113
        %v4220 = vsel %vm1615, %v4044, %v4116
        %v4221 = vsel %vm1615, %v4045, %v4119
        %v4222 = vsel %vm1615, %v4046, %v4122
        %v4223 = vsel %vm1615, %v4047, %v4125
        %v4224 = vsel %vm1615, %v4081, %v4176
        %v4225 = vsel %vm1615, %v4084, %v4177
        %v4226 = vsel %vm1615, %v4087, %v4178
        %v4227 = vsel %vm1615, %v4090, %v4179
        %v4228 = vsel %vm1615, %v4093, %v4180
        %v4229 = vsel %vm1615, %v4096, %v4181
        %v4230 = vsel %vm1615, %v4099, %v4182
        %v4231 = vsel %vm1615, %v4102, %v4183
        %v4232 = vsel %vm1615, %v4105, %v4184
        %v4233 = vsel %vm1615, %v4108, %v4185
        %v4234 = vsel %vm1615, %v4111, %v4186
        %v4235 = vsel %vm1615, %v4114, %v4187
        %v4236 = vsel %vm1615, %v4117, %v4188
        %v4237 = vsel %vm1615, %v4120, %v4189
        %v4238 = vsel %vm1615, %v4123, %v4190
        %v4239 = vsel %vm1615, %v4126, %v4191
        %v4240 = vpack.c.bf16 %v4082, %v4208
        %v4241 = vpack.c.bf16 %v4224, %v4224
        %v4242 = vpack.c.bf16 %v4085, %v4209
        %v4243 = vpack.c.bf16 %v4225, %v4225
        %v4244 = vpack.c.bf16 %v4088, %v4210
        %v4245 = vpack.c.bf16 %v4226, %v4226
        %v4246 = vpack.c.bf16 %v4091, %v4211
        %v4247 = vpack.c.bf16 %v4227, %v4227
        %v4248 = vpack.c.bf16 %v4094, %v4212
        %v4249 = vpack.c.bf16 %v4228, %v4228
        %v4250 = vpack.c.bf16 %v4097, %v4213
        %v4251 = vpack.c.bf16 %v4229, %v4229
        %v4252 = vpack.c.bf16 %v4100, %v4214
        %v4253 = vpack.c.bf16 %v4230, %v4230
        %v4254 = vpack.c.bf16 %v4103, %v4215
        %v4255 = vpack.c.bf16 %v4231, %v4231
        %v4256 = vpack.c.bf16 %v4106, %v4216
        %v4257 = vpack.c.bf16 %v4232, %v4232
        %v4258 = vpack.c.bf16 %v4109, %v4217
        %v4259 = vpack.c.bf16 %v4233, %v4233
        %v4260 = vpack.c.bf16 %v4112, %v4218
        %v4261 = vpack.c.bf16 %v4234, %v4234
        %v4262 = vpack.c.bf16 %v4115, %v4219
        %v4263 = vpack.c.bf16 %v4235, %v4235
        %v4264 = vpack.c.bf16 %v4118, %v4220
        %v4265 = vpack.c.bf16 %v4236, %v4236
        %v4266 = vpack.c.bf16 %v4121, %v4221
        %v4267 = vpack.c.bf16 %v4237, %v4237
        %v4268 = vpack.c.bf16 %v4124, %v4222
        %v4269 = vpack.c.bf16 %v4238, %v4238
        %v4270 = vpack.c.bf16 %v4127, %v4223
        %v4271 = vpack.c.bf16 %v4239, %v4239
        %v4273 = vshrl.u32 %v4240, 16
        %v4275 = vshll.u32 %v4240, 16
        %v4277 = vrot.slane %v4275, 1
        %v4278 = vor.u32 %v4273, %v4277
        %v4280 = vshll.u32 %v4241, 16
        %v4282 = vrot.slane %v4280, 1
        %v4283 = vsel %vm1808, %v4278, %v4282
        %v4285 = vshrl.u32 %v4242, 16
        %v4287 = vshll.u32 %v4242, 16
        %v4289 = vrot.slane %v4287, 1
        %v4290 = vor.u32 %v4285, %v4289
        %v4292 = vshll.u32 %v4243, 16
        %v4294 = vrot.slane %v4292, 1
        %v4295 = vsel %vm1808, %v4290, %v4294
        %v4297 = vshrl.u32 %v4244, 16
        %v4299 = vshll.u32 %v4244, 16
        %v4301 = vrot.slane %v4299, 1
        %v4302 = vor.u32 %v4297, %v4301
        %v4304 = vshll.u32 %v4245, 16
        %v4306 = vrot.slane %v4304, 1
        %v4307 = vsel %vm1808, %v4302, %v4306
        %v4309 = vshrl.u32 %v4246, 16
        %v4311 = vshll.u32 %v4246, 16
        %v4313 = vrot.slane %v4311, 1
        %v4314 = vor.u32 %v4309, %v4313
        %v4316 = vshll.u32 %v4247, 16
        %v4318 = vrot.slane %v4316, 1
        %v4319 = vsel %vm1808, %v4314, %v4318
        %v4321 = vshrl.u32 %v4248, 16
        %v4323 = vshll.u32 %v4248, 16
        %v4325 = vrot.slane %v4323, 1
        %v4326 = vor.u32 %v4321, %v4325
        %v4328 = vshll.u32 %v4249, 16
        %v4330 = vrot.slane %v4328, 1
        %v4331 = vsel %vm1808, %v4326, %v4330
        %v4333 = vshrl.u32 %v4250, 16
        %v4335 = vshll.u32 %v4250, 16
        %v4337 = vrot.slane %v4335, 1
        %v4338 = vor.u32 %v4333, %v4337
        %v4340 = vshll.u32 %v4251, 16
        %v4342 = vrot.slane %v4340, 1
        %v4343 = vsel %vm1808, %v4338, %v4342
        %v4345 = vshrl.u32 %v4252, 16
        %v4347 = vshll.u32 %v4252, 16
        %v4349 = vrot.slane %v4347, 1
        %v4350 = vor.u32 %v4345, %v4349
        %v4352 = vshll.u32 %v4253, 16
        %v4354 = vrot.slane %v4352, 1
        %v4355 = vsel %vm1808, %v4350, %v4354
        %v4357 = vshrl.u32 %v4254, 16
        %v4359 = vshll.u32 %v4254, 16
        %v4361 = vrot.slane %v4359, 1
        %v4362 = vor.u32 %v4357, %v4361
        %v4364 = vshll.u32 %v4255, 16
        %v4366 = vrot.slane %v4364, 1
        %v4367 = vsel %vm1808, %v4362, %v4366
        %v4369 = vshrl.u32 %v4256, 16
        %v4371 = vshll.u32 %v4256, 16
        %v4373 = vrot.slane %v4371, 1
        %v4374 = vor.u32 %v4369, %v4373
        %v4376 = vshll.u32 %v4257, 16
        %v4378 = vrot.slane %v4376, 1
        %v4379 = vsel %vm1808, %v4374, %v4378
        %v4381 = vshrl.u32 %v4258, 16
        %v4383 = vshll.u32 %v4258, 16
        %v4385 = vrot.slane %v4383, 1
        %v4386 = vor.u32 %v4381, %v4385
        %v4388 = vshll.u32 %v4259, 16
        %v4390 = vrot.slane %v4388, 1
        %v4391 = vsel %vm1808, %v4386, %v4390
        %v4393 = vshrl.u32 %v4260, 16
        %v4395 = vshll.u32 %v4260, 16
        %v4397 = vrot.slane %v4395, 1
        %v4398 = vor.u32 %v4393, %v4397
        %v4400 = vshll.u32 %v4261, 16
        %v4402 = vrot.slane %v4400, 1
        %v4403 = vsel %vm1808, %v4398, %v4402
        %v4405 = vshrl.u32 %v4262, 16
        %v4407 = vshll.u32 %v4262, 16
        %v4409 = vrot.slane %v4407, 1
        %v4410 = vor.u32 %v4405, %v4409
        %v4412 = vshll.u32 %v4263, 16
        %v4414 = vrot.slane %v4412, 1
        %v4415 = vsel %vm1808, %v4410, %v4414
        %v4417 = vshrl.u32 %v4264, 16
        %v4419 = vshll.u32 %v4264, 16
        %v4421 = vrot.slane %v4419, 1
        %v4422 = vor.u32 %v4417, %v4421
        %v4424 = vshll.u32 %v4265, 16
        %v4426 = vrot.slane %v4424, 1
        %v4427 = vsel %vm1808, %v4422, %v4426
        %v4429 = vshrl.u32 %v4266, 16
        %v4431 = vshll.u32 %v4266, 16
        %v4433 = vrot.slane %v4431, 1
        %v4434 = vor.u32 %v4429, %v4433
        %v4436 = vshll.u32 %v4267, 16
        %v4438 = vrot.slane %v4436, 1
        %v4439 = vsel %vm1808, %v4434, %v4438
        %v4441 = vshrl.u32 %v4268, 16
        %v4443 = vshll.u32 %v4268, 16
        %v4445 = vrot.slane %v4443, 1
        %v4446 = vor.u32 %v4441, %v4445
        %v4448 = vshll.u32 %v4269, 16
        %v4450 = vrot.slane %v4448, 1
        %v4451 = vsel %vm1808, %v4446, %v4450
        %v4453 = vshrl.u32 %v4270, 16
        %v4455 = vshll.u32 %v4270, 16
        %v4457 = vrot.slane %v4455, 1
        %v4458 = vor.u32 %v4453, %v4457
        %v4460 = vshll.u32 %v4271, 16
        %v4462 = vrot.slane %v4460, 1
        %v4463 = vsel %vm1808, %v4458, %v4462
        %4464 = vrot.lane.b32.xlu0 %v4283, 16
        %v4465 = vpop.permute.xlu0 %4464
        %4466 = vrot.lane.b32.xlu0 %v4295, 16
        %v4467 = vpop.permute.xlu0 %4466
        %4468 = vrot.lane.b32.xlu0 %v4307, 16
        %v4469 = vpop.permute.xlu0 %4468
        %4470 = vrot.lane.b32.xlu0 %v4319, 16
        %v4471 = vpop.permute.xlu0 %4470
        %4472 = vrot.lane.b32.xlu0 %v4331, 16
        %v4473 = vpop.permute.xlu0 %4472
        %4474 = vrot.lane.b32.xlu0 %v4343, 16
        %v4475 = vpop.permute.xlu0 %4474
        %4476 = vrot.lane.b32.xlu0 %v4355, 16
        %v4477 = vpop.permute.xlu0 %4476
        %4478 = vrot.lane.b32.xlu0 %v4367, 16
        %v4479 = vpop.permute.xlu0 %4478
        %4480 = vrot.lane.b32.xlu0 %v4379, 16
        %v4481 = vpop.permute.xlu0 %4480
        %4482 = vrot.lane.b32.xlu0 %v4391, 16
        %v4483 = vpop.permute.xlu0 %4482
        %4484 = vrot.lane.b32.xlu0 %v4403, 16
        %v4485 = vpop.permute.xlu0 %4484
        %4486 = vrot.lane.b32.xlu0 %v4415, 16
        %v4487 = vpop.permute.xlu0 %4486
        %4488 = vrot.lane.b32.xlu0 %v4427, 16
        %v4489 = vpop.permute.xlu0 %4488
        %4490 = vrot.lane.b32.xlu0 %v4439, 16
        %v4491 = vpop.permute.xlu0 %4490
        %4492 = vrot.lane.b32.xlu0 %v4451, 16
        %v4493 = vpop.permute.xlu0 %4492
        %4494 = vrot.lane.b32.xlu0 %v4463, 16
        %v4495 = vpop.permute.xlu0 %4494
        %v4528 = vrot.slane %v4240, 1
        %v4529 = vrot.slane %v4241, 1
        %v4530 = vsel %vm2065, %v4528, %v4529
        %v4531 = vrot.slane %v4242, 1
        %v4532 = vrot.slane %v4243, 1
        %v4533 = vsel %vm2065, %v4531, %v4532
        %v4534 = vrot.slane %v4244, 1
        %v4535 = vrot.slane %v4245, 1
        %v4536 = vsel %vm2065, %v4534, %v4535
        %v4537 = vrot.slane %v4246, 1
        %v4538 = vrot.slane %v4247, 1
        %v4539 = vsel %vm2065, %v4537, %v4538
        %v4540 = vrot.slane %v4248, 1
        %v4541 = vrot.slane %v4249, 1
        %v4542 = vsel %vm2065, %v4540, %v4541
        %v4543 = vrot.slane %v4250, 1
        %v4544 = vrot.slane %v4251, 1
        %v4545 = vsel %vm2065, %v4543, %v4544
        %v4546 = vrot.slane %v4252, 1
        %v4547 = vrot.slane %v4253, 1
        %v4548 = vsel %vm2065, %v4546, %v4547
        %v4549 = vrot.slane %v4254, 1
        %v4550 = vrot.slane %v4255, 1
        %v4551 = vsel %vm2065, %v4549, %v4550
        %v4552 = vrot.slane %v4256, 1
        %v4553 = vrot.slane %v4257, 1
        %v4554 = vsel %vm2065, %v4552, %v4553
        %v4555 = vrot.slane %v4258, 1
        %v4556 = vrot.slane %v4259, 1
        %v4557 = vsel %vm2065, %v4555, %v4556
        %v4558 = vrot.slane %v4260, 1
        %v4559 = vrot.slane %v4261, 1
        %v4560 = vsel %vm2065, %v4558, %v4559
        %v4561 = vrot.slane %v4262, 1
        %v4562 = vrot.slane %v4263, 1
        %v4563 = vsel %vm2065, %v4561, %v4562
        %v4564 = vrot.slane %v4264, 1
        %v4565 = vrot.slane %v4265, 1
        %v4566 = vsel %vm2065, %v4564, %v4565
        %v4567 = vrot.slane %v4266, 1
        %v4568 = vrot.slane %v4267, 1
        %v4569 = vsel %vm2065, %v4567, %v4568
        %v4570 = vrot.slane %v4268, 1
        %v4571 = vrot.slane %v4269, 1
        %v4572 = vsel %vm2065, %v4570, %v4571
        %v4573 = vrot.slane %v4270, 1
        %v4574 = vrot.slane %v4271, 1
        %v4575 = vsel %vm2065, %v4573, %v4574
        %4576 = vrot.lane.b32.xlu0 %v4530, 32
        %v4577 = vpop.permute.xlu0 %4576
        %4578 = vrot.lane.b32.xlu0 %v4533, 32
        %v4579 = vpop.permute.xlu0 %4578
        %4580 = vrot.lane.b32.xlu0 %v4536, 32
        %v4581 = vpop.permute.xlu0 %4580
        %4582 = vrot.lane.b32.xlu0 %v4539, 32
        %v4583 = vpop.permute.xlu0 %4582
        %4584 = vrot.lane.b32.xlu0 %v4542, 32
        %v4585 = vpop.permute.xlu0 %4584
        %4586 = vrot.lane.b32.xlu0 %v4545, 32
        %v4587 = vpop.permute.xlu0 %4586
        %4588 = vrot.lane.b32.xlu0 %v4548, 32
        %v4589 = vpop.permute.xlu0 %4588
        %4590 = vrot.lane.b32.xlu0 %v4551, 32
        %v4591 = vpop.permute.xlu0 %4590
        %4592 = vrot.lane.b32.xlu0 %v4554, 32
        %v4593 = vpop.permute.xlu0 %4592
        %4594 = vrot.lane.b32.xlu0 %v4557, 32
        %v4595 = vpop.permute.xlu0 %4594
        %4596 = vrot.lane.b32.xlu0 %v4560, 32
        %v4597 = vpop.permute.xlu0 %4596
        %4598 = vrot.lane.b32.xlu0 %v4563, 32
        %v4599 = vpop.permute.xlu0 %4598
        %4600 = vrot.lane.b32.xlu0 %v4566, 32
        %v4601 = vpop.permute.xlu0 %4600
        %4602 = vrot.lane.b32.xlu0 %v4569, 32
        %v4603 = vpop.permute.xlu0 %4602
        %4604 = vrot.lane.b32.xlu0 %v4572, 32
        %v4605 = vpop.permute.xlu0 %4604
        %4606 = vrot.lane.b32.xlu0 %v4575, 32
        %v4607 = vpop.permute.xlu0 %4606
        %v4609 = vsel %vm300, %v4240, %v4465
        %v4611 = vsel %vm300, %v4242, %v4467
        %v4613 = vsel %vm300, %v4244, %v4469
        %v4615 = vsel %vm300, %v4246, %v4471
        %v4617 = vsel %vm300, %v4248, %v4473
        %v4619 = vsel %vm300, %v4250, %v4475
        %v4621 = vsel %vm300, %v4252, %v4477
        %v4623 = vsel %vm300, %v4254, %v4479
        %v4625 = vsel %vm300, %v4256, %v4481
        %v4627 = vsel %vm300, %v4258, %v4483
        %v4629 = vsel %vm300, %v4260, %v4485
        %v4631 = vsel %vm300, %v4262, %v4487
        %v4633 = vsel %vm300, %v4264, %v4489
        %v4635 = vsel %vm300, %v4266, %v4491
        %v4637 = vsel %vm300, %v4268, %v4493
        %v4639 = vsel %vm300, %v4270, %v4495
        %v4641 = vsel %vm2178, %v4609, %v4577
        %v4643 = vsel %vm2178, %v4611, %v4579
        %v4645 = vsel %vm2178, %v4613, %v4581
        %v4647 = vsel %vm2178, %v4615, %v4583
        %v4649 = vsel %vm2178, %v4617, %v4585
        %v4651 = vsel %vm2178, %v4619, %v4587
        %v4653 = vsel %vm2178, %v4621, %v4589
        %v4655 = vsel %vm2178, %v4623, %v4591
        %v4657 = vsel %vm2178, %v4625, %v4593
        %v4659 = vsel %vm2178, %v4627, %v4595
        %v4661 = vsel %vm2178, %v4629, %v4597
        %v4663 = vsel %vm2178, %v4631, %v4599
        %v4665 = vsel %vm2178, %v4633, %v4601
        %v4667 = vsel %vm2178, %v4635, %v4603
        %v4669 = vsel %vm2178, %v4637, %v4605
        %v4671 = vsel %vm2178, %v4639, %v4607
        %4688 = vrot.lane.b32.xlu0 %v4643, 48
        %v4689 = vpop.permute.xlu0 %4688
        %4690 = vrot.lane.b32.xlu0 %v4641, 48
        %v4691 = vpop.permute.xlu0 %4690
        %4692 = vrot.lane.b32.xlu0 %v4645, 48
        %v4693 = vpop.permute.xlu0 %4692
        %4694 = vrot.lane.b32.xlu0 %v4647, 48
        %v4695 = vpop.permute.xlu0 %4694
        %4696 = vrot.lane.b32.xlu0 %v4649, 48
        %v4697 = vpop.permute.xlu0 %4696
        %4698 = vrot.lane.b32.xlu0 %v4651, 48
        %v4699 = vpop.permute.xlu0 %4698
        %4700 = vrot.lane.b32.xlu0 %v4653, 48
        %v4701 = vpop.permute.xlu0 %4700
        %4702 = vrot.lane.b32.xlu0 %v4655, 48
        %v4703 = vpop.permute.xlu0 %4702
        %4704 = vrot.lane.b32.xlu0 %v4657, 48
        %v4705 = vpop.permute.xlu0 %4704
        %4706 = vrot.lane.b32.xlu0 %v4659, 48
        %v4707 = vpop.permute.xlu0 %4706
        %4708 = vrot.lane.b32.xlu0 %v4661, 48
        %v4709 = vpop.permute.xlu0 %4708
        %4710 = vrot.lane.b32.xlu0 %v4663, 48
        %v4711 = vpop.permute.xlu0 %4710
        %4712 = vrot.lane.b32.xlu0 %v4665, 48
        %v4713 = vpop.permute.xlu0 %4712
        %4714 = vrot.lane.b32.xlu0 %v4667, 48
        %v4715 = vpop.permute.xlu0 %4714
        %4716 = vrot.lane.b32.xlu0 %v4669, 48
        %v4717 = vpop.permute.xlu0 %4716
        %4718 = vrot.lane.b32.xlu0 %v4671, 48
        %v4719 = vpop.permute.xlu0 %4718
        %4720 = vrot.lane.b32.xlu0 %v4641, 96
        %v4721 = vpop.permute.xlu0 %4720
        %4722 = vrot.lane.b32.xlu0 %v4645, 96
        %v4723 = vpop.permute.xlu0 %4722
        %4724 = vrot.lane.b32.xlu0 %v4647, 96
        %v4725 = vpop.permute.xlu0 %4724
        %4726 = vrot.lane.b32.xlu0 %v4649, 96
        %v4727 = vpop.permute.xlu0 %4726
        %4728 = vrot.lane.b32.xlu0 %v4651, 96
        %v4729 = vpop.permute.xlu0 %4728
        %4730 = vrot.lane.b32.xlu0 %v4653, 96
        %v4731 = vpop.permute.xlu0 %4730
        %4732 = vrot.lane.b32.xlu0 %v4655, 96
        %v4733 = vpop.permute.xlu0 %4732
        %4734 = vrot.lane.b32.xlu0 %v4657, 96
        %v4735 = vpop.permute.xlu0 %4734
        %4736 = vrot.lane.b32.xlu0 %v4659, 96
        %v4737 = vpop.permute.xlu0 %4736
        %4738 = vrot.lane.b32.xlu0 %v4661, 96
        %v4739 = vpop.permute.xlu0 %4738
        %4740 = vrot.lane.b32.xlu0 %v4663, 96
        %v4741 = vpop.permute.xlu0 %4740
        %4742 = vrot.lane.b32.xlu0 %v4665, 96
        %v4743 = vpop.permute.xlu0 %4742
        %4744 = vrot.lane.b32.xlu0 %v4667, 96
        %v4745 = vpop.permute.xlu0 %4744
        %4746 = vrot.lane.b32.xlu0 %v4669, 96
        %v4747 = vpop.permute.xlu0 %4746
        %4748 = vrot.lane.b32.xlu0 %v4671, 96
        %v4749 = vpop.permute.xlu0 %4748
        %v4751 = vsel %vm2289, %v4641, %v4689
        %v4753 = vsel %vm2289, %v4643, %v4691
        %v4755 = vsel %vm2289, %v4641, %v4693
        %v4757 = vsel %vm2289, %v4645, %v4695
        %v4759 = vsel %vm2289, %v4647, %v4697
        %v4761 = vsel %vm2289, %v4649, %v4699
        %v4763 = vsel %vm2289, %v4651, %v4701
        %v4765 = vsel %vm2289, %v4653, %v4703
        %v4767 = vsel %vm2289, %v4655, %v4705
        %v4769 = vsel %vm2289, %v4657, %v4707
        %v4771 = vsel %vm2289, %v4659, %v4709
        %v4773 = vsel %vm2289, %v4661, %v4711
        %v4775 = vsel %vm2289, %v4663, %v4713
        %v4777 = vsel %vm2289, %v4665, %v4715
        %v4779 = vsel %vm2289, %v4667, %v4717
        %v4781 = vsel %vm2289, %v4669, %v4719
        %v4783 = vsel %vm2322, %v4751, %v4721
        %v4786 = vsel %vm2322, %v4753, %v4723
        %v4789 = vsel %vm2322, %v4755, %v4725
        %v4792 = vsel %vm2322, %v4757, %v4727
        %v4795 = vsel %vm2322, %v4759, %v4729
        %v4798 = vsel %vm2322, %v4761, %v4731
        %v4801 = vsel %vm2322, %v4763, %v4733
        %v4804 = vsel %vm2322, %v4765, %v4735
        %v4807 = vsel %vm2322, %v4767, %v4737
        %v4810 = vsel %vm2322, %v4769, %v4739
        %v4813 = vsel %vm2322, %v4771, %v4741
        %v4816 = vsel %vm2322, %v4773, %v4743
        %v4819 = vsel %vm2322, %v4775, %v4745
        %v4822 = vsel %vm2322, %v4777, %v4747
        %v4825 = vsel %vm2322, %v4779, %v4749
        %v4827 = vsel %vm2322, %v4781, %v4747
        %s4829 = scalar_lea.vmem %s1, 72
        %v4830 = vld [vmem:[%s4829] sm:$0xf]
        %v4831 = vld [vmem:[%s4829 + $0x4] sm:$0xf]
        %v4832 = vld [vmem:[%s4829 + $0x8] sm:$0xf]
        %v4833 = vld [vmem:[%s4829 + $0xc] sm:$0xf]
        %v4834 = vld [vmem:[%s4829 + $0x10] sm:$0xf]
        %v4835 = vld [vmem:[%s4829 + $0x14] sm:$0xf]
        %v4836 = vld [vmem:[%s4829 + $0x18] sm:$0xf]
        %v4837 = vld [vmem:[%s4829 + $0x1c] sm:$0xf]
        %v4838 = vld [vmem:[%s4829 + $0x20] sm:$0xf]
        %v4839 = vld [vmem:[%s4829 + $0x24] sm:$0xf]
        %v4840 = vld [vmem:[%s4829 + $0x28] sm:$0xf]
        %v4841 = vld [vmem:[%s4829 + $0x2c] sm:$0xf]
        %v4842 = vld [vmem:[%s4829 + $0x30] sm:$0xf]
        %v4843 = vld [vmem:[%s4829 + $0x34] sm:$0xf]
        %v4844 = vld [vmem:[%s4829 + $0x38] sm:$0xf]
        %v4845 = vld [vmem:[%s4829 + $0x3c] sm:$0xf]
        %v4846 = vld [vmem:[%s4829 + $0x40] sm:$0xf]
        %v4847 = vld [vmem:[%s4829 + $0x44] sm:$0xf]
        %v4866 = vunpack.c.l.b16 %v4830
        %v4867 = vunpack.c.l.b16 %v4831
        %v4868 = vunpack.c.l.b16 %v4832
        %v4869 = vunpack.c.l.b16 %v4833
        %v4870 = vunpack.c.l.b16 %v4834
        %v4871 = vunpack.c.l.b16 %v4835
        %v4872 = vunpack.c.l.b16 %v4836
        %v4873 = vunpack.c.l.b16 %v4837
        %v4874 = vunpack.c.l.b16 %v4838
        %v4875 = vunpack.c.l.b16 %v4839
        %v4876 = vunpack.c.l.b16 %v4840
        %v4877 = vunpack.c.l.b16 %v4841
        %v4878 = vunpack.c.l.b16 %v4842
        %v4879 = vunpack.c.l.b16 %v4843
        %v4880 = vunpack.c.l.b16 %v4844
        %v4881 = vunpack.c.l.b16 %v4845
        %v4882 = vunpack.c.l.b16 %v4846
        %v4883 = vunpack.c.l.b16 %v4847
        %v4884 = vpack.c.b16 %v4867, %v4866
        %v4885 = vpack.c.b16 %v4869, %v4868
        %v4886 = vpack.c.b16 %v4871, %v4870
        %v4887 = vpack.c.b16 %v4873, %v4872
        %v4888 = vpack.c.b16 %v4875, %v4874
        %v4889 = vpack.c.b16 %v4877, %v4876
        %v4890 = vpack.c.b16 %v4879, %v4878
        %v4891 = vpack.c.b16 %v4881, %v4880
        %v4892 = vpack.c.b16 %v4883, %v4882
        %v4902 = vsel %vm300, %v4721, 0
        %v4904 = vsel %vm300, %v4723, 0
        %v4906 = vsel %vm300, %v4725, 0
        %v4908 = vsel %vm300, %v4727, 0
        %v4910 = vsel %vm300, %v4729, 0
        %v4912 = vsel %vm300, %v4731, 0
        %v4914 = vsel %vm300, %v4733, 0
        %v4916 = vsel %vm300, %v4735, 0
        %v4918 = vsel %vm300, %v4737, 0
        %v4920 = vsel %vm300, %v4739, 0
        %v4922 = vsel %vm300, %v4741, 0
        %v4924 = vsel %vm300, %v4743, 0
        %v4926 = vsel %vm300, %v4745, 0
        %v4928 = vsel %vm300, %v4747, 0
        %v4930 = vsel %vm300, %v4749, 0
        %4932 = vmatprep.subr.bf16.mxu0 0
        %4933 = vmatpush1.bf16.msra.mxu0 %v4884
        %4934 = vmatprep.subr.bf16.mxu0 0
        %4935 = vmatpush1.bf16.msra.mxu0 %v4885
        %4936 = vmatprep.subr.bf16.mxu0 0
        %4937 = vmatpush1.bf16.msra.mxu0 %v4886
        %4938 = vmatprep.subr.bf16.mxu0 0
        %4939 = vmatpush1.bf16.msra.mxu0 %v4887
        %4940 = vmatprep.subr.bf16.mxu0 0
        %4941 = vmatpush1.bf16.msra.mxu0 %v4888
        %4942 = vmatprep.subr.bf16.mxu0 0
        %4943 = vmatpush1.bf16.msra.mxu0 %v4889
        %4944 = vmatprep.subr.bf16.mxu0 0
        %4945 = vmatpush1.bf16.msra.mxu0 %v4890
        %4946 = vmatprep.subr.bf16.mxu0 0
        %4947 = vmatpush1.bf16.msra.mxu0 %v4891
        %4948 = vmatprep.subr.bf16.mxu0 0
        %4949 = vmatpush1.bf16.msra.mxu0 %v4892
        %4950 = vmatprep.subr.bf16.mxu0 0
        %4951 = vmatpush1.bf16.msra.mxu0 0
        %4952 = vmatprep.subr.bf16.mxu0 0
        %4953 = vmatpush1.bf16.msra.mxu0 0
        %4954 = vmatprep.subr.bf16.mxu0 0
        %4955 = vmatpush1.bf16.msra.mxu0 0
        %4956 = vmatprep.subr.bf16.mxu0 0
        %4957 = vmatpush1.bf16.msra.mxu0 0
        %4958 = vmatprep.subr.bf16.mxu0 0
        %4959 = vmatpush1.bf16.msra.mxu0 0
        %4960 = vmatprep.subr.bf16.mxu0 0
        %4961 = vmatpush1.bf16.msra.mxu0 0
        %4962 = vmatprep.subr.bf16.mxu0 0
        %4963 = vmatpush1.bf16.msra.mxu0 0
        %4964 = vmatprep.mubr.bf16.mxu0 %v4902
        %4965 = vmatmul.mubr.bf16.gmra.mrb[0].mxu0 %v4783
        %v4966 = vpop.f32.mrb[0].mxu0
        %v4967 = vadd.f32 %v3890, %v4966
        %v4968 = vpop.f32.mrb[0].mxu0
        %v4969 = vpop.f32.mrb[0].mxu0
        %v4970 = vadd.f32 %v3893, %v4969
        %v4971 = vpop.f32.mrb[0].mxu0
        %4972 = vmatprep.mubr.bf16.mxu0 %v4904
        %4973 = vmatmul.mubr.bf16.gmra.mrb[0].mxu0 %v4786
        %v4974 = vpop.f32.mrb[0].mxu0
        %v4975 = vadd.f32 %v3898, %v4974
        %v4976 = vpop.f32.mrb[0].mxu0
        %v4977 = vpop.f32.mrb[0].mxu0
        %v4978 = vadd.f32 %v3901, %v4977
        %v4979 = vpop.f32.mrb[0].mxu0
        %4980 = vmatprep.mubr.bf16.mxu0 %v4906
        %4981 = vmatmul.mubr.bf16.gmra.mrb[0].mxu0 %v4789
        %v4982 = vpop.f32.mrb[0].mxu0
        %v4983 = vadd.f32 %v3906, %v4982
        %v4984 = vpop.f32.mrb[0].mxu0
        %v4985 = vpop.f32.mrb[0].mxu0
        %v4986 = vadd.f32 %v3909, %v4985
        %v4987 = vpop.f32.mrb[0].mxu0
        %4988 = vmatprep.mubr.bf16.mxu0 %v4908
        %4989 = vmatmul.mubr.bf16.gmra.mrb[0].mxu0 %v4792
        %v4990 = vpop.f32.mrb[0].mxu0
        %v4991 = vadd.f32 %v3914, %v4990
        %v4992 = vpop.f32.mrb[0].mxu0
        %v4993 = vpop.f32.mrb[0].mxu0
        %v4994 = vadd.f32 %v3917, %v4993
        %v4995 = vpop.f32.mrb[0].mxu0
        %4996 = vmatprep.mubr.bf16.mxu0 %v4910
        %4997 = vmatmul.mubr.bf16.gmra.mrb[0].mxu0 %v4795
        %v4998 = vpop.f32.mrb[0].mxu0
        %v4999 = vadd.f32 %v3922, %v4998
        %v5000 = vpop.f32.mrb[0].mxu0
        %v5001 = vpop.f32.mrb[0].mxu0
        %v5002 = vadd.f32 %v3925, %v5001
        %v5003 = vpop.f32.mrb[0].mxu0
        %5004 = vmatprep.mubr.bf16.mxu0 %v4912
        %5005 = vmatmul.mubr.bf16.gmra.mrb[0].mxu0 %v4798
        %v5006 = vpop.f32.mrb[0].mxu0
        %v5007 = vadd.f32 %v3930, %v5006
        %v5008 = vpop.f32.mrb[0].mxu0
        %v5009 = vpop.f32.mrb[0].mxu0
        %v5010 = vadd.f32 %v3933, %v5009
        %v5011 = vpop.f32.mrb[0].mxu0
        %5012 = vmatprep.mubr.bf16.mxu0 %v4914
        %5013 = vmatmul.mubr.bf16.gmra.mrb[0].mxu0 %v4801
        %v5014 = vpop.f32.mrb[0].mxu0
        %v5015 = vadd.f32 %v3938, %v5014
        %v5016 = vpop.f32.mrb[0].mxu0
        %v5017 = vpop.f32.mrb[0].mxu0
        %v5018 = vadd.f32 %v3941, %v5017
        %v5019 = vpop.f32.mrb[0].mxu0
        %5020 = vmatprep.mubr.bf16.mxu0 %v4916
        %5021 = vmatmul.mubr.bf16.gmra.mrb[0].mxu0 %v4804
        %v5022 = vpop.f32.mrb[0].mxu0
        %v5023 = vadd.f32 %v3946, %v5022
        %v5024 = vpop.f32.mrb[0].mxu0
        %v5025 = vpop.f32.mrb[0].mxu0
        %v5026 = vadd.f32 %v3949, %v5025
        %v5027 = vpop.f32.mrb[0].mxu0
        %5028 = vmatprep.mubr.bf16.mxu0 %v4918
        %5029 = vmatmul.mubr.bf16.gmra.mrb[0].mxu0 %v4807
        %v5030 = vpop.f32.mrb[0].mxu0
        %v5031 = vadd.f32 %v3954, %v5030
        %v5032 = vpop.f32.mrb[0].mxu0
        %v5033 = vpop.f32.mrb[0].mxu0
        %v5034 = vadd.f32 %v3957, %v5033
        %v5035 = vpop.f32.mrb[0].mxu0
        %5036 = vmatprep.mubr.bf16.mxu0 %v4920
        %5037 = vmatmul.mubr.bf16.gmra.mrb[0].mxu0 %v4810
        %v5038 = vpop.f32.mrb[0].mxu0
        %v5039 = vadd.f32 %v3962, %v5038
        %v5040 = vpop.f32.mrb[0].mxu0
        %v5041 = vpop.f32.mrb[0].mxu0
        %v5042 = vadd.f32 %v3965, %v5041
        %v5043 = vpop.f32.mrb[0].mxu0
        %5044 = vmatprep.mubr.bf16.mxu0 %v4922
        %5045 = vmatmul.mubr.bf16.gmra.mrb[0].mxu0 %v4813
        %v5046 = vpop.f32.mrb[0].mxu0
        %v5047 = vadd.f32 %v3970, %v5046
        %v5048 = vpop.f32.mrb[0].mxu0
        %v5049 = vpop.f32.mrb[0].mxu0
        %v5050 = vadd.f32 %v3973, %v5049
        %v5051 = vpop.f32.mrb[0].mxu0
        %5052 = vmatprep.mubr.bf16.mxu0 %v4924
        %5053 = vmatmul.mubr.bf16.gmra.mrb[0].mxu0 %v4816
        %v5054 = vpop.f32.mrb[0].mxu0
        %v5055 = vadd.f32 %v3978, %v5054
        %v5056 = vpop.f32.mrb[0].mxu0
        %v5057 = vpop.f32.mrb[0].mxu0
        %v5058 = vadd.f32 %v3981, %v5057
        %v5059 = vpop.f32.mrb[0].mxu0
        %5060 = vmatprep.mubr.bf16.mxu0 %v4926
        %5061 = vmatmul.mubr.bf16.gmra.mrb[0].mxu0 %v4819
        %v5062 = vpop.f32.mrb[0].mxu0
        %v5063 = vadd.f32 %v3986, %v5062
        %v5064 = vpop.f32.mrb[0].mxu0
        %v5065 = vpop.f32.mrb[0].mxu0
        %v5066 = vadd.f32 %v3989, %v5065
        %v5067 = vpop.f32.mrb[0].mxu0
        %5068 = vmatprep.mubr.bf16.mxu0 %v4928
        %5069 = vmatmul.mubr.bf16.gmra.mrb[0].mxu0 %v4822
        %v5070 = vpop.f32.mrb[0].mxu0
        %v5071 = vadd.f32 %v3994, %v5070
        %v5072 = vpop.f32.mrb[0].mxu0
        %v5073 = vpop.f32.mrb[0].mxu0
        %v5074 = vadd.f32 %v3997, %v5073
        %v5075 = vpop.f32.mrb[0].mxu0
        %5076 = vmatprep.mubr.bf16.mxu0 %v4930
        %5077 = vmatmul.mubr.bf16.gmra.mrb[0].mxu0 %v4825
        %v5078 = vpop.f32.mrb[0].mxu0
        %v5079 = vadd.f32 %v4002, %v5078
        %v5080 = vpop.f32.mrb[0].mxu0
        %v5081 = vpop.f32.mrb[0].mxu0
        %v5082 = vadd.f32 %v4005, %v5081
        %v5083 = vpop.f32.mrb[0].mxu0
        %5084 = vmatprep.mubr.bf16.mxu0 %v4928
        %5085 = vmatmul.mubr.bf16.gmra.mrb[0].mxu0 %v4827
        %v5086 = vpop.f32.mrb[0].mxu0
        %v5087 = vadd.f32 %v4010, %v5086
        %v5088 = vpop.f32.mrb[0].mxu0
        %v5089 = vpop.f32.mrb[0].mxu0
        %v5090 = vadd.f32 %v4013, %v5089
        %v5091 = vpop.f32.mrb[0].mxu0
        %5092 = vdwg.mxu0
        %s5093 = scalar_lea.vmem %s3, 2
        %v5094 = vld [vmem:[%s5093] sm:$0x1]
        %v5096 = vlaneseq
        %v5097 = vshrl.u32 %v5096, 7
        %v5098 = vsub.s32 0, %v5097
        %v5099 = vrot.slane %v5094, %v5098
        %v5101 = vmul.f32 %v4967, %v5099
        %v5102 = vmul.f32 %v4970, %v5099
        %v5103 = vmul.f32 %v4975, %v5099
        %v5104 = vmul.f32 %v4978, %v5099
        %v5105 = vmul.f32 %v4983, %v5099
        %v5106 = vmul.f32 %v4986, %v5099
        %v5107 = vmul.f32 %v4991, %v5099
        %v5108 = vmul.f32 %v4994, %v5099
        %v5109 = vmul.f32 %v4999, %v5099
        %v5110 = vmul.f32 %v5002, %v5099
        %v5111 = vmul.f32 %v5007, %v5099
        %v5112 = vmul.f32 %v5010, %v5099
        %v5113 = vmul.f32 %v5015, %v5099
        %v5114 = vmul.f32 %v5018, %v5099
        %v5115 = vmul.f32 %v5023, %v5099
        %v5116 = vmul.f32 %v5026, %v5099
        %v5117 = vmul.f32 %v5031, %v5099
        %v5118 = vmul.f32 %v5034, %v5099
        %v5119 = vmul.f32 %v5039, %v5099
        %v5120 = vmul.f32 %v5042, %v5099
        %v5121 = vmul.f32 %v5047, %v5099
        %v5122 = vmul.f32 %v5050, %v5099
        %v5123 = vmul.f32 %v5055, %v5099
        %v5124 = vmul.f32 %v5058, %v5099
        %v5125 = vmul.f32 %v5063, %v5099
        %v5126 = vmul.f32 %v5066, %v5099
        %v5127 = vmul.f32 %v5071, %v5099
        %v5128 = vmul.f32 %v5074, %v5099
        %v5129 = vmul.f32 %v5079, %v5099
        %v5130 = vmul.f32 %v5082, %v5099
        %v5131 = vmul.f32 %v5087, %v5099
        %v5132 = vmul.f32 %v5090, %v5099
        %s5133 = scalar_lea.vmem %s3, 3
        %v5134 = vld [vmem:[%s5133] sm:$0x1]
        %v5136 = vlaneseq
        %v5137 = vshrl.u32 %v5136, 7
        %v5138 = vsub.s32 0, %v5137
        %v5139 = vrot.slane %v5134, %v5138
        %v5141 = vadd.f32 %v5101, %v5139
        %v5142 = vadd.f32 %v5102, %v5139
        %v5143 = vadd.f32 %v5103, %v5139
        %v5144 = vadd.f32 %v5104, %v5139
        %v5145 = vadd.f32 %v5105, %v5139
        %v5146 = vadd.f32 %v5106, %v5139
        %v5147 = vadd.f32 %v5107, %v5139
        %v5148 = vadd.f32 %v5108, %v5139
        %v5149 = vadd.f32 %v5109, %v5139
        %v5150 = vadd.f32 %v5110, %v5139
        %v5151 = vadd.f32 %v5111, %v5139
        %v5152 = vadd.f32 %v5112, %v5139
        %v5153 = vadd.f32 %v5113, %v5139
        %v5154 = vadd.f32 %v5114, %v5139
        %v5155 = vadd.f32 %v5115, %v5139
        %v5156 = vadd.f32 %v5116, %v5139
        %v5157 = vadd.f32 %v5117, %v5139
        %v5158 = vadd.f32 %v5118, %v5139
        %v5159 = vadd.f32 %v5119, %v5139
        %v5160 = vadd.f32 %v5120, %v5139
        %v5161 = vadd.f32 %v5121, %v5139
        %v5162 = vadd.f32 %v5122, %v5139
        %v5163 = vadd.f32 %v5123, %v5139
        %v5164 = vadd.f32 %v5124, %v5139
        %v5165 = vadd.f32 %v5125, %v5139
        %v5166 = vadd.f32 %v5126, %v5139
        %v5167 = vadd.f32 %v5127, %v5139
        %v5168 = vadd.f32 %v5128, %v5139
        %v5169 = vadd.f32 %v5129, %v5139
        %v5170 = vadd.f32 %v5130, %v5139
        %v5171 = vadd.f32 %v5131, %v5139
        %v5172 = vadd.f32 %v5132, %v5139
        %v5173 = vmax.f32 %v5141, 0.0
        %v5174 = vmax.f32 %v5142, 0.0
        %v5175 = vmax.f32 %v5143, 0.0
        %v5176 = vmax.f32 %v5144, 0.0
        %v5177 = vmax.f32 %v5145, 0.0
        %v5178 = vmax.f32 %v5146, 0.0
        %v5179 = vmax.f32 %v5147, 0.0
        %v5180 = vmax.f32 %v5148, 0.0
        %v5181 = vmax.f32 %v5149, 0.0
        %v5182 = vmax.f32 %v5150, 0.0
        %v5183 = vmax.f32 %v5151, 0.0
        %v5184 = vmax.f32 %v5152, 0.0
        %v5185 = vmax.f32 %v5153, 0.0
        %v5186 = vmax.f32 %v5154, 0.0
        %v5187 = vmax.f32 %v5155, 0.0
        %v5188 = vmax.f32 %v5156, 0.0
        %v5189 = vmax.f32 %v5157, 0.0
        %v5190 = vmax.f32 %v5158, 0.0
        %v5191 = vmax.f32 %v5159, 0.0
        %v5192 = vmax.f32 %v5160, 0.0
        %v5193 = vmax.f32 %v5161, 0.0
        %v5194 = vmax.f32 %v5162, 0.0
        %v5195 = vmax.f32 %v5163, 0.0
        %v5196 = vmax.f32 %v5164, 0.0
        %v5197 = vmax.f32 %v5165, 0.0
        %v5198 = vmax.f32 %v5166, 0.0
        %v5199 = vmax.f32 %v5167, 0.0
        %v5200 = vmax.f32 %v5168, 0.0
        %v5201 = vmax.f32 %v5169, 0.0
        %v5202 = vmax.f32 %v5170, 0.0
        %v5203 = vmax.f32 %v5171, 0.0
        %v5204 = vmax.f32 %v5172, 0.0
        %v5205 = vadd.f32 %v5173, %v244
        %v5206 = vadd.f32 %v5174, %v245
        %v5207 = vadd.f32 %v5175, %v246
        %v5208 = vadd.f32 %v5176, %v247
        %v5209 = vadd.f32 %v5177, %v248
        %v5210 = vadd.f32 %v5178, %v249
        %v5211 = vadd.f32 %v5179, %v250
        %v5212 = vadd.f32 %v5180, %v251
        %v5213 = vadd.f32 %v5181, %v252
        %v5214 = vadd.f32 %v5182, %v253
        %v5215 = vadd.f32 %v5183, %v254
        %v5216 = vadd.f32 %v5184, %v255
        %v5217 = vadd.f32 %v5185, %v256
        %v5218 = vadd.f32 %v5186, %v257
        %v5219 = vadd.f32 %v5187, %v258
        %v5220 = vadd.f32 %v5188, %v259
        %v5221 = vadd.f32 %v5189, %v260
        %v5222 = vadd.f32 %v5190, %v261
        %v5223 = vadd.f32 %v5191, %v262
        %v5224 = vadd.f32 %v5192, %v263
        %v5225 = vadd.f32 %v5193, %v264
        %v5226 = vadd.f32 %v5194, %v265
        %v5227 = vadd.f32 %v5195, %v266
        %v5228 = vadd.f32 %v5196, %v267
        %v5229 = vadd.f32 %v5197, %v268
        %v5230 = vadd.f32 %v5198, %v269
        %v5231 = vadd.f32 %v5199, %v270
        %v5232 = vadd.f32 %v5200, %v271
        %v5233 = vadd.f32 %v5201, %v272
        %v5234 = vadd.f32 %v5202, %v273
        %v5235 = vadd.f32 %v5203, %v274
        %v5236 = vadd.f32 %v5204, %v275
        %5237 = vst.msk [vmem:[%s242] sm:$0xff] %vm300, %v5205
        %5238 = vst.msk [vmem:[%s242 + $0x8] sm:$0xff] %vm300, %v5206
        %5239 = vst.msk [vmem:[%s242 + $0x10] sm:$0xff] %vm300, %v5207
        %5240 = vst.msk [vmem:[%s242 + $0x18] sm:$0xff] %vm300, %v5208
        %5241 = vst.msk [vmem:[%s242 + $0x20] sm:$0xff] %vm300, %v5209
        %5242 = vst.msk [vmem:[%s242 + $0x28] sm:$0xff] %vm300, %v5210
        %5243 = vst.msk [vmem:[%s242 + $0x30] sm:$0xff] %vm300, %v5211
        %5244 = vst.msk [vmem:[%s242 + $0x38] sm:$0xff] %vm300, %v5212
        %5245 = vst.msk [vmem:[%s242 + $0x40] sm:$0xff] %vm300, %v5213
        %5246 = vst.msk [vmem:[%s242 + $0x48] sm:$0xff] %vm300, %v5214
        %5247 = vst.msk [vmem:[%s242 + $0x50] sm:$0xff] %vm300, %v5215
        %5248 = vst.msk [vmem:[%s242 + $0x58] sm:$0xff] %vm300, %v5216
        %5249 = vst.msk [vmem:[%s242 + $0x60] sm:$0xff] %vm300, %v5217
        %5250 = vst.msk [vmem:[%s242 + $0x68] sm:$0xff] %vm300, %v5218
        %5251 = vst.msk [vmem:[%s242 + $0x70] sm:$0xff] %vm300, %v5219
        %5252 = vst.msk [vmem:[%s242 + $0x78] sm:$0xff] %vm300, %v5220
        %5253 = vst.msk [vmem:[%s242 + $0x80] sm:$0xff] %vm300, %v5221
        %5254 = vst.msk [vmem:[%s242 + $0x88] sm:$0xff] %vm300, %v5222
        %5255 = vst.msk [vmem:[%s242 + $0x90] sm:$0xff] %vm300, %v5223
        %5256 = vst.msk [vmem:[%s242 + $0x98] sm:$0xff] %vm300, %v5224
        %5257 = vst.msk [vmem:[%s242 + $0xa0] sm:$0xff] %vm300, %v5225
        %5258 = vst.msk [vmem:[%s242 + $0xa8] sm:$0xff] %vm300, %v5226
        %5259 = vst.msk [vmem:[%s242 + $0xb0] sm:$0xff] %vm300, %v5227
        %5260 = vst.msk [vmem:[%s242 + $0xb8] sm:$0xff] %vm300, %v5228
        %5261 = vst.msk [vmem:[%s242 + $0xc0] sm:$0xff] %vm300, %v5229
        %5262 = vst.msk [vmem:[%s242 + $0xc8] sm:$0xff] %vm300, %v5230
        %5263 = vst.msk [vmem:[%s242 + $0xd0] sm:$0xff] %vm300, %v5231
        %5264 = vst.msk [vmem:[%s242 + $0xd8] sm:$0xff] %vm300, %v5232
        %5265 = vst.msk [vmem:[%s242 + $0xe0] sm:$0xff] %vm300, %v5233
        %5266 = vst.msk [vmem:[%s242 + $0xe8] sm:$0xff] %vm300, %v5234
        %5267 = vst.msk [vmem:[%s242 + $0xf0] sm:$0xff] %vm300, %v5235
        %5268 = vst.msk [vmem:[%s242 + $0xf8] sm:$0xff] %vm300, %v5236
        %s5269 = sand.u32 %s140, 1
        %s5270 = scalar_lea.sflag [#allocation4], %s5269
        %s5271 = sand.u32 %s140, 1
        %s5272 = smul.addr %s5271, 256
        %s5273 = scalar_lea.vmem [#allocation5], %s5272
        // Predicated region
        $region45: #{_ffc_resnet_block_impl.1} parent=39 // pred_check
          %p5274 = pneg %p150
        $region46: #{_ffc_resnet_block_impl.1} parent=39 // pred_check_branch
          %5276 = sbr.rel (%p5274) target = $region48
        $region47: #{_ffc_resnet_block_impl.1} parent=39 // pred_region
          %s5278 = ssub.s32 4096, 4096
          %5279 = vsyncadd %s5270, %s5278
          %s5280 = smul.addr %s22, 32
          %s5281 = smul.addr %s5280, 128
          %s5282 = scalar_lea.hbm %s5, %s5281
          %s5283 = sshll.u32 %s5273, 4
          %s5284 = int_to_ptr.vmem [resolvable:$true] %s5283
          %5289 = dma.vmem_to_hbm [thread:$0]  %s5284, 4096, %s5282, %s5270, 128, 128, 8
        $region48: #{_ffc_resnet_block_impl.1} parent=39 // pred_fallthru
          _
      $region40: #{_ffc_resnet_block_impl.1} parent=5 // pred_fallthru
        _
      %p5290 = scmp.le.s32.totalorder 2, %s17
      // Predicated region
      $region49: #{_ffc_resnet_block_impl.1} parent=5 // pred_check
        %p5291 = pneg %p5290
      $region50: #{_ffc_resnet_block_impl.1} parent=5 // pred_check_branch
        %5293 = sbr.rel (%p5291) target = $region52
      $region51: #{_ffc_resnet_block_impl.1} parent=5 // pred_region
        %s5294 = ssub.s32 %s17, 2
        // Predicated region
        $region53: #{_ffc_resnet_block_impl.1} parent=51 // pred_check
          %p5295 = pneg %p156
        $region54: #{_ffc_resnet_block_impl.1} parent=51 // pred_check_branch
          %5297 = sbr.rel (%p5295) target = $region56
        $region55: #{_ffc_resnet_block_impl.1} parent=51 // pred_region
          %s5298 = sand.u32 %s141, 1
          %s5299 = scalar_lea.sflag [#allocation4], %s5298
          %s5300 = sand.u32 %s141, 1
          %s5301 = smul.addr %s5300, 256
          %s5302 = scalar_lea.vmem [#allocation5], %s5301
          %5303 = dma.done %s5299, 4096
        $region56: #{_ffc_resnet_block_impl.1} parent=51 // pred_fallthru
          _
      $region52: #{_ffc_resnet_block_impl.1} parent=5 // pred_fallthru
        _
    $region6: #{_ffc_resnet_block_impl.1} parent=1 // loop_footer
      %s21 = sadd.s32 1, %s17
    $region7: #{_ffc_resnet_block_impl.1} parent=1 // loop_footer_branch
      %16 = sbr.rel target = $region3
    $region8: #{_ffc_resnet_block_impl.1} parent=1 // loop_exit
      _
    %5304 = vsyncpa [#allocation3], 1
    %s5305 = scalar_lea.sflag [#allocation3], 1
    %5306 = vsyncpa %s5305, 1
    %5307 = vsyncpa [#allocation4], 1
    %s5308 = scalar_lea.sflag [#allocation4], 1
    %5309 = vsyncpa %s5308, 1

</llo_original>
